<compile_context>
chip_gen: v7x
topology: tpu7x:2x2x1
jax: 0.10.0
libtpu: 0.0.40
codegen_flags: <defaults>
</compile_context>

<pallas_src>
import functools

import jax
import jax.numpy as jnp
import numpy as np
from jax import lax
from jax.experimental import pallas as pl
from jax.experimental.pallas import tpu as pltpu

LANE = 128          # TPU lane width; resblock channel dims are zero-padded up to this
_GN_EPS = 1e-6

_COMPILER_PARAMS = pltpu.CompilerParams(
    dimension_semantics=("parallel",),
    vmem_limit_bytes=32 * 1024 * 1024,
)


# ------------------------------ in-kernel helpers -------------------------------

def _gn_act_conv3x3(x2d, a_ref, g_ref, b_ref, w_ref, wb_ref, pad_ref, H, W, *,
                    pre_silu):
    """conv3x3(act(GroupNorm(x))) on one (H*W, CPin) channels-last tile.

    x2d     : (H*W, CPin) f32 activation (lane padding, if any, is zero).
    a_ref   : (CPin, CPin) f32 group-averaging matrix (zero rows/cols for padding).
    g_ref/b_ref : (1, CPin) f32 GroupNorm affine (zero-padded).
    w_ref   : (9, CPin, CPout) bf16 conv weights, tap order (dy, dx).
    wb_ref  : (1, CPout) f32 conv bias.
    pad_ref : (H+2, W+2, CPin) bf16 VMEM scratch for the zero halo.
    pre_silu: apply SiLU between GN and conv (ResnetBlock path).  The proj stage
              is conv(GN(z)); its SiLU is applied by the caller *after* the conv.
    Returns (H*W, CPout) f32.
    """
    cp_in = x2d.shape[-1]

    # --- GroupNorm: single pass (E[x], E[x^2]) in f32, one fused stats matmul ---
    s = jnp.sum(x2d, axis=0, keepdims=True)                        # (1, CPin)
    q = jnp.sum(x2d * x2d, axis=0, keepdims=True)                  # (1, CPin)
    red = jnp.dot(jnp.concatenate([s, q], axis=0), a_ref[...],
                  preferred_element_type=jnp.float32)              # (2, CPin)
    mean, ex2 = red[0:1], red[1:2]
    var = jnp.maximum(ex2 - mean * mean, 0.0)
    scale = g_ref[...] * lax.rsqrt(var + _GN_EPS)
    shift = b_ref[...] - mean * scale
    y = x2d * scale + shift
    if pre_silu:
        y = y * jax.nn.sigmoid(y)                                  # SiLU (f32 math)
    act = y.astype(jnp.bfloat16)

    # --- bf16 halo scratch: zero the 1-px border only, interior fully rewritten ---
    pad_ref[pl.ds(0, 1)] = jnp.zeros((1, W + 2, cp_in), jnp.bfloat16)
    pad_ref[pl.ds(H + 1, 1)] = jnp.zeros((1, W + 2, cp_in), jnp.bfloat16)
    pad_ref[:, pl.ds(0, 1), :] = jnp.zeros((H + 2, 1, cp_in), jnp.bfloat16)
    pad_ref[:, pl.ds(W + 1, 1), :] = jnp.zeros((H + 2, 1, cp_in), jnp.bfloat16)
    pad_ref[pl.ds(1, H), pl.ds(1, W), :] = act.reshape(H, W, cp_in)

    # --- 9 accumulating per-tap MXU matmuls (bf16 operands, f32 accumulation) ---
    acc = None
    for dy in range(3):
        for dx in range(3):
            tap = pad_ref[pl.ds(dy, H), pl.ds(dx, W), :].reshape(H * W, cp_in)
            p = jnp.dot(tap, w_ref[dy * 3 + dx],
                        preferred_element_type=jnp.float32)
            acc = p if acc is None else acc + p
    return acc + wb_ref[...]                                       # (HW, CPout) f32


def _avgpool2x2(out2d, H, W):
    """2x2 average pool on a (H*W, C) f32 tile via VPU adds (no pool matrix)."""
    cp = out2d.shape[-1]
    o = out2d.reshape(H // 2, 2, W, cp)
    rows = o[:, 0] + o[:, 1]                                       # (H//2, W, C)
    o = rows.reshape(H // 2, W // 2, 2, cp)
    return (o[:, :, 0, :] + o[:, :, 1, :]) * 0.25                  # (H//2, W//2, C)


# --------------------------------- kernels --------------------------------------

def _proj_kernel(x_ref, a_ref, g_ref, b_ref, w_ref, wb_ref, o_ref, pad_ref, *, H, W):
    """proj_norm -> proj (3x3 conv) -> SiLU, fused (SiLU only AFTER the conv)."""
    cp_in = x_ref.shape[-1]
    x2d = x_ref[0].reshape(H * W, cp_in).astype(jnp.float32)
    h = _gn_act_conv3x3(x2d, a_ref, g_ref, b_ref, w_ref, wb_ref, pad_ref, H, W,
                        pre_silu=False)
    h = h * jax.nn.sigmoid(h)                                      # nonlinearity(z)
    o_ref[0] = h.reshape(H, W, h.shape[-1]).astype(o_ref.dtype)


def _resblock_pool_kernel(x_ref, a1_ref, g1_ref, b1_ref, w1_ref, wb1_ref,
                          a2_ref, g2_ref, b2_ref, w2_ref, wb2_ref,
                          o_ref, pad1_ref, pad2_ref, *, H, W):
    """ResnetBlock (identity shortcut, temb=None) + 2x2 avg-pool, fused."""
    cp_in = x_ref.shape[-1]
    x_bf = x_ref[0].reshape(H * W, cp_in)                          # bf16 residual copy
    h = _gn_act_conv3x3(x_bf.astype(jnp.float32), a1_ref, g1_ref, b1_ref,
                        w1_ref, wb1_ref, pad1_ref, H, W, pre_silu=True)
    # TODO(synk): torch.nn.Dropout between norm2 and conv2 is identity at inference.
    h = _gn_act_conv3x3(h, a2_ref, g2_ref, b2_ref, w2_ref, wb2_ref,
                        pad2_ref, H, W, pre_silu=True)
    out = h + x_bf                                                 # bf16 promoted at the add
    o_ref[0] = _avgpool2x2(out, H, W).astype(o_ref.dtype)


def _resblock_nin_pool_kernel(x_ref, a1_ref, g1_ref, b1_ref, w1_ref, wb1_ref,
                              a2_ref, g2_ref, b2_ref, w2_ref, wb2_ref,
                              ws_ref, bs_ref, o_ref, pad1_ref, pad2_ref, *, H, W):
    """ResnetBlock (1x1 nin_shortcut, temb=None) + 2x2 avg-pool, fused."""
    cp_in = x_ref.shape[-1]
    x_bf = x_ref[0].reshape(H * W, cp_in)                          # bf16
    h = _gn_act_conv3x3(x_bf.astype(jnp.float32), a1_ref, g1_ref, b1_ref,
                        w1_ref, wb1_ref, pad1_ref, H, W, pre_silu=True)
    h = _gn_act_conv3x3(h, a2_ref, g2_ref, b2_ref, w2_ref, wb2_ref,
                        pad2_ref, H, W, pre_silu=True)
    sc = jnp.dot(x_bf, ws_ref[...], preferred_element_type=jnp.float32) + bs_ref[...]
    out = h + sc
    o_ref[0] = _avgpool2x2(out, H, W).astype(o_ref.dtype)


# -------------------------------- wrappers ---------------------------------------

def _full_spec(shape):
    return pl.BlockSpec(shape, lambda *_: (0,) * len(shape))


def _proj_call(z, p, *, H, W):
    n, cp_in = z.shape[0], z.shape[-1]
    cp_out = p["w"].shape[-1]
    return pl.pallas_call(
        functools.partial(_proj_kernel, H=H, W=W),
        out_shape=jax.ShapeDtypeStruct((n, H, W, cp_out), jnp.bfloat16),
        grid=(n,),
        in_specs=[
            pl.BlockSpec((1, H, W, cp_in), lambda i: (i, 0, 0, 0)),
            _full_spec(p["A"].shape),
            _full_spec(p["g"].shape),
            _full_spec(p["b"].shape),
            _full_spec(p["w"].shape),
            _full_spec(p["wb"].shape),
        ],
        out_specs=pl.BlockSpec((1, H, W, cp_out), lambda i: (i, 0, 0, 0)),
        scratch_shapes=[pltpu.VMEM((H + 2, W + 2, cp_in), jnp.bfloat16)],
        compiler_params=_COMPILER_PARAMS,
    )(z, p["A"], p["g"], p["b"], p["w"], p["wb"])


def _resblock_call(z, blk, *, H, W):
    n, cp_in = z.shape[0], z.shape[-1]
    cp_mid = blk["w1"].shape[-1]
    cp_out = blk["w2"].shape[-1]
    nin = blk["ws"] is not None

    args = [z, blk["A1"], blk["g1"], blk["b1"], blk["w1"], blk["wb1"],
            blk["A2"], blk["g2"], blk["b2"], blk["w2"], blk["wb2"]]
    in_specs = [pl.BlockSpec((1, H, W, cp_in), lambda i: (i, 0, 0, 0))]
    in_specs += [_full_spec(a.shape) for a in args[1:]]
    if nin:
        args += [blk["ws"], blk["bs"]]
        in_specs += [_full_spec(blk["ws"].shape), _full_spec(blk["bs"].shape)]

    kern = _resblock_nin_pool_kernel if nin else _resblock_pool_kernel
    return pl.pallas_call(
        functools.partial(kern, H=H, W=W),
        out_shape=jax.ShapeDtypeStruct((n, H // 2, W // 2, cp_out), jnp.bfloat16),
        grid=(n,),
        in_specs=in_specs,
        out_specs=pl.BlockSpec((1, H // 2, W // 2, cp_out), lambda i: (i, 0, 0, 0)),
        scratch_shapes=[pltpu.VMEM((H + 2, W + 2, cp_in), jnp.bfloat16),
                        pltpu.VMEM((H + 2, W + 2, cp_mid), jnp.bfloat16)],
        compiler_params=_COMPILER_PARAMS,
    )(*args)


def first_stage_post_processor_forward(z_fs, pp):
    """FirstStagePostProcessor.forward applied to the pretrained-encoder output z_fs.

    TODO(synk): encode_with_pretrained (the frozen first-stage autoencoder and its
    DiagonalGaussianDistribution.mode()) is an arbitrary external nn.Module with no
    Pallas equivalent; its output z_fs is taken as the input here.

    z_fs: (N, C_in, H, W) float32 NCHW.  Returns NCHW float32 (do_reshape=False path).
    """
    n, c_in, H, W = z_fs.shape
    # NHWC once at entry; proj keeps the real (tiny) c_in, no lane padding / jnp.pad.
    z = jnp.transpose(z_fs, (0, 2, 3, 1)).astype(jnp.bfloat16)

    z = _proj_call(z, pp["proj"], H=H, W=W)                       # GN -> conv3x3 -> SiLU
    h, w = H, W
    for blk in pp["blocks"]:                                      # ResnetBlock + AvgPool
        z = _resblock_call(z, blk, H=h, W=w)
        h, w = h // 2, w // 2

    z = z[..., :pp["c_out"]].astype(jnp.float32)                  # drop lane padding
    return jnp.transpose(z, (0, 3, 1, 2))                         # NCHW (do_reshape=False)


# ----------------------------- parameter packing ---------------------------------

def _cpad(c):
    return ((c + LANE - 1) // LANE) * LANE


def _pad_vec(v, cp):
    return jnp.pad(v.astype(jnp.float32), (0, cp - v.shape[0]))[None, :]


def _pack_conv3x3(w_hwio, cp_in, cp_out):
    kh, kw, c_in, c_out = w_hwio.shape
    wp = jnp.zeros((kh * kw, cp_in, cp_out), jnp.float32)
    wp = wp.at[:, :c_in, :c_out].set(w_hwio.reshape(kh * kw, c_in, c_out))
    return wp.astype(jnp.bfloat16)                                # (9, CPin, CPout)


def _group_avg_matrix(c, groups, hw, cp):
    a = np.zeros((cp, cp), np.float32)
    cg = c // groups
    for g in range(groups):
        a[g * cg:(g + 1) * cg, g * cg:(g + 1) * cg] = 1.0 / (cg * hw)
    return jnp.asarray(a)


def pack_params(raw, c_in, n_channels, ch_mult, H, W):
    cp_n = _cpad(n_channels)
    packed = {
        "proj": {
            # proj keeps the real c_in, so each conv tap is a K=c_in matmul (not K=128).
            "A": _group_avg_matrix(c_in, c_in // 2, H * W, c_in),
            "g": _pad_vec(raw["proj_g"], c_in),
            "b": _pad_vec(raw["proj_b"], c_in),
            "w": _pack_conv3x3(raw["proj_w"], c_in, cp_n),
            "wb": _pad_vec(raw["proj_wb"], cp_n),
        },
        "blocks": [],
    }
    ch, h, w = n_channels, H, W
    for i, m in enumerate(ch_mult):
        rb = raw["blocks"][i]
        c_out = m * n_channels
        cpi, cpo = _cpad(ch), _cpad(c_out)
        blk = {
            "A1": _group_avg_matrix(ch, 32, h * w, cpi),
            "g1": _pad_vec(rb["g1"], cpi), "b1": _pad_vec(rb["b1"], cpi),
            "w1": _pack_conv3x3(rb["w1"], cpi, cpo), "wb1": _pad_vec(rb["wb1"], cpo),
            "A2": _group_avg_matrix(c_out, 32, h * w, cpo),
            "g2": _pad_vec(rb["g2"], cpo), "b2": _pad_vec(rb["b2"], cpo),
            "w2": _pack_conv3x3(rb["w2"], cpo, cpo), "wb2": _pad_vec(rb["wb2"], cpo),
            "ws": None, "bs": None,
        }
        if ch != c_out:
            ws = jnp.zeros((cpi, cpo), jnp.float32).at[:ch, :c_out].set(rb["ws"])
            blk["ws"] = ws.astype(jnp.bfloat16)
            blk["bs"] = _pad_vec(rb["bs"], cpo)
        packed["blocks"].append(blk)
        ch, h, w = c_out, h // 2, w // 2
    packed["c_out"] = ch
    return packed


# ----------------------------- pure-JAX reference ---------------------------------

def _silu(x):
    return x * jax.nn.sigmoid(x)


def _gn_ref(x, gamma, beta, groups, eps=1e-6):
    n, c, h, w = x.shape
    xg = x.reshape(n, groups, c // groups, h, w)
    mean = xg.mean(axis=(2, 3, 4), keepdims=True)
    var = ((xg - mean) ** 2).mean(axis=(2, 3, 4), keepdims=True)
    xn = ((xg - mean) / jnp.sqrt(var + eps)).reshape(n, c, h, w)
    return xn * gamma[None, :, None, None] + beta[None, :, None, None]


def _conv3_ref(x, w_hwio, b):
    w_oihw = jnp.transpose(w_hwio, (3, 2, 0, 1))
    y = lax.conv_general_dilated(x, w_oihw, (1, 1), [(1, 1), (1, 1)],
                                 dimension_numbers=("NCHW", "OIHW", "NCHW"))
    return y + b[None, :, None, None]


def _avgpool2_ref(x):
    n, c, h, w = x.shape
    return x.reshape(n, c, h // 2, 2, w // 2, 2).mean(axis=(3, 5))


def first_stage_post_processor_ref(z_fs, raw):
    z = _gn_ref(z_fs, raw["proj_g"], raw["proj_b"], z_fs.shape[1] // 2)
    z = _silu(_conv3_ref(z, raw["proj_w"], raw["proj_wb"]))
    for blk in raw["blocks"]:
        h = _conv3_ref(_silu(_gn_ref(z, blk["g1"], blk["b1"], 32)), blk["w1"], blk["wb1"])
        h = _conv3_ref(_silu(_gn_ref(h, blk["g2"], blk["b2"], 32)), blk["w2"], blk["wb2"])
        if blk["ws"] is not None:
            z = jnp.einsum("nchw,co->nohw", z, blk["ws"]) + blk["bs"][None, :, None, None]
        z = _avgpool2_ref(z + h)
    return z


# ------------------------------------ main ----------------------------------------

if __name__ == "__main__":
    N, C_IN, H, W = 2, 4, 16, 16          # z_fs: pretrained-encoder latent
    N_CHANNELS = 64
    CH_MULT = [1, 2]                      # block0: 64->64 (identity), block1: 64->128 (nin)

    keys = iter(jax.random.split(jax.random.PRNGKey(0), 32))

    def rnd(shape, scale=0.1):
        return scale * jax.random.normal(next(keys), shape, jnp.float32)

    raw = {
        "proj_g": 1.0 + rnd((C_IN,)),
        "proj_b": rnd((C_IN,)),
        "proj_w": rnd((3, 3, C_IN, N_CHANNELS)),
        "proj_wb": rnd((N_CHANNELS,), 0.02),
        "blocks": [],
    }
    ch = N_CHANNELS
    for m in CH_MULT:
        c_out = m * N_CHANNELS
        raw["blocks"].append({
            "g1": 1.0 + rnd((ch,)), "b1": rnd((ch,)),
            "w1": rnd((3, 3, ch, c_out), 0.05), "wb1": rnd((c_out,), 0.02),
            "g2": 1.0 + rnd((c_out,)), "b2": rnd((c_out,)),
            "w2": rnd((3, 3, c_out, c_out), 0.05), "wb2": rnd((c_out,), 0.02),
            "ws": rnd((ch, c_out)) if ch != c_out else None,
            "bs": rnd((c_out,), 0.02) if ch != c_out else None,
        })
        ch = c_out

    z_fs = jax.random.normal(next(keys), (N, C_IN, H, W), jnp.float32)

    packed = pack_params(raw, C_IN, N_CHANNELS, CH_MULT, H, W)

    out = jax.block_until_ready(first_stage_post_processor_forward(z_fs, packed))
    ref = jax.block_until_ready(first_stage_post_processor_ref(z_fs, raw))

    s = 2 ** len(CH_MULT)
    assert out.shape == (N, CH_MULT[-1] * N_CHANNELS, H // s, W // s), out.shape
    err = float(np.max(np.abs(np.asarray(out) - np.asarray(ref))))
    assert np.allclose(np.asarray(out), np.asarray(ref), rtol=5e-2, atol=8e-2), (
        f"mismatch vs JAX reference: max abs err {err}")
    print("KERNEL_OK")
</pallas_src>

<mosaic_0001>
module attributes {stable_mosaic.version = 11 : i64} {
  func.func @_proj_kernel(%arg0: i32, %arg1: memref<1x16x16x4xbf16, #tpu.memory_space<vmem>>, %arg2: memref<4x4xf32, #tpu.memory_space<vmem>>, %arg3: memref<1x4xf32, #tpu.memory_space<vmem>>, %arg4: memref<1x4xf32, #tpu.memory_space<vmem>>, %arg5: memref<9x4x128xbf16, #tpu.memory_space<vmem>>, %arg6: memref<1x128xf32, #tpu.memory_space<vmem>>, %arg7: memref<1x16x16x128xbf16, #tpu.memory_space<vmem>>, %arg8: memref<18x18x4xbf16, #tpu.memory_space<vmem>>) attributes {dimension_semantics = [#tpu.dimension_semantics<parallel>], iteration_bounds = array<i64: 2>, scalar_prefetch = 0 : i64, scratch_operands = 1 : i64, tpu.core_type = #tpu.core_type<tc>, window_params = [{transform_indices = @transform_0, window_bounds = array<i64: 1, 16, 16, 4>}, {pipeline_mode = #tpu.pipeline_mode<synchronous>, transform_indices = @transform_1, window_bounds = array<i64: 4, 4>}, {pipeline_mode = #tpu.pipeline_mode<synchronous>, transform_indices = @transform_2, window_bounds = array<i64: 1, 4>}, {pipeline_mode = #tpu.pipeline_mode<synchronous>, transform_indices = @transform_3, window_bounds = array<i64: 1, 4>}, {pipeline_mode = #tpu.pipeline_mode<synchronous>, transform_indices = @transform_4, window_bounds = array<i64: 9, 4, 128>}, {pipeline_mode = #tpu.pipeline_mode<synchronous>, transform_indices = @transform_5, window_bounds = array<i64: 1, 128>}, {transform_indices = @transform_6, window_bounds = array<i64: 1, 16, 16, 128>}]} {
    %c0 = arith.constant 0 : index
    %c0_0 = arith.constant 0 : index
    %c0_1 = arith.constant 0 : index
    %c0_2 = arith.constant 0 : index
    %0 = vector.load %arg1[%c0, %c0_0, %c0_1, %c0_2] : memref<1x16x16x4xbf16, #tpu.memory_space<vmem>>, vector<1x16x16x4xbf16>
    %1 = vector.shape_cast %0 : vector<1x16x16x4xbf16> to vector<16x16x4xbf16>
    %2 = vector.shape_cast %1 : vector<16x16x4xbf16> to vector<256x4xbf16>
    %3 = arith.extf %2 : vector<256x4xbf16> to vector<256x4xf32>
    %cst = arith.constant dense<0.000000e+00> : vector<4xf32>
    %4 = vector.multi_reduction <add>, %3, %cst [0] : vector<256x4xf32> to vector<4xf32>
    %5 = vector.shape_cast %4 : vector<4xf32> to vector<1x4xf32>
    %6 = arith.mulf %3, %3 : vector<256x4xf32>
    %cst_3 = arith.constant dense<0.000000e+00> : vector<4xf32>
    %7 = vector.multi_reduction <add>, %6, %cst_3 [0] : vector<256x4xf32> to vector<4xf32>
    %8 = vector.shape_cast %7 : vector<4xf32> to vector<1x4xf32>
    %9 = tpu.concatenate %5, %8 in 0 : vector<1x4xf32>, vector<1x4xf32> -> vector<2x4xf32>
    %c0_4 = arith.constant 0 : index
    %c0_5 = arith.constant 0 : index
    %10 = vector.load %arg2[%c0_4, %c0_5] : memref<4x4xf32, #tpu.memory_space<vmem>>, vector<4x4xf32>
    %cst_6 = arith.constant dense<0.000000e+00> : vector<2x4xf32>
    %11 = tpu.matmul %9, %10, %cst_6 {dimension_numbers = #tpu.dot_dimension_numbers<[1], [0], [0], [1], [0, 0, 1, 1], [], []>} : vector<2x4xf32>, vector<4x4xf32>, vector<2x4xf32> -> vector<2x4xf32>
    %12 = vector.extract_strided_slice %11 {offsets = [0, 0], sizes = [1, 4], strides = [1, 1]} : vector<2x4xf32> to vector<1x4xf32>
    %13 = vector.extract_strided_slice %11 {offsets = [1, 0], sizes = [1, 4], strides = [1, 1]} : vector<2x4xf32> to vector<1x4xf32>
    %14 = arith.mulf %12, %12 : vector<1x4xf32>
    %15 = arith.subf %13, %14 : vector<1x4xf32>
    %cst_7 = arith.constant 0.000000e+00 : f32
    %16 = vector.broadcast %cst_7 : f32 to vector<1x4xf32>
    %17 = arith.maximumf %15, %16 : vector<1x4xf32>
    %c0_8 = arith.constant 0 : index
    %c0_9 = arith.constant 0 : index
    %18 = vector.load %arg3[%c0_8, %c0_9] : memref<1x4xf32, #tpu.memory_space<vmem>>, vector<1x4xf32>
    %cst_10 = arith.constant 9.99999997E-7 : f32
    %19 = vector.broadcast %cst_10 : f32 to vector<1x4xf32>
    %20 = arith.addf %17, %19 : vector<1x4xf32>
    %21 = math.rsqrt %20 : vector<1x4xf32>
    %22 = arith.mulf %18, %21 : vector<1x4xf32>
    %c0_11 = arith.constant 0 : index
    %c0_12 = arith.constant 0 : index
    %23 = vector.load %arg4[%c0_11, %c0_12] : memref<1x4xf32, #tpu.memory_space<vmem>>, vector<1x4xf32>
    %24 = arith.mulf %12, %22 : vector<1x4xf32>
    %25 = arith.subf %23, %24 : vector<1x4xf32>
    %26 = vector.broadcast %22 : vector<1x4xf32> to vector<256x4xf32>
    %27 = arith.mulf %3, %26 : vector<256x4xf32>
    %28 = vector.broadcast %25 : vector<1x4xf32> to vector<256x4xf32>
    %29 = arith.addf %27, %28 : vector<256x4xf32>
    %30 = arith.truncf %29 : vector<256x4xf32> to vector<256x4xbf16>
    %cst_13 = arith.constant 0.000000e+00 : bf16
    %31 = vector.broadcast %cst_13 : bf16 to vector<1x18x4xbf16>
    %c0_14 = arith.constant 0 : index
    %c0_15 = arith.constant 0 : index
    %c0_16 = arith.constant 0 : index
    %32 = vector.load %arg8[%c0_14, %c0_15, %c0_16] : memref<18x18x4xbf16, #tpu.memory_space<vmem>>, vector<1x18x4xbf16>
    tpu.vector_store %arg8[%c0_14, %c0_15, %c0_16], %31 {strides = array<i32>} : memref<18x18x4xbf16, #tpu.memory_space<vmem>>, vector<1x18x4xbf16>,
    %cst_17 = arith.constant 0.000000e+00 : bf16
    %33 = vector.broadcast %cst_17 : bf16 to vector<1x18x4xbf16>
    %c17 = arith.constant 17 : index
    %c0_18 = arith.constant 0 : index
    %c0_19 = arith.constant 0 : index
    %34 = vector.load %arg8[%c17, %c0_18, %c0_19] : memref<18x18x4xbf16, #tpu.memory_space<vmem>>, vector<1x18x4xbf16>
    tpu.vector_store %arg8[%c17, %c0_18, %c0_19], %33 {strides = array<i32>} : memref<18x18x4xbf16, #tpu.memory_space<vmem>>, vector<1x18x4xbf16>,
    %cst_20 = arith.constant 0.000000e+00 : bf16
    %35 = vector.broadcast %cst_20 : bf16 to vector<18x1x4xbf16>
    %c0_21 = arith.constant 0 : index
    %c0_22 = arith.constant 0 : index
    %c0_23 = arith.constant 0 : index
    %36 = vector.load %arg8[%c0_21, %c0_22, %c0_23] : memref<18x18x4xbf16, #tpu.memory_space<vmem>>, vector<18x1x4xbf16>
    tpu.vector_store %arg8[%c0_21, %c0_22, %c0_23], %35 {strides = array<i32>} : memref<18x18x4xbf16, #tpu.memory_space<vmem>>, vector<18x1x4xbf16>,
    %cst_24 = arith.constant 0.000000e+00 : bf16
    %37 = vector.broadcast %cst_24 : bf16 to vector<18x1x4xbf16>
    %c0_25 = arith.constant 0 : index
    %c17_26 = arith.constant 17 : index
    %c0_27 = arith.constant 0 : index
    %38 = vector.load %arg8[%c0_25, %c17_26, %c0_27] : memref<18x18x4xbf16, #tpu.memory_space<vmem>>, vector<18x1x4xbf16>
    tpu.vector_store %arg8[%c0_25, %c17_26, %c0_27], %37 {strides = array<i32>} : memref<18x18x4xbf16, #tpu.memory_space<vmem>>, vector<18x1x4xbf16>,
    %39 = vector.shape_cast %30 : vector<256x4xbf16> to vector<16x16x4xbf16>
    %c1 = arith.constant 1 : index
    %c1_28 = arith.constant 1 : index
    %c0_29 = arith.constant 0 : index
    %40 = vector.load %arg8[%c1, %c1_28, %c0_29] : memref<18x18x4xbf16, #tpu.memory_space<vmem>>, vector<16x16x4xbf16>
    tpu.vector_store %arg8[%c1, %c1_28, %c0_29], %39 {strides = array<i32>} : memref<18x18x4xbf16, #tpu.memory_space<vmem>>, vector<16x16x4xbf16>,
    %c0_30 = arith.constant 0 : index
    %c0_31 = arith.constant 0 : index
    %c0_32 = arith.constant 0 : index
    %41 = vector.load %arg8[%c0_30, %c0_31, %c0_32] : memref<18x18x4xbf16, #tpu.memory_space<vmem>>, vector<16x16x4xbf16>
    %42 = vector.shape_cast %41 : vector<16x16x4xbf16> to vector<256x4xbf16>
    %c0_33 = arith.constant 0 : index
    %c0_34 = arith.constant 0 : index
    %c0_35 = arith.constant 0 : index
    %43 = vector.load %arg5[%c0_33, %c0_34, %c0_35] : memref<9x4x128xbf16, #tpu.memory_space<vmem>>, vector<1x4x128xbf16>
    %44 = vector.shape_cast %43 : vector<1x4x128xbf16> to vector<4x128xbf16>
    %cst_36 = arith.constant dense<0.000000e+00> : vector<256x128xf32>
    %45 = tpu.matmul %42, %44, %cst_36 {dimension_numbers = #tpu.dot_dimension_numbers<[1], [0], [0], [1], [0, 0, 1, 1], [], []>} : vector<256x4xbf16>, vector<4x128xbf16>, vector<256x128xf32> -> vector<256x128xf32>
    %c0_37 = arith.constant 0 : index
    %c1_38 = arith.constant 1 : index
    %c0_39 = arith.constant 0 : index
    %46 = vector.load %arg8[%c0_37, %c1_38, %c0_39] : memref<18x18x4xbf16, #tpu.memory_space<vmem>>, vector<16x16x4xbf16>
    %47 = vector.shape_cast %46 : vector<16x16x4xbf16> to vector<256x4xbf16>
    %c1_40 = arith.constant 1 : index
    %c0_41 = arith.constant 0 : index
    %c0_42 = arith.constant 0 : index
    %48 = vector.load %arg5[%c1_40, %c0_41, %c0_42] : memref<9x4x128xbf16, #tpu.memory_space<vmem>>, vector<1x4x128xbf16>
    %49 = vector.shape_cast %48 : vector<1x4x128xbf16> to vector<4x128xbf16>
    %cst_43 = arith.constant dense<0.000000e+00> : vector<256x128xf32>
    %50 = tpu.matmul %47, %49, %cst_43 {dimension_numbers = #tpu.dot_dimension_numbers<[1], [0], [0], [1], [0, 0, 1, 1], [], []>} : vector<256x4xbf16>, vector<4x128xbf16>, vector<256x128xf32> -> vector<256x128xf32>
    %51 = arith.addf %45, %50 : vector<256x128xf32>
    %c0_44 = arith.constant 0 : index
    %c2 = arith.constant 2 : index
    %c0_45 = arith.constant 0 : index
    %52 = vector.load %arg8[%c0_44, %c2, %c0_45] : memref<18x18x4xbf16, #tpu.memory_space<vmem>>, vector<16x16x4xbf16>
    %53 = vector.shape_cast %52 : vector<16x16x4xbf16> to vector<256x4xbf16>
    %c2_46 = arith.constant 2 : index
    %c0_47 = arith.constant 0 : index
    %c0_48 = arith.constant 0 : index
    %54 = vector.load %arg5[%c2_46, %c0_47, %c0_48] : memref<9x4x128xbf16, #tpu.memory_space<vmem>>, vector<1x4x128xbf16>
    %55 = vector.shape_cast %54 : vector<1x4x128xbf16> to vector<4x128xbf16>
    %cst_49 = arith.constant dense<0.000000e+00> : vector<256x128xf32>
    %56 = tpu.matmul %53, %55, %cst_49 {dimension_numbers = #tpu.dot_dimension_numbers<[1], [0], [0], [1], [0, 0, 1, 1], [], []>} : vector<256x4xbf16>, vector<4x128xbf16>, vector<256x128xf32> -> vector<256x128xf32>
    %57 = arith.addf %51, %56 : vector<256x128xf32>
    %c1_50 = arith.constant 1 : index
    %c0_51 = arith.constant 0 : index
    %c0_52 = arith.constant 0 : index
    %58 = vector.load %arg8[%c1_50, %c0_51, %c0_52] : memref<18x18x4xbf16, #tpu.memory_space<vmem>>, vector<16x16x4xbf16>
    %59 = vector.shape_cast %58 : vector<16x16x4xbf16> to vector<256x4xbf16>
    %c3 = arith.constant 3 : index
    %c0_53 = arith.constant 0 : index
    %c0_54 = arith.constant 0 : index
    %60 = vector.load %arg5[%c3, %c0_53, %c0_54] : memref<9x4x128xbf16, #tpu.memory_space<vmem>>, vector<1x4x128xbf16>
    %61 = vector.shape_cast %60 : vector<1x4x128xbf16> to vector<4x128xbf16>
    %cst_55 = arith.constant dense<0.000000e+00> : vector<256x128xf32>
    %62 = tpu.matmul %59, %61, %cst_55 {dimension_numbers = #tpu.dot_dimension_numbers<[1], [0], [0], [1], [0, 0, 1, 1], [], []>} : vector<256x4xbf16>, vector<4x128xbf16>, vector<256x128xf32> -> vector<256x128xf32>
    %63 = arith.addf %57, %62 : vector<256x128xf32>
    %c1_56 = arith.constant 1 : index
    %c1_57 = arith.constant 1 : index
    %c0_58 = arith.constant 0 : index
    %64 = vector.load %arg8[%c1_56, %c1_57, %c0_58] : memref<18x18x4xbf16, #tpu.memory_space<vmem>>, vector<16x16x4xbf16>
    %65 = vector.shape_cast %64 : vector<16x16x4xbf16> to vector<256x4xbf16>
    %c4 = arith.constant 4 : index
    %c0_59 = arith.constant 0 : index
    %c0_60 = arith.constant 0 : index
    %66 = vector.load %arg5[%c4, %c0_59, %c0_60] : memref<9x4x128xbf16, #tpu.memory_space<vmem>>, vector<1x4x128xbf16>
    %67 = vector.shape_cast %66 : vector<1x4x128xbf16> to vector<4x128xbf16>
    %cst_61 = arith.constant dense<0.000000e+00> : vector<256x128xf32>
    %68 = tpu.matmul %65, %67, %cst_61 {dimension_numbers = #tpu.dot_dimension_numbers<[1], [0], [0], [1], [0, 0, 1, 1], [], []>} : vector<256x4xbf16>, vector<4x128xbf16>, vector<256x128xf32> -> vector<256x128xf32>
    %69 = arith.addf %63, %68 : vector<256x128xf32>
    %c1_62 = arith.constant 1 : index
    %c2_63 = arith.constant 2 : index
    %c0_64 = arith.constant 0 : index
    %70 = vector.load %arg8[%c1_62, %c2_63, %c0_64] : memref<18x18x4xbf16, #tpu.memory_space<vmem>>, vector<16x16x4xbf16>
    %71 = vector.shape_cast %70 : vector<16x16x4xbf16> to vector<256x4xbf16>
    %c5 = arith.constant 5 : index
    %c0_65 = arith.constant 0 : index
    %c0_66 = arith.constant 0 : index
    %72 = vector.load %arg5[%c5, %c0_65, %c0_66] : memref<9x4x128xbf16, #tpu.memory_space<vmem>>, vector<1x4x128xbf16>
    %73 = vector.shape_cast %72 : vector<1x4x128xbf16> to vector<4x128xbf16>
    %cst_67 = arith.constant dense<0.000000e+00> : vector<256x128xf32>
    %74 = tpu.matmul %71, %73, %cst_67 {dimension_numbers = #tpu.dot_dimension_numbers<[1], [0], [0], [1], [0, 0, 1, 1], [], []>} : vector<256x4xbf16>, vector<4x128xbf16>, vector<256x128xf32> -> vector<256x128xf32>
    %75 = arith.addf %69, %74 : vector<256x128xf32>
    %c2_68 = arith.constant 2 : index
    %c0_69 = arith.constant 0 : index
    %c0_70 = arith.constant 0 : index
    %76 = vector.load %arg8[%c2_68, %c0_69, %c0_70] : memref<18x18x4xbf16, #tpu.memory_space<vmem>>, vector<16x16x4xbf16>
    %77 = vector.shape_cast %76 : vector<16x16x4xbf16> to vector<256x4xbf16>
    %c6 = arith.constant 6 : index
    %c0_71 = arith.constant 0 : index
    %c0_72 = arith.constant 0 : index
    %78 = vector.load %arg5[%c6, %c0_71, %c0_72] : memref<9x4x128xbf16, #tpu.memory_space<vmem>>, vector<1x4x128xbf16>
    %79 = vector.shape_cast %78 : vector<1x4x128xbf16> to vector<4x128xbf16>
    %cst_73 = arith.constant dense<0.000000e+00> : vector<256x128xf32>
    %80 = tpu.matmul %77, %79, %cst_73 {dimension_numbers = #tpu.dot_dimension_numbers<[1], [0], [0], [1], [0, 0, 1, 1], [], []>} : vector<256x4xbf16>, vector<4x128xbf16>, vector<256x128xf32> -> vector<256x128xf32>
    %81 = arith.addf %75, %80 : vector<256x128xf32>
    %c2_74 = arith.constant 2 : index
    %c1_75 = arith.constant 1 : index
    %c0_76 = arith.constant 0 : index
    %82 = vector.load %arg8[%c2_74, %c1_75, %c0_76] : memref<18x18x4xbf16, #tpu.memory_space<vmem>>, vector<16x16x4xbf16>
    %83 = vector.shape_cast %82 : vector<16x16x4xbf16> to vector<256x4xbf16>
    %c7 = arith.constant 7 : index
    %c0_77 = arith.constant 0 : index
    %c0_78 = arith.constant 0 : index
    %84 = vector.load %arg5[%c7, %c0_77, %c0_78] : memref<9x4x128xbf16, #tpu.memory_space<vmem>>, vector<1x4x128xbf16>
    %85 = vector.shape_cast %84 : vector<1x4x128xbf16> to vector<4x128xbf16>
    %cst_79 = arith.constant dense<0.000000e+00> : vector<256x128xf32>
    %86 = tpu.matmul %83, %85, %cst_79 {dimension_numbers = #tpu.dot_dimension_numbers<[1], [0], [0], [1], [0, 0, 1, 1], [], []>} : vector<256x4xbf16>, vector<4x128xbf16>, vector<256x128xf32> -> vector<256x128xf32>
    %87 = arith.addf %81, %86 : vector<256x128xf32>
    %c2_80 = arith.constant 2 : index
    %c2_81 = arith.constant 2 : index
    %c0_82 = arith.constant 0 : index
    %88 = vector.load %arg8[%c2_80, %c2_81, %c0_82] : memref<18x18x4xbf16, #tpu.memory_space<vmem>>, vector<16x16x4xbf16>
    %89 = vector.shape_cast %88 : vector<16x16x4xbf16> to vector<256x4xbf16>
    %c8 = arith.constant 8 : index
    %c0_83 = arith.constant 0 : index
    %c0_84 = arith.constant 0 : index
    %90 = vector.load %arg5[%c8, %c0_83, %c0_84] : memref<9x4x128xbf16, #tpu.memory_space<vmem>>, vector<1x4x128xbf16>
    %91 = vector.shape_cast %90 : vector<1x4x128xbf16> to vector<4x128xbf16>
    %cst_85 = arith.constant dense<0.000000e+00> : vector<256x128xf32>
    %92 = tpu.matmul %89, %91, %cst_85 {dimension_numbers = #tpu.dot_dimension_numbers<[1], [0], [0], [1], [0, 0, 1, 1], [], []>} : vector<256x4xbf16>, vector<4x128xbf16>, vector<256x128xf32> -> vector<256x128xf32>
    %93 = arith.addf %87, %92 : vector<256x128xf32>
    %c0_86 = arith.constant 0 : index
    %c0_87 = arith.constant 0 : index
    %94 = vector.load %arg6[%c0_86, %c0_87] : memref<1x128xf32, #tpu.memory_space<vmem>>, vector<1x128xf32>
    %95 = vector.broadcast %94 : vector<1x128xf32> to vector<256x128xf32>
    %96 = arith.addf %93, %95 : vector<256x128xf32>
    %97 = arith.negf %96 : vector<256x128xf32>
    %98 = math.exp %97 : vector<256x128xf32>
    %cst_88 = arith.constant 1.000000e+00 : f32
    %99 = vector.broadcast %cst_88 : f32 to vector<256x128xf32>
    %100 = arith.addf %99, %98 : vector<256x128xf32>
    %101 = arith.divf %99, %100 : vector<256x128xf32>
    %102 = arith.mulf %96, %101 : vector<256x128xf32>
    %103 = vector.shape_cast %102 : vector<256x128xf32> to vector<16x16x128xf32>
    %104 = arith.truncf %103 : vector<16x16x128xf32> to vector<16x16x128xbf16>
    %c0_89 = arith.constant 0 : index
    %c0_90 = arith.constant 0 : index
    %c0_91 = arith.constant 0 : index
    %c0_92 = arith.constant 0 : index
    %105 = vector.load %arg7[%c0_89, %c0_90, %c0_91, %c0_92] : memref<1x16x16x128xbf16, #tpu.memory_space<vmem>>, vector<1x16x16x128xbf16>
    %106 = vector.shape_cast %105 : vector<1x16x16x128xbf16> to vector<16x16x128xbf16>
    %107 = vector.shape_cast %104 : vector<16x16x128xbf16> to vector<1x16x16x128xbf16>
    tpu.vector_store %arg7[%c0_89, %c0_90, %c0_91, %c0_92], %107 {strides = array<i32>} : memref<1x16x16x128xbf16, #tpu.memory_space<vmem>>, vector<1x16x16x128xbf16>,
    return
  }
  func.func @transform_0(%arg0: i32) -> (i32, i32, i32, i32) {
    %c0_i32 = arith.constant 0 : i32
    %c0_i32_0 = arith.constant 0 : i32
    %c0_i32_1 = arith.constant 0 : i32
    %c0_i32_2 = arith.constant 0 : i32
    return %arg0, %c0_i32, %c0_i32_0, %c0_i32_1 : i32, i32, i32, i32
  }
  func.func @transform_1(%arg0: i32) -> (i32, i32) {
    %c0_i32 = arith.constant 0 : i32
    %c0_i32_0 = arith.constant 0 : i32
    %c0_i32_1 = arith.constant 0 : i32
    return %c0_i32, %c0_i32_0 : i32, i32
  }
  func.func @transform_2(%arg0: i32) -> (i32, i32) {
    %c0_i32 = arith.constant 0 : i32
    %c0_i32_0 = arith.constant 0 : i32
    %c0_i32_1 = arith.constant 0 : i32
    return %c0_i32, %c0_i32_0 : i32, i32
  }
  func.func @transform_3(%arg0: i32) -> (i32, i32) {
    %c0_i32 = arith.constant 0 : i32
    %c0_i32_0 = arith.constant 0 : i32
    %c0_i32_1 = arith.constant 0 : i32
    return %c0_i32, %c0_i32_0 : i32, i32
  }
  func.func @transform_4(%arg0: i32) -> (i32, i32, i32) {
    %c0_i32 = arith.constant 0 : i32
    %c0_i32_0 = arith.constant 0 : i32
    %c0_i32_1 = arith.constant 0 : i32
    %c0_i32_2 = arith.constant 0 : i32
    return %c0_i32, %c0_i32_0, %c0_i32_1 : i32, i32, i32
  }
  func.func @transform_5(%arg0: i32) -> (i32, i32) {
    %c0_i32 = arith.constant 0 : i32
    %c0_i32_0 = arith.constant 0 : i32
    %c0_i32_1 = arith.constant 0 : i32
    return %c0_i32, %c0_i32_0 : i32, i32
  }
  func.func @transform_6(%arg0: i32) -> (i32, i32, i32, i32) {
    %c0_i32 = arith.constant 0 : i32
    %c0_i32_0 = arith.constant 0 : i32
    %c0_i32_1 = arith.constant 0 : i32
    %c0_i32_2 = arith.constant 0 : i32
    return %arg0, %c0_i32, %c0_i32_0, %c0_i32_1 : i32, i32, i32, i32
  }
}

</mosaic_0001>

<llo_original>
// kernel: tpu_custom_call.1
$region0: #{tpu_custom_call.1}
  #allocation0 [shape = 'u32[]', space=smem, size = 0x4, offset = 0x4, fixed_abs, tag = 'smem constant byte address 0x4 - core index']
  #allocation1 [shape = 'u32[144,128]{1,0:T(1,128)}', space=vmem, size = 0x12000, scoped, tag = 'internal scratch']
  #allocation2 [shape = 'bf16[18,18,4]{2,1,0:T(8,128)(2,1)}', space=vmem, size = 0x1b000, scoped, tag = 'scratch operand']
  %s0 = inlined_call_operand.vmem [shape: bf16[2,16,16,4], index: 0, kind: input, shape index: {}]
  %s1 = inlined_call_operand.vmem [shape: f32[4,4], index: 1, kind: input, shape index: {}]
  %s2 = inlined_call_operand.vmem [shape: f32[1,4], index: 2, kind: input, shape index: {}]
  %s3 = inlined_call_operand.vmem [shape: f32[1,4], index: 3, kind: input, shape index: {}]
  %s4 = inlined_call_operand.vmem [shape: bf16[9,4,128], index: 4, kind: input, shape index: {}]
  %s5 = inlined_call_operand.vmem [shape: f32[1,128], index: 5, kind: input, shape index: {}]
  %s6 = inlined_call_operand.hbm [shape: bf16[2,16,16,128], index: 6, kind: output, shape index: {}]
  %s7 = sld [smem:[#allocation0]]
  $region57: #{tpu_custom_call.1} parent=0
    _
  %s9 = ssub.s32 1, %s7
  %s10 = scalar_select 0, %s9, %s7
  $region1: #{tpu_custom_call.1} parent=0
    #allocation3 [shape = 'u8[131072]{0}', space=vmem, size = 0x20000, scoped, tag = 'output window, operand 0']
    #allocation4 [shape = 's32[2]{0}', space=sflag, size = 0x8, scoped, tag = 'scoped memory for tpu_custom_call.1']
    %11 = vsyncpa [#allocation4], 0
    %s12 = scalar_lea.sflag [#allocation4], 1
    %13 = vsyncpa %s12, 0
    loop: start=0, step=1, limit=4
    $region2: #{tpu_custom_call.1} parent=1 // loop_pre_header
      _
    $region3: #{tpu_custom_call.1} parent=1 // loop_header
      %s15 = sphi 0, %s19
      %p16 = scmp.ge.s32.totalorder %s15, 4
      %s25 = sphi 0, %s27
      %s28 = sphi 0, %s25
      %s29 = sphi 0, %s28
      %s45 = sphi 0, %s29
      %s49 = sphi 0, %s49
      %s51 = sphi 0, %s49
      %s52 = sphi 0, %s51
      %s66 = sphi 0, %s52
      %s70 = sphi 0, %s70
      %s72 = sphi 0, %s70
      %s73 = sphi 0, %s72
      %s87 = sphi 0, %s73
      %s91 = sphi 0, %s91
      %s93 = sphi 0, %s91
      %s94 = sphi 0, %s93
      %s108 = sphi 0, %s94
      %s112 = sphi 0, %s112
      %s114 = sphi 0, %s112
      %s115 = sphi 0, %s114
      %s129 = sphi 0, %s115
      %s133 = sphi 0, %s133
      %s135 = sphi 0, %s133
      %s136 = sphi 0, %s135
      %s150 = sphi 0, %s136
      %s156 = sphi 0, %s158
      %s159 = sphi 0, %s156
      %s160 = sphi 0, %s159
      %s176 = sphi 0, %s160
    $region4: #{tpu_custom_call.1} parent=1 // loop_header_branch
      %18 = sbr.rel (%p16) target = $region8
    $region5: #{tpu_custom_call.1} parent=1 // loop_body
      %s20 = ssub.s32 %s15, 1
      %s21 = ssub.s32 %s15, 2
      %s22 = sadd.s32 %s15, 1
      %s23 = ssub.s32 %s15, %s22
      %p24 = scmp.eq.s32.totalorder %s23, 0
      %s26 = sadd.s32 %s25, 1
      %s27 = scalar_select %p24, %s25, %s26
      %p30 = pneg %p24
      %p31 = scmp.eq.s32.totalorder %s15, 1
      %p32 = por %p30, %p31
      %p33 = scmp.ne.s32.totalorder %s25, %s28
      %p34 = scmp.eq.s32.totalorder %s15, 0
      %p35 = por %p33, %p34
      %p36 = scmp.ne.s32.totalorder %s25, %s28
      %p37 = scmp.eq.s32.totalorder %s20, 1
      %p38 = por %p36, %p37
      %p39 = scmp.ne.s32.totalorder %s28, %s29
      %p40 = scmp.eq.s32.totalorder %s20, 0
      %p41 = por %p39, %p40
      %p42 = scmp.ne.s32.totalorder %s28, %s29
      %p43 = scmp.eq.s32.totalorder %s21, 1
      %p44 = por %p42, %p43
      %p46 = scmp.ne.s32.totalorder %s29, %s45
      %p47 = scmp.eq.s32.totalorder %s21, 0
      %p48 = por %p46, %p47
      %s50 = sadd.s32 %s49, 1
      %p53 = scmp.eq.s32.totalorder %s15, 1
      %p54 = scmp.ne.s32.totalorder %s49, %s51
      %p55 = scmp.eq.s32.totalorder %s15, 0
      %p56 = por %p54, %p55
      %p57 = scmp.ne.s32.totalorder %s49, %s51
      %p58 = scmp.eq.s32.totalorder %s20, 1
      %p59 = por %p57, %p58
      %p60 = scmp.ne.s32.totalorder %s51, %s52
      %p61 = scmp.eq.s32.totalorder %s20, 0
      %p62 = por %p60, %p61
      %p63 = scmp.ne.s32.totalorder %s51, %s52
      %p64 = scmp.eq.s32.totalorder %s21, 1
      %p65 = por %p63, %p64
      %p67 = scmp.ne.s32.totalorder %s52, %s66
      %p68 = scmp.eq.s32.totalorder %s21, 0
      %p69 = por %p67, %p68
      %s71 = sadd.s32 %s70, 1
      %p74 = scmp.eq.s32.totalorder %s15, 1
      %p75 = scmp.ne.s32.totalorder %s70, %s72
      %p76 = scmp.eq.s32.totalorder %s15, 0
      %p77 = por %p75, %p76
      %p78 = scmp.ne.s32.totalorder %s70, %s72
      %p79 = scmp.eq.s32.totalorder %s20, 1
      %p80 = por %p78, %p79
      %p81 = scmp.ne.s32.totalorder %s72, %s73
      %p82 = scmp.eq.s32.totalorder %s20, 0
      %p83 = por %p81, %p82
      %p84 = scmp.ne.s32.totalorder %s72, %s73
      %p85 = scmp.eq.s32.totalorder %s21, 1
      %p86 = por %p84, %p85
      %p88 = scmp.ne.s32.totalorder %s73, %s87
      %p89 = scmp.eq.s32.totalorder %s21, 0
      %p90 = por %p88, %p89
      %s92 = sadd.s32 %s91, 1
      %p95 = scmp.eq.s32.totalorder %s15, 1
      %p96 = scmp.ne.s32.totalorder %s91, %s93
      %p97 = scmp.eq.s32.totalorder %s15, 0
      %p98 = por %p96, %p97
      %p99 = scmp.ne.s32.totalorder %s91, %s93
      %p100 = scmp.eq.s32.totalorder %s20, 1
      %p101 = por %p99, %p100
      %p102 = scmp.ne.s32.totalorder %s93, %s94
      %p103 = scmp.eq.s32.totalorder %s20, 0
      %p104 = por %p102, %p103
      %p105 = scmp.ne.s32.totalorder %s93, %s94
      %p106 = scmp.eq.s32.totalorder %s21, 1
      %p107 = por %p105, %p106
      %p109 = scmp.ne.s32.totalorder %s94, %s108
      %p110 = scmp.eq.s32.totalorder %s21, 0
      %p111 = por %p109, %p110
      %s113 = sadd.s32 %s112, 1
      %p116 = scmp.eq.s32.totalorder %s15, 1
      %p117 = scmp.ne.s32.totalorder %s112, %s114
      %p118 = scmp.eq.s32.totalorder %s15, 0
      %p119 = por %p117, %p118
      %p120 = scmp.ne.s32.totalorder %s112, %s114
      %p121 = scmp.eq.s32.totalorder %s20, 1
      %p122 = por %p120, %p121
      %p123 = scmp.ne.s32.totalorder %s114, %s115
      %p124 = scmp.eq.s32.totalorder %s20, 0
      %p125 = por %p123, %p124
      %p126 = scmp.ne.s32.totalorder %s114, %s115
      %p127 = scmp.eq.s32.totalorder %s21, 1
      %p128 = por %p126, %p127
      %p130 = scmp.ne.s32.totalorder %s115, %s129
      %p131 = scmp.eq.s32.totalorder %s21, 0
      %p132 = por %p130, %p131
      %s134 = sadd.s32 %s133, 1
      %p137 = scmp.eq.s32.totalorder %s15, 1
      %p138 = scmp.ne.s32.totalorder %s133, %s135
      %p139 = scmp.eq.s32.totalorder %s15, 0
      %p140 = por %p138, %p139
      %p141 = scmp.ne.s32.totalorder %s133, %s135
      %p142 = scmp.eq.s32.totalorder %s20, 1
      %p143 = por %p141, %p142
      %p144 = scmp.ne.s32.totalorder %s135, %s136
      %p145 = scmp.eq.s32.totalorder %s20, 0
      %p146 = por %p144, %p145
      %p147 = scmp.ne.s32.totalorder %s135, %s136
      %p148 = scmp.eq.s32.totalorder %s21, 1
      %p149 = por %p147, %p148
      %p151 = scmp.ne.s32.totalorder %s136, %s150
      %p152 = scmp.eq.s32.totalorder %s21, 0
      %p153 = por %p151, %p152
      %s154 = ssub.s32 %s15, %s22
      %p155 = scmp.eq.s32.totalorder %s154, 0
      %s157 = sadd.s32 %s156, 1
      %s158 = scalar_select %p155, %s156, %s157
      %p161 = pneg %p155
      %p162 = scmp.eq.s32.totalorder %s15, 1
      %p163 = por %p161, %p162
      %p164 = scmp.ne.s32.totalorder %s156, %s159
      %p165 = scmp.eq.s32.totalorder %s15, 0
      %p166 = por %p164, %p165
      %p167 = scmp.ne.s32.totalorder %s156, %s159
      %p168 = scmp.eq.s32.totalorder %s20, 1
      %p169 = por %p167, %p168
      %p170 = scmp.ne.s32.totalorder %s159, %s160
      %p171 = scmp.eq.s32.totalorder %s20, 0
      %p172 = por %p170, %p171
      %p173 = scmp.ne.s32.totalorder %s159, %s160
      %p174 = scmp.eq.s32.totalorder %s21, 1
      %p175 = por %p173, %p174
      %p177 = scmp.ne.s32.totalorder %s160, %s176
      %p178 = scmp.eq.s32.totalorder %s21, 0
      %p179 = por %p177, %p178
      %p180 = scmp.le.s32.totalorder 1, %s15
      %p181 = scmp.lt.s32.totalorder %s15, 3
      %p182 = pnand %p180, %p181
      %p183 = pneg %p182
      // Predicated region
      $region9: #{tpu_custom_call.1} parent=5 // pred_check
        _
      $region10: #{tpu_custom_call.1} parent=5 // pred_check_branch
        %185 = sbr.rel (%p182) target = $region12
      $region11: #{tpu_custom_call.1} parent=5 // pred_region
        %s186 = ssub.s32 %s15, 1
        // Predicated region
        $region13: #{tpu_custom_call.1} parent=11 // pred_check
          %p187 = pneg %p62
        $region14: #{tpu_custom_call.1} parent=11 // pred_check_branch
          %189 = sbr.rel (%p187) target = $region16
        $region15: #{tpu_custom_call.1} parent=11 // pred_region
          _
        $region16: #{tpu_custom_call.1} parent=11 // pred_fallthru
          _
        // Predicated region
        $region17: #{tpu_custom_call.1} parent=11 // pred_check
          %p190 = pneg %p83
        $region18: #{tpu_custom_call.1} parent=11 // pred_check_branch
          %192 = sbr.rel (%p190) target = $region20
        $region19: #{tpu_custom_call.1} parent=11 // pred_region
          _
        $region20: #{tpu_custom_call.1} parent=11 // pred_fallthru
          _
        // Predicated region
        $region21: #{tpu_custom_call.1} parent=11 // pred_check
          %p193 = pneg %p104
        $region22: #{tpu_custom_call.1} parent=11 // pred_check_branch
          %195 = sbr.rel (%p193) target = $region24
        $region23: #{tpu_custom_call.1} parent=11 // pred_region
          _
        $region24: #{tpu_custom_call.1} parent=11 // pred_fallthru
          _
        // Predicated region
        $region25: #{tpu_custom_call.1} parent=11 // pred_check
          %p196 = pneg %p125
        $region26: #{tpu_custom_call.1} parent=11 // pred_check_branch
          %198 = sbr.rel (%p196) target = $region28
        $region27: #{tpu_custom_call.1} parent=11 // pred_region
          _
        $region28: #{tpu_custom_call.1} parent=11 // pred_fallthru
          _
        // Predicated region
        $region29: #{tpu_custom_call.1} parent=11 // pred_check
          %p199 = pneg %p146
        $region30: #{tpu_custom_call.1} parent=11 // pred_check_branch
          %201 = sbr.rel (%p199) target = $region32
        $region31: #{tpu_custom_call.1} parent=11 // pred_region
          _
        $region32: #{tpu_custom_call.1} parent=11 // pred_fallthru
          _
      $region12: #{tpu_custom_call.1} parent=5 // pred_fallthru
        _
      %p202 = scmp.lt.s32.totalorder %s15, 2
      // Predicated region
      $region33: #{tpu_custom_call.1} parent=5 // pred_check
        %p203 = pneg %p202
      $region34: #{tpu_custom_call.1} parent=5 // pred_check_branch
        %205 = sbr.rel (%p203) target = $region36
      $region35: #{tpu_custom_call.1} parent=5 // pred_region
        // Predicated region
        $region37: #{tpu_custom_call.1} parent=35 // pred_check
          %p206 = pneg %p35
        $region38: #{tpu_custom_call.1} parent=35 // pred_check_branch
          %208 = sbr.rel (%p206) target = $region40
        $region39: #{tpu_custom_call.1} parent=35 // pred_region
          %p209 = scmp.lt.s32.totalorder %s15, 1
          %s210 = scalar_select %p209, %s15, 1
          %s211 = smul.addr %s210, 32
          %s212 = smul.addr %s211, 4
          %s213 = scalar_lea.vmem %s0, %s212
        $region40: #{tpu_custom_call.1} parent=35 // pred_fallthru
          _
      $region36: #{tpu_custom_call.1} parent=5 // pred_fallthru
        _
      %p214 = scmp.le.s32.totalorder 1, %s15
      %p215 = scmp.lt.s32.totalorder %s15, 3
      %p216 = pnand %p214, %p215
      %p217 = pneg %p216
      // Predicated region
      $region41: #{tpu_custom_call.1} parent=5 // pred_check
        _
      $region42: #{tpu_custom_call.1} parent=5 // pred_check_branch
        %219 = sbr.rel (%p216) target = $region44
      $region43: #{tpu_custom_call.1} parent=5 // pred_region
        %s220 = ssub.s32 %s15, 1
        %p221 = scmp.lt.s32.totalorder %s20, 1
        %s222 = scalar_select %p221, %s20, 1
        %s223 = smul.addr %s222, 32
        %s224 = smul.addr %s223, 4
        %s225 = scalar_lea.vmem %s0, %s224
        %p226 = pneg %p41
        %p227 = pneg %p38
        %p228 = pneg %p62
        %p229 = pneg %p59
        %p230 = pneg %p83
        %p231 = pneg %p80
        %p232 = pneg %p104
        %p233 = pneg %p101
        %p234 = pneg %p125
        %p235 = pneg %p122
        %p236 = pneg %p146
        %p237 = pneg %p143
        %p238 = pneg %p172
        %p239 = pneg %p169
        %s240 = sand.u32 %s159, 1
        %s241 = scalar_lea.sflag [#allocation4], %s240
        %s242 = sand.u32 %s159, 1
        %s243 = smul.addr %s242, 128
        %s244 = scalar_lea.vmem [#allocation3], %s243
        %p245 = scmp.lt.s32.totalorder %s20, 1
        %s246 = scalar_select %p245, %s20, 1
        %s247 = smul.addr %s246, 32
        %s248 = smul.addr %s247, 4
        %s249 = scalar_lea.vmem %s0, %s248
        %v251 = vld [vmem:[%s249] sm:$0xf]
        %v252 = vld [vmem:[%s249 + $0x4] sm:$0xf]
        %v253 = vld [vmem:[%s249 + $0x8] sm:$0xf]
        %v254 = vld [vmem:[%s249 + $0xc] sm:$0xf]
        %v255 = vld [vmem:[%s249 + $0x10] sm:$0xf]
        %v256 = vld [vmem:[%s249 + $0x14] sm:$0xf]
        %v257 = vld [vmem:[%s249 + $0x18] sm:$0xf]
        %v258 = vld [vmem:[%s249 + $0x1c] sm:$0xf]
        %v259 = vld [vmem:[%s249 + $0x20] sm:$0xf]
        %v260 = vld [vmem:[%s249 + $0x24] sm:$0xf]
        %v261 = vld [vmem:[%s249 + $0x28] sm:$0xf]
        %v262 = vld [vmem:[%s249 + $0x2c] sm:$0xf]
        %v263 = vld [vmem:[%s249 + $0x30] sm:$0xf]
        %v264 = vld [vmem:[%s249 + $0x34] sm:$0xf]
        %v265 = vld [vmem:[%s249 + $0x38] sm:$0xf]
        %v266 = vld [vmem:[%s249 + $0x3c] sm:$0xf]
        %v267 = vld [vmem:[%s249 + $0x40] sm:$0xf]
        %v268 = vld [vmem:[%s249 + $0x44] sm:$0xf]
        %v269 = vld [vmem:[%s249 + $0x48] sm:$0xf]
        %v270 = vld [vmem:[%s249 + $0x4c] sm:$0xf]
        %v271 = vld [vmem:[%s249 + $0x50] sm:$0xf]
        %v272 = vld [vmem:[%s249 + $0x54] sm:$0xf]
        %v273 = vld [vmem:[%s249 + $0x58] sm:$0xf]
        %v274 = vld [vmem:[%s249 + $0x5c] sm:$0xf]
        %v275 = vld [vmem:[%s249 + $0x60] sm:$0xf]
        %v276 = vld [vmem:[%s249 + $0x64] sm:$0xf]
        %v277 = vld [vmem:[%s249 + $0x68] sm:$0xf]
        %v278 = vld [vmem:[%s249 + $0x6c] sm:$0xf]
        %v279 = vld [vmem:[%s249 + $0x70] sm:$0xf]
        %v280 = vld [vmem:[%s249 + $0x74] sm:$0xf]
        %v281 = vld [vmem:[%s249 + $0x78] sm:$0xf]
        %v282 = vld [vmem:[%s249 + $0x7c] sm:$0xf]
        %v283 = vunpack.c.l.bf16 %v251
        %v284 = vunpack.c.l.bf16 %v252
        %v285 = vunpack.c.l.bf16 %v253
        %v286 = vunpack.c.l.bf16 %v254
        %v287 = vunpack.c.l.bf16 %v255
        %v288 = vunpack.c.l.bf16 %v256
        %v289 = vunpack.c.l.bf16 %v257
        %v290 = vunpack.c.l.bf16 %v258
        %v291 = vunpack.c.l.bf16 %v259
        %v292 = vunpack.c.l.bf16 %v260
        %v293 = vunpack.c.l.bf16 %v261
        %v294 = vunpack.c.l.bf16 %v262
        %v295 = vunpack.c.l.bf16 %v263
        %v296 = vunpack.c.l.bf16 %v264
        %v297 = vunpack.c.l.bf16 %v265
        %v298 = vunpack.c.l.bf16 %v266
        %v299 = vunpack.c.l.bf16 %v267
        %v300 = vunpack.c.l.bf16 %v268
        %v301 = vunpack.c.l.bf16 %v269
        %v302 = vunpack.c.l.bf16 %v270
        %v303 = vunpack.c.l.bf16 %v271
        %v304 = vunpack.c.l.bf16 %v272
        %v305 = vunpack.c.l.bf16 %v273
        %v306 = vunpack.c.l.bf16 %v274
        %v307 = vunpack.c.l.bf16 %v275
        %v308 = vunpack.c.l.bf16 %v276
        %v309 = vunpack.c.l.bf16 %v277
        %v310 = vunpack.c.l.bf16 %v278
        %v311 = vunpack.c.l.bf16 %v279
        %v312 = vunpack.c.l.bf16 %v280
        %v313 = vunpack.c.l.bf16 %v281
        %v314 = vunpack.c.l.bf16 %v282
        %vm315 = vcmask 31744
        %v316 = vsel %vm315, %v283, 0.0
        %v317 = vsel %vm315, %v284, 0.0
        %v318 = vadd.f32 %v316, %v317
        %v319 = vsel %vm315, %v285, 0.0
        %v320 = vadd.f32 %v318, %v319
        %v321 = vsel %vm315, %v286, 0.0
        %v322 = vadd.f32 %v320, %v321
        %v323 = vsel %vm315, %v287, 0.0
        %v324 = vadd.f32 %v322, %v323
        %v325 = vsel %vm315, %v288, 0.0
        %v326 = vadd.f32 %v324, %v325
        %v327 = vsel %vm315, %v289, 0.0
        %v328 = vadd.f32 %v326, %v327
        %v329 = vsel %vm315, %v290, 0.0
        %v330 = vadd.f32 %v328, %v329
        %v331 = vsel %vm315, %v291, 0.0
        %v332 = vadd.f32 %v330, %v331
        %v333 = vsel %vm315, %v292, 0.0
        %v334 = vadd.f32 %v332, %v333
        %v335 = vsel %vm315, %v293, 0.0
        %v336 = vadd.f32 %v334, %v335
        %v337 = vsel %vm315, %v294, 0.0
        %v338 = vadd.f32 %v336, %v337
        %v339 = vsel %vm315, %v295, 0.0
        %v340 = vadd.f32 %v338, %v339
        %v341 = vsel %vm315, %v296, 0.0
        %v342 = vadd.f32 %v340, %v341
        %v343 = vsel %vm315, %v297, 0.0
        %v344 = vadd.f32 %v342, %v343
        %v345 = vsel %vm315, %v298, 0.0
        %v346 = vadd.f32 %v344, %v345
        %v347 = vsel %vm315, %v299, 0.0
        %v348 = vadd.f32 %v346, %v347
        %v349 = vsel %vm315, %v300, 0.0
        %v350 = vadd.f32 %v348, %v349
        %v351 = vsel %vm315, %v301, 0.0
        %v352 = vadd.f32 %v350, %v351
        %v353 = vsel %vm315, %v302, 0.0
        %v354 = vadd.f32 %v352, %v353
        %v355 = vsel %vm315, %v303, 0.0
        %v356 = vadd.f32 %v354, %v355
        %v357 = vsel %vm315, %v304, 0.0
        %v358 = vadd.f32 %v356, %v357
        %v359 = vsel %vm315, %v305, 0.0
        %v360 = vadd.f32 %v358, %v359
        %v361 = vsel %vm315, %v306, 0.0
        %v362 = vadd.f32 %v360, %v361
        %v363 = vsel %vm315, %v307, 0.0
        %v364 = vadd.f32 %v362, %v363
        %v365 = vsel %vm315, %v308, 0.0
        %v366 = vadd.f32 %v364, %v365
        %v367 = vsel %vm315, %v309, 0.0
        %v368 = vadd.f32 %v366, %v367
        %v369 = vsel %vm315, %v310, 0.0
        %v370 = vadd.f32 %v368, %v369
        %v371 = vsel %vm315, %v311, 0.0
        %v372 = vadd.f32 %v370, %v371
        %v373 = vsel %vm315, %v312, 0.0
        %v374 = vadd.f32 %v372, %v373
        %v375 = vsel %vm315, %v313, 0.0
        %v376 = vadd.f32 %v374, %v375
        %v377 = vsel %vm315, %v314, 0.0
        %v378 = vadd.f32 %v376, %v377
        %v379 = vrot.slane %v378, 4
        %v380 = vadd.f32 %v378, %v379
        %v381 = vrot.slane %v380, 2
        %v382 = vadd.f32 %v380, %v381
        %v383 = vrot.slane %v382, 1
        %v384 = vadd.f32 %v382, %v383
        %v385 = vmul.f32 %v283, %v283
        %v386 = vmul.f32 %v284, %v284
        %v387 = vmul.f32 %v285, %v285
        %v388 = vmul.f32 %v286, %v286
        %v389 = vmul.f32 %v287, %v287
        %v390 = vmul.f32 %v288, %v288
        %v391 = vmul.f32 %v289, %v289
        %v392 = vmul.f32 %v290, %v290
        %v393 = vmul.f32 %v291, %v291
        %v394 = vmul.f32 %v292, %v292
        %v395 = vmul.f32 %v293, %v293
        %v396 = vmul.f32 %v294, %v294
        %v397 = vmul.f32 %v295, %v295
        %v398 = vmul.f32 %v296, %v296
        %v399 = vmul.f32 %v297, %v297
        %v400 = vmul.f32 %v298, %v298
        %v401 = vmul.f32 %v299, %v299
        %v402 = vmul.f32 %v300, %v300
        %v403 = vmul.f32 %v301, %v301
        %v404 = vmul.f32 %v302, %v302
        %v405 = vmul.f32 %v303, %v303
        %v406 = vmul.f32 %v304, %v304
        %v407 = vmul.f32 %v305, %v305
        %v408 = vmul.f32 %v306, %v306
        %v409 = vmul.f32 %v307, %v307
        %v410 = vmul.f32 %v308, %v308
        %v411 = vmul.f32 %v309, %v309
        %v412 = vmul.f32 %v310, %v310
        %v413 = vmul.f32 %v311, %v311
        %v414 = vmul.f32 %v312, %v312
        %v415 = vmul.f32 %v313, %v313
        %v416 = vmul.f32 %v314, %v314
        %v417 = vsel %vm315, %v385, 0.0
        %v418 = vsel %vm315, %v386, 0.0
        %v419 = vadd.f32 %v417, %v418
        %v420 = vsel %vm315, %v387, 0.0
        %v421 = vadd.f32 %v419, %v420
        %v422 = vsel %vm315, %v388, 0.0
        %v423 = vadd.f32 %v421, %v422
        %v424 = vsel %vm315, %v389, 0.0
        %v425 = vadd.f32 %v423, %v424
        %v426 = vsel %vm315, %v390, 0.0
        %v427 = vadd.f32 %v425, %v426
        %v428 = vsel %vm315, %v391, 0.0
        %v429 = vadd.f32 %v427, %v428
        %v430 = vsel %vm315, %v392, 0.0
        %v431 = vadd.f32 %v429, %v430
        %v432 = vsel %vm315, %v393, 0.0
        %v433 = vadd.f32 %v431, %v432
        %v434 = vsel %vm315, %v394, 0.0
        %v435 = vadd.f32 %v433, %v434
        %v436 = vsel %vm315, %v395, 0.0
        %v437 = vadd.f32 %v435, %v436
        %v438 = vsel %vm315, %v396, 0.0
        %v439 = vadd.f32 %v437, %v438
        %v440 = vsel %vm315, %v397, 0.0
        %v441 = vadd.f32 %v439, %v440
        %v442 = vsel %vm315, %v398, 0.0
        %v443 = vadd.f32 %v441, %v442
        %v444 = vsel %vm315, %v399, 0.0
        %v445 = vadd.f32 %v443, %v444
        %v446 = vsel %vm315, %v400, 0.0
        %v447 = vadd.f32 %v445, %v446
        %v448 = vsel %vm315, %v401, 0.0
        %v449 = vadd.f32 %v447, %v448
        %v450 = vsel %vm315, %v402, 0.0
        %v451 = vadd.f32 %v449, %v450
        %v452 = vsel %vm315, %v403, 0.0
        %v453 = vadd.f32 %v451, %v452
        %v454 = vsel %vm315, %v404, 0.0
        %v455 = vadd.f32 %v453, %v454
        %v456 = vsel %vm315, %v405, 0.0
        %v457 = vadd.f32 %v455, %v456
        %v458 = vsel %vm315, %v406, 0.0
        %v459 = vadd.f32 %v457, %v458
        %v460 = vsel %vm315, %v407, 0.0
        %v461 = vadd.f32 %v459, %v460
        %v462 = vsel %vm315, %v408, 0.0
        %v463 = vadd.f32 %v461, %v462
        %v464 = vsel %vm315, %v409, 0.0
        %v465 = vadd.f32 %v463, %v464
        %v466 = vsel %vm315, %v410, 0.0
        %v467 = vadd.f32 %v465, %v466
        %v468 = vsel %vm315, %v411, 0.0
        %v469 = vadd.f32 %v467, %v468
        %v470 = vsel %vm315, %v412, 0.0
        %v471 = vadd.f32 %v469, %v470
        %v472 = vsel %vm315, %v413, 0.0
        %v473 = vadd.f32 %v471, %v472
        %v474 = vsel %vm315, %v414, 0.0
        %v475 = vadd.f32 %v473, %v474
        %v476 = vsel %vm315, %v415, 0.0
        %v477 = vadd.f32 %v475, %v476
        %v478 = vsel %vm315, %v416, 0.0
        %v479 = vadd.f32 %v477, %v478
        %v480 = vrot.slane %v479, 4
        %v481 = vadd.f32 %v479, %v480
        %v482 = vrot.slane %v481, 2
        %v483 = vadd.f32 %v481, %v482
        %v484 = vrot.slane %v483, 1
        %v485 = vadd.f32 %v483, %v484
        %vm486 = vcmask 1040384
        %v487 = vsel %vm486, %v384, %v485
        %v488 = vld [vmem:[%s1] sm:$0xf]
        %v490 = vsel %vm315, %v487, 0
        %vm492 = vcmask 1043456
        %v494 = vsel %vm492, %v488, 0
        %496 = vmatprep.subr.mxu0 0.0
        %497 = vmatpush1.msra.mxu0 %v494
        %498 = vmatprep.subr.mxu0 0.0
        %499 = vmatpush1.msra.mxu0 0.0
        %500 = vmatprep.subr.mxu0 0.0
        %501 = vmatpush1.msra.mxu0 0.0
        %502 = vmatprep.subr.mxu0 0.0
        %503 = vmatpush1.msra.mxu0 0.0
        %504 = vmatprep.subr.mxu0 0.0
        %505 = vmatpush1.msra.mxu0 0.0
        %506 = vmatprep.subr.mxu0 0.0
        %507 = vmatpush1.msra.mxu0 0.0
        %508 = vmatprep.subr.mxu0 0.0
        %509 = vmatpush1.msra.mxu0 0.0
        %510 = vmatprep.subr.mxu0 0.0
        %511 = vmatpush1.msra.mxu0 0.0
        %512 = vmatprep.subr.mxu0 0.0
        %513 = vmatpush1.msra.mxu0 0.0
        %514 = vmatprep.subr.mxu0 0.0
        %515 = vmatpush1.msra.mxu0 0.0
        %516 = vmatprep.subr.mxu0 0.0
        %517 = vmatpush1.msra.mxu0 0.0
        %518 = vmatprep.subr.mxu0 0.0
        %519 = vmatpush1.msra.mxu0 0.0
        %520 = vmatprep.subr.mxu0 0.0
        %521 = vmatpush1.msra.mxu0 0.0
        %522 = vmatprep.subr.mxu0 0.0
        %523 = vmatpush1.msra.mxu0 0.0
        %524 = vmatprep.subr.mxu0 0.0
        %525 = vmatpush1.msra.mxu0 0.0
        %526 = vmatprep.subr.mxu0 0.0
        %527 = vmatpush1.msra.mxu0 0.0
        %528 = vmatprep.subr.mxu0 0.0
        %529 = vmatpush1.msra.mxu0 0.0
        %530 = vmatprep.subr.mxu0 0.0
        %531 = vmatpush1.msra.mxu0 0.0
        %532 = vmatprep.subr.mxu0 0.0
        %533 = vmatpush1.msra.mxu0 0.0
        %534 = vmatprep.subr.mxu0 0.0
        %535 = vmatpush1.msra.mxu0 0.0
        %536 = vmatprep.subr.mxu0 0.0
        %537 = vmatpush1.msra.mxu0 0.0
        %538 = vmatprep.subr.mxu0 0.0
        %539 = vmatpush1.msra.mxu0 0.0
        %540 = vmatprep.subr.mxu0 0.0
        %541 = vmatpush1.msra.mxu0 0.0
        %542 = vmatprep.subr.mxu0 0.0
        %543 = vmatpush1.msra.mxu0 0.0
        %544 = vmatprep.subr.mxu0 0.0
        %545 = vmatpush1.msra.mxu0 0.0
        %546 = vmatprep.subr.mxu0 0.0
        %547 = vmatpush1.msra.mxu0 0.0
        %548 = vmatprep.subr.mxu0 0.0
        %549 = vmatpush1.msra.mxu0 0.0
        %550 = vmatprep.subr.mxu0 0.0
        %551 = vmatpush1.msra.mxu0 0.0
        %552 = vmatprep.subr.mxu0 0.0
        %553 = vmatpush1.msra.mxu0 0.0
        %554 = vmatprep.subr.mxu0 0.0
        %555 = vmatpush1.msra.mxu0 0.0
        %556 = vmatprep.subr.mxu0 0.0
        %557 = vmatpush1.msra.mxu0 0.0
        %558 = vmatprep.subr.mxu0 0.0
        %559 = vmatpush1.msra.mxu0 0.0
        %560 = vmatprep.mubr.f32.mxu0 0.0
        %561 = vmatmul.mubr.f32.gmra.mrb[0].mxu0 %v490
        %v562 = vpop.f32.mrb[0].mxu0
        %v563 = vadd.f32 0.0, %v562
        %v564 = vpop.f32.mrb[0].mxu0
        %565 = vdwg.mxu0
        %v566 = vmul.f32 %v563, %v563
        %v568 = vrot.slane %v566, 7
        %v570 = vsub.f32 %v563, %v568
        %v571 = vmax.f32 %v570, 0.0
        %v572 = vld [vmem:[%s2] sm:$0x1]
        %v573 = vadd.f32 %v571, 1e-06
        %v574 = vrsqrt.pop %v573
        %v577 = vunpack.c.l.s4 1966171168
        %v578 = vunpack.c.0.s8 %v577
        %v579 = vlaneseq
        %v580 = vshrl.u32 %v579, 7
        %v581 = vsub.s32 %v578, %v580
        %v582 = vrot.slane %v574, %v581
        %v583 = vcombine.high %v582, %v582
        %v585 = vunpack.c.l.s4 1966171168
        %v586 = vunpack.c.0.s8 %v585
        %v587 = vlaneseq
        %v588 = vshrl.u32 %v587, 7
        %v589 = vsub.s32 %v586, %v588
        %v590 = vrot.slane %v583, %v589
        %v592 = vmul.f32 %v572, %v590
        %v593 = vld [vmem:[%s3] sm:$0x1]
        %v594 = vmul.f32 %v563, %v592
        %v595 = vsub.f32 %v593, %v594
        %v597 = vlaneseq
        %v598 = vshrl.u32 %v597, 7
        %v599 = vsub.s32 0, %v598
        %v600 = vrot.slane %v592, %v599
        %v602 = vmul.f32 %v283, %v600
        %v603 = vmul.f32 %v284, %v600
        %v604 = vmul.f32 %v285, %v600
        %v605 = vmul.f32 %v286, %v600
        %v606 = vmul.f32 %v287, %v600
        %v607 = vmul.f32 %v288, %v600
        %v608 = vmul.f32 %v289, %v600
        %v609 = vmul.f32 %v290, %v600
        %v610 = vmul.f32 %v291, %v600
        %v611 = vmul.f32 %v292, %v600
        %v612 = vmul.f32 %v293, %v600
        %v613 = vmul.f32 %v294, %v600
        %v614 = vmul.f32 %v295, %v600
        %v615 = vmul.f32 %v296, %v600
        %v616 = vmul.f32 %v297, %v600
        %v617 = vmul.f32 %v298, %v600
        %v618 = vmul.f32 %v299, %v600
        %v619 = vmul.f32 %v300, %v600
        %v620 = vmul.f32 %v301, %v600
        %v621 = vmul.f32 %v302, %v600
        %v622 = vmul.f32 %v303, %v600
        %v623 = vmul.f32 %v304, %v600
        %v624 = vmul.f32 %v305, %v600
        %v625 = vmul.f32 %v306, %v600
        %v626 = vmul.f32 %v307, %v600
        %v627 = vmul.f32 %v308, %v600
        %v628 = vmul.f32 %v309, %v600
        %v629 = vmul.f32 %v310, %v600
        %v630 = vmul.f32 %v311, %v600
        %v631 = vmul.f32 %v312, %v600
        %v632 = vmul.f32 %v313, %v600
        %v633 = vmul.f32 %v314, %v600
        %v635 = vlaneseq
        %v636 = vshrl.u32 %v635, 7
        %v637 = vsub.s32 0, %v636
        %v638 = vrot.slane %v595, %v637
        %v640 = vadd.f32 %v602, %v638
        %v641 = vadd.f32 %v603, %v638
        %v642 = vadd.f32 %v604, %v638
        %v643 = vadd.f32 %v605, %v638
        %v644 = vadd.f32 %v606, %v638
        %v645 = vadd.f32 %v607, %v638
        %v646 = vadd.f32 %v608, %v638
        %v647 = vadd.f32 %v609, %v638
        %v648 = vadd.f32 %v610, %v638
        %v649 = vadd.f32 %v611, %v638
        %v650 = vadd.f32 %v612, %v638
        %v651 = vadd.f32 %v613, %v638
        %v652 = vadd.f32 %v614, %v638
        %v653 = vadd.f32 %v615, %v638
        %v654 = vadd.f32 %v616, %v638
        %v655 = vadd.f32 %v617, %v638
        %v656 = vadd.f32 %v618, %v638
        %v657 = vadd.f32 %v619, %v638
        %v658 = vadd.f32 %v620, %v638
        %v659 = vadd.f32 %v621, %v638
        %v660 = vadd.f32 %v622, %v638
        %v661 = vadd.f32 %v623, %v638
        %v662 = vadd.f32 %v624, %v638
        %v663 = vadd.f32 %v625, %v638
        %v664 = vadd.f32 %v626, %v638
        %v665 = vadd.f32 %v627, %v638
        %v666 = vadd.f32 %v628, %v638
        %v667 = vadd.f32 %v629, %v638
        %v668 = vadd.f32 %v630, %v638
        %v669 = vadd.f32 %v631, %v638
        %v670 = vadd.f32 %v632, %v638
        %v671 = vadd.f32 %v633, %v638
        %v672 = vpack.c.bf16 %v641, %v640
        %v673 = vpack.c.bf16 %v643, %v642
        %v674 = vpack.c.bf16 %v645, %v644
        %v675 = vpack.c.bf16 %v647, %v646
        %v676 = vpack.c.bf16 %v649, %v648
        %v677 = vpack.c.bf16 %v651, %v650
        %v678 = vpack.c.bf16 %v653, %v652
        %v679 = vpack.c.bf16 %v655, %v654
        %v680 = vpack.c.bf16 %v657, %v656
        %v681 = vpack.c.bf16 %v659, %v658
        %v682 = vpack.c.bf16 %v661, %v660
        %v683 = vpack.c.bf16 %v663, %v662
        %v684 = vpack.c.bf16 %v665, %v664
        %v685 = vpack.c.bf16 %v667, %v666
        %v686 = vpack.c.bf16 %v669, %v668
        %v687 = vpack.c.bf16 %v671, %v670
        %vm688 = vcmask 27648
        %689 = vst.msk [vmem:[#allocation2] sm:$0xf] %vm688, 0
        %690 = vst.msk [vmem:[#allocation2 + $0x4] sm:$0xf] %vm688, 0
        %vm691 = vcmask 24576
        %692 = vst.msk [vmem:[#allocation2 + $0x8] sm:$0x1] %vm691, 0
        %s693 = scalar_lea.vmem [#allocation2], 204
        %694 = vst.msk [vmem:[%s693] sm:$0xf] %vm688, 0
        %695 = vst.msk [vmem:[%s693 + $0x4] sm:$0xf] %vm688, 0
        %696 = vst.msk [vmem:[%s693 + $0x8] sm:$0x1] %vm691, 0
        %vm697 = vcmask 24576
        %vm698 = vsmask.f32 256
        %vm699 = vmand %vm697, %vm698
        %v700 = vld [vmem:[#allocation2] sm:$0x1]
        %v701 = vsel %vm699, 0, %v700
        %702 = vst [vmem:[#allocation2] sm:$0x1] %v701
        %v703 = vld [vmem:[#allocation2 + $0xc] sm:$0x1]
        %v704 = vsel %vm699, 0, %v703
        %705 = vst [vmem:[#allocation2 + $0xc] sm:$0x1] %v704
        %v706 = vld [vmem:[#allocation2 + $0x18] sm:$0x1]
        %v707 = vsel %vm699, 0, %v706
        %708 = vst [vmem:[#allocation2 + $0x18] sm:$0x1] %v707
        %v709 = vld [vmem:[#allocation2 + $0x24] sm:$0x1]
        %v710 = vsel %vm699, 0, %v709
        %711 = vst [vmem:[#allocation2 + $0x24] sm:$0x1] %v710
        %v712 = vld [vmem:[#allocation2 + $0x30] sm:$0x1]
        %v713 = vsel %vm699, 0, %v712
        %714 = vst [vmem:[#allocation2 + $0x30] sm:$0x1] %v713
        %v715 = vld [vmem:[#allocation2 + $0x3c] sm:$0x1]
        %v716 = vsel %vm699, 0, %v715
        %717 = vst [vmem:[#allocation2 + $0x3c] sm:$0x1] %v716
        %v718 = vld [vmem:[#allocation2 + $0x48] sm:$0x1]
        %v719 = vsel %vm699, 0, %v718
        %720 = vst [vmem:[#allocation2 + $0x48] sm:$0x1] %v719
        %v721 = vld [vmem:[#allocation2 + $0x54] sm:$0x1]
        %v722 = vsel %vm699, 0, %v721
        %723 = vst [vmem:[#allocation2 + $0x54] sm:$0x1] %v722
        %v724 = vld [vmem:[#allocation2 + $0x60] sm:$0x1]
        %v725 = vsel %vm699, 0, %v724
        %726 = vst [vmem:[#allocation2 + $0x60] sm:$0x1] %v725
        %v727 = vld [vmem:[#allocation2 + $0x6c] sm:$0x1]
        %v728 = vsel %vm699, 0, %v727
        %729 = vst [vmem:[#allocation2 + $0x6c] sm:$0x1] %v728
        %v730 = vld [vmem:[#allocation2 + $0x78] sm:$0x1]
        %v731 = vsel %vm699, 0, %v730
        %732 = vst [vmem:[#allocation2 + $0x78] sm:$0x1] %v731
        %v733 = vld [vmem:[#allocation2 + $0x84] sm:$0x1]
        %v734 = vsel %vm699, 0, %v733
        %735 = vst [vmem:[#allocation2 + $0x84] sm:$0x1] %v734
        %v736 = vld [vmem:[#allocation2 + $0x90] sm:$0x1]
        %v737 = vsel %vm699, 0, %v736
        %738 = vst [vmem:[#allocation2 + $0x90] sm:$0x1] %v737
        %v739 = vld [vmem:[#allocation2 + $0x9c] sm:$0x1]
        %v740 = vsel %vm699, 0, %v739
        %741 = vst [vmem:[#allocation2 + $0x9c] sm:$0x1] %v740
        %v742 = vld [vmem:[#allocation2 + $0xa8] sm:$0x1]
        %v743 = vsel %vm699, 0, %v742
        %744 = vst [vmem:[#allocation2 + $0xa8] sm:$0x1] %v743
        %v745 = vld [vmem:[#allocation2 + $0xb4] sm:$0x1]
        %v746 = vsel %vm699, 0, %v745
        %747 = vst [vmem:[#allocation2 + $0xb4] sm:$0x1] %v746
        %v748 = vld [vmem:[#allocation2 + $0xc0] sm:$0x1]
        %v749 = vsel %vm699, 0, %v748
        %750 = vst [vmem:[#allocation2 + $0xc0] sm:$0x1] %v749
        %v751 = vld [vmem:[#allocation2 + $0xcc] sm:$0x1]
        %v752 = vsel %vm699, 0, %v751
        %753 = vst [vmem:[#allocation2 + $0xcc] sm:$0x1] %v752
        %vm754 = vsmask.f32 7938
        %vm755 = vmand %vm697, %vm754
        %v756 = vld [vmem:[#allocation2 + $0x8] sm:$0x1]
        %v757 = vsel %vm755, 0, %v756
        %758 = vst [vmem:[#allocation2 + $0x8] sm:$0x1] %v757
        %v759 = vld [vmem:[#allocation2 + $0x14] sm:$0x1]
        %v760 = vsel %vm755, 0, %v759
        %761 = vst [vmem:[#allocation2 + $0x14] sm:$0x1] %v760
        %v762 = vld [vmem:[#allocation2 + $0x20] sm:$0x1]
        %v763 = vsel %vm755, 0, %v762
        %764 = vst [vmem:[#allocation2 + $0x20] sm:$0x1] %v763
        %v765 = vld [vmem:[#allocation2 + $0x2c] sm:$0x1]
        %v766 = vsel %vm755, 0, %v765
        %767 = vst [vmem:[#allocation2 + $0x2c] sm:$0x1] %v766
        %v768 = vld [vmem:[#allocation2 + $0x38] sm:$0x1]
        %v769 = vsel %vm755, 0, %v768
        %770 = vst [vmem:[#allocation2 + $0x38] sm:$0x1] %v769
        %v771 = vld [vmem:[#allocation2 + $0x44] sm:$0x1]
        %v772 = vsel %vm755, 0, %v771
        %773 = vst [vmem:[#allocation2 + $0x44] sm:$0x1] %v772
        %v774 = vld [vmem:[#allocation2 + $0x50] sm:$0x1]
        %v775 = vsel %vm755, 0, %v774
        %776 = vst [vmem:[#allocation2 + $0x50] sm:$0x1] %v775
        %v777 = vld [vmem:[#allocation2 + $0x5c] sm:$0x1]
        %v778 = vsel %vm755, 0, %v777
        %779 = vst [vmem:[#allocation2 + $0x5c] sm:$0x1] %v778
        %v780 = vld [vmem:[#allocation2 + $0x68] sm:$0x1]
        %v781 = vsel %vm755, 0, %v780
        %782 = vst [vmem:[#allocation2 + $0x68] sm:$0x1] %v781
        %v783 = vld [vmem:[#allocation2 + $0x74] sm:$0x1]
        %v784 = vsel %vm755, 0, %v783
        %785 = vst [vmem:[#allocation2 + $0x74] sm:$0x1] %v784
        %v786 = vld [vmem:[#allocation2 + $0x80] sm:$0x1]
        %v787 = vsel %vm755, 0, %v786
        %788 = vst [vmem:[#allocation2 + $0x80] sm:$0x1] %v787
        %v789 = vld [vmem:[#allocation2 + $0x8c] sm:$0x1]
        %v790 = vsel %vm755, 0, %v789
        %791 = vst [vmem:[#allocation2 + $0x8c] sm:$0x1] %v790
        %v792 = vld [vmem:[#allocation2 + $0x98] sm:$0x1]
        %v793 = vsel %vm755, 0, %v792
        %794 = vst [vmem:[#allocation2 + $0x98] sm:$0x1] %v793
        %v795 = vld [vmem:[#allocation2 + $0xa4] sm:$0x1]
        %v796 = vsel %vm755, 0, %v795
        %797 = vst [vmem:[#allocation2 + $0xa4] sm:$0x1] %v796
        %v798 = vld [vmem:[#allocation2 + $0xb0] sm:$0x1]
        %v799 = vsel %vm755, 0, %v798
        %800 = vst [vmem:[#allocation2 + $0xb0] sm:$0x1] %v799
        %v801 = vld [vmem:[#allocation2 + $0xbc] sm:$0x1]
        %v802 = vsel %vm755, 0, %v801
        %803 = vst [vmem:[#allocation2 + $0xbc] sm:$0x1] %v802
        %v804 = vld [vmem:[#allocation2 + $0xc8] sm:$0x1]
        %v805 = vsel %vm755, 0, %v804
        %806 = vst [vmem:[#allocation2 + $0xc8] sm:$0x1] %v805
        %v807 = vld [vmem:[#allocation2 + $0xd4] sm:$0x1]
        %v808 = vsel %vm755, 0, %v807
        %809 = vst [vmem:[#allocation2 + $0xd4] sm:$0x1] %v808
        %v826 = vunpack.c.l.b16 %v672
        %v827 = vunpack.c.h.b16 %v672
        %v828 = vunpack.c.l.b16 %v673
        %v829 = vunpack.c.h.b16 %v673
        %v830 = vunpack.c.l.b16 %v674
        %v831 = vunpack.c.h.b16 %v674
        %v832 = vunpack.c.l.b16 %v675
        %v833 = vunpack.c.h.b16 %v675
        %v834 = vunpack.c.l.b16 %v676
        %v835 = vunpack.c.h.b16 %v676
        %v836 = vunpack.c.l.b16 %v677
        %v837 = vunpack.c.h.b16 %v677
        %v838 = vunpack.c.l.b16 %v678
        %v839 = vunpack.c.h.b16 %v678
        %v840 = vunpack.c.l.b16 %v679
        %v841 = vunpack.c.h.b16 %v679
        %v842 = vunpack.c.l.b16 %v680
        %v843 = vunpack.c.h.b16 %v680
        %v844 = vunpack.c.l.b16 %v681
        %v845 = vunpack.c.h.b16 %v681
        %v846 = vunpack.c.l.b16 %v682
        %v847 = vunpack.c.h.b16 %v682
        %v848 = vunpack.c.l.b16 %v683
        %v849 = vunpack.c.h.b16 %v683
        %v850 = vunpack.c.l.b16 %v684
        %v851 = vunpack.c.h.b16 %v684
        %v852 = vunpack.c.l.b16 %v685
        %v853 = vunpack.c.h.b16 %v685
        %v854 = vunpack.c.l.b16 %v686
        %v855 = vunpack.c.h.b16 %v686
        %v856 = vunpack.c.l.b16 %v687
        %v857 = vunpack.c.h.b16 %v687
        %v858 = vpack.c.b16 %v826, %v826
        %v859 = vpack.c.b16 %v827, %v827
        %v860 = vpack.c.b16 %v828, %v828
        %v861 = vpack.c.b16 %v829, %v829
        %v862 = vpack.c.b16 %v830, %v830
        %v863 = vpack.c.b16 %v831, %v831
        %v864 = vpack.c.b16 %v832, %v832
        %v865 = vpack.c.b16 %v833, %v833
        %v866 = vpack.c.b16 %v834, %v834
        %v867 = vpack.c.b16 %v835, %v835
        %v868 = vpack.c.b16 %v836, %v836
        %v869 = vpack.c.b16 %v837, %v837
        %v870 = vpack.c.b16 %v838, %v838
        %v871 = vpack.c.b16 %v839, %v839
        %v872 = vpack.c.b16 %v840, %v840
        %v873 = vpack.c.b16 %v841, %v841
        %v874 = vpack.c.b16 %v842, %v842
        %v875 = vpack.c.b16 %v843, %v843
        %v876 = vpack.c.b16 %v844, %v844
        %v877 = vpack.c.b16 %v845, %v845
        %v878 = vpack.c.b16 %v846, %v846
        %v879 = vpack.c.b16 %v847, %v847
        %v880 = vpack.c.b16 %v848, %v848
        %v881 = vpack.c.b16 %v849, %v849
        %v882 = vpack.c.b16 %v850, %v850
        %v883 = vpack.c.b16 %v851, %v851
        %v884 = vpack.c.b16 %v852, %v852
        %v885 = vpack.c.b16 %v853, %v853
        %v886 = vpack.c.b16 %v854, %v854
        %v887 = vpack.c.b16 %v855, %v855
        %v888 = vpack.c.b16 %v856, %v856
        %v889 = vpack.c.b16 %v857, %v857
        %vm890 = vsmask.f32 4368
        %vm891 = vmor %vm698, %vm890
        %v893 = vshrl.u32 %v858, 16
        %v895 = vrot.slane %v893, 7
        %v896 = vshll.u32 %v858, 16
        %v898 = vor.u32 %v895, %v896
        %v899 = vrot.slane %v895, 4
        %v901 = vshrl.u32 %v859, 16
        %v903 = vrot.slane %v901, 7
        %v904 = vshll.u32 %v859, 16
        %v906 = vor.u32 %v903, %v904
        %v907 = vsel %vm891, %v899, %v906
        %v908 = vrot.slane %v903, 4
        %v910 = vshrl.u32 %v860, 16
        %v912 = vrot.slane %v910, 7
        %v913 = vshll.u32 %v860, 16
        %v915 = vor.u32 %v912, %v913
        %v916 = vrot.slane %v912, 4
        %v918 = vshrl.u32 %v861, 16
        %v920 = vrot.slane %v918, 7
        %v921 = vshll.u32 %v861, 16
        %v923 = vor.u32 %v920, %v921
        %v924 = vsel %vm891, %v916, %v923
        %v925 = vrot.slane %v920, 4
        %v927 = vshrl.u32 %v862, 16
        %v929 = vrot.slane %v927, 7
        %v930 = vshll.u32 %v862, 16
        %v932 = vor.u32 %v929, %v930
        %v933 = vrot.slane %v929, 4
        %v935 = vshrl.u32 %v863, 16
        %v937 = vrot.slane %v935, 7
        %v938 = vshll.u32 %v863, 16
        %v940 = vor.u32 %v937, %v938
        %v941 = vsel %vm891, %v933, %v940
        %v942 = vrot.slane %v937, 4
        %v944 = vshrl.u32 %v864, 16
        %v946 = vrot.slane %v944, 7
        %v947 = vshll.u32 %v864, 16
        %v949 = vor.u32 %v946, %v947
        %v950 = vrot.slane %v946, 4
        %v952 = vshrl.u32 %v865, 16
        %v954 = vrot.slane %v952, 7
        %v955 = vshll.u32 %v865, 16
        %v957 = vor.u32 %v954, %v955
        %v958 = vsel %vm891, %v950, %v957
        %v959 = vrot.slane %v954, 4
        %v961 = vshrl.u32 %v866, 16
        %v963 = vrot.slane %v961, 7
        %v964 = vshll.u32 %v866, 16
        %v966 = vor.u32 %v963, %v964
        %v967 = vrot.slane %v963, 4
        %v969 = vshrl.u32 %v867, 16
        %v971 = vrot.slane %v969, 7
        %v972 = vshll.u32 %v867, 16
        %v974 = vor.u32 %v971, %v972
        %v975 = vsel %vm891, %v967, %v974
        %v976 = vrot.slane %v971, 4
        %v978 = vshrl.u32 %v868, 16
        %v980 = vrot.slane %v978, 7
        %v981 = vshll.u32 %v868, 16
        %v983 = vor.u32 %v980, %v981
        %v984 = vrot.slane %v980, 4
        %v986 = vshrl.u32 %v869, 16
        %v988 = vrot.slane %v986, 7
        %v989 = vshll.u32 %v869, 16
        %v991 = vor.u32 %v988, %v989
        %v992 = vsel %vm891, %v984, %v991
        %v993 = vrot.slane %v988, 4
        %v995 = vshrl.u32 %v870, 16
        %v997 = vrot.slane %v995, 7
        %v998 = vshll.u32 %v870, 16
        %v1000 = vor.u32 %v997, %v998
        %v1001 = vrot.slane %v997, 4
        %v1003 = vshrl.u32 %v871, 16
        %v1005 = vrot.slane %v1003, 7
        %v1006 = vshll.u32 %v871, 16
        %v1008 = vor.u32 %v1005, %v1006
        %v1009 = vsel %vm891, %v1001, %v1008
        %v1010 = vrot.slane %v1005, 4
        %v1012 = vshrl.u32 %v872, 16
        %v1014 = vrot.slane %v1012, 7
        %v1015 = vshll.u32 %v872, 16
        %v1017 = vor.u32 %v1014, %v1015
        %v1018 = vrot.slane %v1014, 4
        %v1020 = vshrl.u32 %v873, 16
        %v1022 = vrot.slane %v1020, 7
        %v1023 = vshll.u32 %v873, 16
        %v1025 = vor.u32 %v1022, %v1023
        %v1026 = vsel %vm891, %v1018, %v1025
        %v1027 = vrot.slane %v1022, 4
        %v1029 = vshrl.u32 %v874, 16
        %v1031 = vrot.slane %v1029, 7
        %v1032 = vshll.u32 %v874, 16
        %v1034 = vor.u32 %v1031, %v1032
        %v1035 = vrot.slane %v1031, 4
        %v1037 = vshrl.u32 %v875, 16
        %v1039 = vrot.slane %v1037, 7
        %v1040 = vshll.u32 %v875, 16
        %v1042 = vor.u32 %v1039, %v1040
        %v1043 = vsel %vm891, %v1035, %v1042
        %v1044 = vrot.slane %v1039, 4
        %v1046 = vshrl.u32 %v876, 16
        %v1048 = vrot.slane %v1046, 7
        %v1049 = vshll.u32 %v876, 16
        %v1051 = vor.u32 %v1048, %v1049
        %v1052 = vrot.slane %v1048, 4
        %v1054 = vshrl.u32 %v877, 16
        %v1056 = vrot.slane %v1054, 7
        %v1057 = vshll.u32 %v877, 16
        %v1059 = vor.u32 %v1056, %v1057
        %v1060 = vsel %vm891, %v1052, %v1059
        %v1061 = vrot.slane %v1056, 4
        %v1063 = vshrl.u32 %v878, 16
        %v1065 = vrot.slane %v1063, 7
        %v1066 = vshll.u32 %v878, 16
        %v1068 = vor.u32 %v1065, %v1066
        %v1069 = vrot.slane %v1065, 4
        %v1071 = vshrl.u32 %v879, 16
        %v1073 = vrot.slane %v1071, 7
        %v1074 = vshll.u32 %v879, 16
        %v1076 = vor.u32 %v1073, %v1074
        %v1077 = vsel %vm891, %v1069, %v1076
        %v1078 = vrot.slane %v1073, 4
        %v1080 = vshrl.u32 %v880, 16
        %v1082 = vrot.slane %v1080, 7
        %v1083 = vshll.u32 %v880, 16
        %v1085 = vor.u32 %v1082, %v1083
        %v1086 = vrot.slane %v1082, 4
        %v1088 = vshrl.u32 %v881, 16
        %v1090 = vrot.slane %v1088, 7
        %v1091 = vshll.u32 %v881, 16
        %v1093 = vor.u32 %v1090, %v1091
        %v1094 = vsel %vm891, %v1086, %v1093
        %v1095 = vrot.slane %v1090, 4
        %v1097 = vshrl.u32 %v882, 16
        %v1099 = vrot.slane %v1097, 7
        %v1100 = vshll.u32 %v882, 16
        %v1102 = vor.u32 %v1099, %v1100
        %v1103 = vrot.slane %v1099, 4
        %v1105 = vshrl.u32 %v883, 16
        %v1107 = vrot.slane %v1105, 7
        %v1108 = vshll.u32 %v883, 16
        %v1110 = vor.u32 %v1107, %v1108
        %v1111 = vsel %vm891, %v1103, %v1110
        %v1112 = vrot.slane %v1107, 4
        %v1114 = vshrl.u32 %v884, 16
        %v1116 = vrot.slane %v1114, 7
        %v1117 = vshll.u32 %v884, 16
        %v1119 = vor.u32 %v1116, %v1117
        %v1120 = vrot.slane %v1116, 4
        %v1122 = vshrl.u32 %v885, 16
        %v1124 = vrot.slane %v1122, 7
        %v1125 = vshll.u32 %v885, 16
        %v1127 = vor.u32 %v1124, %v1125
        %v1128 = vsel %vm891, %v1120, %v1127
        %v1129 = vrot.slane %v1124, 4
        %v1131 = vshrl.u32 %v886, 16
        %v1133 = vrot.slane %v1131, 7
        %v1134 = vshll.u32 %v886, 16
        %v1136 = vor.u32 %v1133, %v1134
        %v1137 = vrot.slane %v1133, 4
        %v1139 = vshrl.u32 %v887, 16
        %v1141 = vrot.slane %v1139, 7
        %v1142 = vshll.u32 %v887, 16
        %v1144 = vor.u32 %v1141, %v1142
        %v1145 = vsel %vm891, %v1137, %v1144
        %v1146 = vrot.slane %v1141, 4
        %v1148 = vshrl.u32 %v888, 16
        %v1150 = vrot.slane %v1148, 7
        %v1151 = vshll.u32 %v888, 16
        %v1153 = vor.u32 %v1150, %v1151
        %v1154 = vrot.slane %v1150, 4
        %v1156 = vshrl.u32 %v889, 16
        %v1158 = vrot.slane %v1156, 7
        %v1159 = vshll.u32 %v889, 16
        %v1161 = vor.u32 %v1158, %v1159
        %v1162 = vsel %vm891, %v1154, %v1161
        %v1163 = vrot.slane %v1158, 4
        %s1212 = scalar_lea.vmem [#allocation2], 12
        %vm1213 = vcmask 27648
        %vm1214 = vmand %vm1213, %vm754
        %v1215 = vld [vmem:[%s1212] sm:$0xf]
        %v1216 = vsel %vm1214, %v898, %v1215
        %1217 = vst [vmem:[%s1212] sm:$0xf] %v1216
        %1218 = vst.msk [vmem:[%s1212 + $0x4] sm:$0xf] %vm688, %v907
        %v1219 = vld [vmem:[%s1212 + $0x8] sm:$0x1]
        %v1220 = vsel %vm699, %v908, %v1219
        %1221 = vst [vmem:[%s1212 + $0x8] sm:$0x1] %v1220
        %v1222 = vld [vmem:[%s1212 + $0xc] sm:$0xf]
        %v1223 = vsel %vm1214, %v915, %v1222
        %1224 = vst [vmem:[%s1212 + $0xc] sm:$0xf] %v1223
        %1225 = vst.msk [vmem:[%s1212 + $0x10] sm:$0xf] %vm688, %v924
        %v1226 = vld [vmem:[%s1212 + $0x14] sm:$0x1]
        %v1227 = vsel %vm699, %v925, %v1226
        %1228 = vst [vmem:[%s1212 + $0x14] sm:$0x1] %v1227
        %v1229 = vld [vmem:[%s1212 + $0x18] sm:$0xf]
        %v1230 = vsel %vm1214, %v932, %v1229
        %1231 = vst [vmem:[%s1212 + $0x18] sm:$0xf] %v1230
        %1232 = vst.msk [vmem:[%s1212 + $0x1c] sm:$0xf] %vm688, %v941
        %v1233 = vld [vmem:[%s1212 + $0x20] sm:$0x1]
        %v1234 = vsel %vm699, %v942, %v1233
        %1235 = vst [vmem:[%s1212 + $0x20] sm:$0x1] %v1234
        %v1236 = vld [vmem:[%s1212 + $0x24] sm:$0xf]
        %v1237 = vsel %vm1214, %v949, %v1236
        %1238 = vst [vmem:[%s1212 + $0x24] sm:$0xf] %v1237
        %1239 = vst.msk [vmem:[%s1212 + $0x28] sm:$0xf] %vm688, %v958
        %v1240 = vld [vmem:[%s1212 + $0x2c] sm:$0x1]
        %v1241 = vsel %vm699, %v959, %v1240
        %1242 = vst [vmem:[%s1212 + $0x2c] sm:$0x1] %v1241
        %v1243 = vld [vmem:[%s1212 + $0x30] sm:$0xf]
        %v1244 = vsel %vm1214, %v966, %v1243
        %1245 = vst [vmem:[%s1212 + $0x30] sm:$0xf] %v1244
        %1246 = vst.msk [vmem:[%s1212 + $0x34] sm:$0xf] %vm688, %v975
        %v1247 = vld [vmem:[%s1212 + $0x38] sm:$0x1]
        %v1248 = vsel %vm699, %v976, %v1247
        %1249 = vst [vmem:[%s1212 + $0x38] sm:$0x1] %v1248
        %v1250 = vld [vmem:[%s1212 + $0x3c] sm:$0xf]
        %v1251 = vsel %vm1214, %v983, %v1250
        %1252 = vst [vmem:[%s1212 + $0x3c] sm:$0xf] %v1251
        %1253 = vst.msk [vmem:[%s1212 + $0x40] sm:$0xf] %vm688, %v992
        %v1254 = vld [vmem:[%s1212 + $0x44] sm:$0x1]
        %v1255 = vsel %vm699, %v993, %v1254
        %1256 = vst [vmem:[%s1212 + $0x44] sm:$0x1] %v1255
        %v1257 = vld [vmem:[%s1212 + $0x48] sm:$0xf]
        %v1258 = vsel %vm1214, %v1000, %v1257
        %1259 = vst [vmem:[%s1212 + $0x48] sm:$0xf] %v1258
        %1260 = vst.msk [vmem:[%s1212 + $0x4c] sm:$0xf] %vm688, %v1009
        %v1261 = vld [vmem:[%s1212 + $0x50] sm:$0x1]
        %v1262 = vsel %vm699, %v1010, %v1261
        %1263 = vst [vmem:[%s1212 + $0x50] sm:$0x1] %v1262
        %v1264 = vld [vmem:[%s1212 + $0x54] sm:$0xf]
        %v1265 = vsel %vm1214, %v1017, %v1264
        %1266 = vst [vmem:[%s1212 + $0x54] sm:$0xf] %v1265
        %1267 = vst.msk [vmem:[%s1212 + $0x58] sm:$0xf] %vm688, %v1026
        %v1268 = vld [vmem:[%s1212 + $0x5c] sm:$0x1]
        %v1269 = vsel %vm699, %v1027, %v1268
        %1270 = vst [vmem:[%s1212 + $0x5c] sm:$0x1] %v1269
        %v1271 = vld [vmem:[%s1212 + $0x60] sm:$0xf]
        %v1272 = vsel %vm1214, %v1034, %v1271
        %1273 = vst [vmem:[%s1212 + $0x60] sm:$0xf] %v1272
        %1274 = vst.msk [vmem:[%s1212 + $0x64] sm:$0xf] %vm688, %v1043
        %v1275 = vld [vmem:[%s1212 + $0x68] sm:$0x1]
        %v1276 = vsel %vm699, %v1044, %v1275
        %1277 = vst [vmem:[%s1212 + $0x68] sm:$0x1] %v1276
        %v1278 = vld [vmem:[%s1212 + $0x6c] sm:$0xf]
        %v1279 = vsel %vm1214, %v1051, %v1278
        %1280 = vst [vmem:[%s1212 + $0x6c] sm:$0xf] %v1279
        %1281 = vst.msk [vmem:[%s1212 + $0x70] sm:$0xf] %vm688, %v1060
        %v1282 = vld [vmem:[%s1212 + $0x74] sm:$0x1]
        %v1283 = vsel %vm699, %v1061, %v1282
        %1284 = vst [vmem:[%s1212 + $0x74] sm:$0x1] %v1283
        %v1285 = vld [vmem:[%s1212 + $0x78] sm:$0xf]
        %v1286 = vsel %vm1214, %v1068, %v1285
        %1287 = vst [vmem:[%s1212 + $0x78] sm:$0xf] %v1286
        %1288 = vst.msk [vmem:[%s1212 + $0x7c] sm:$0xf] %vm688, %v1077
        %v1289 = vld [vmem:[%s1212 + $0x80] sm:$0x1]
        %v1290 = vsel %vm699, %v1078, %v1289
        %1291 = vst [vmem:[%s1212 + $0x80] sm:$0x1] %v1290
        %v1292 = vld [vmem:[%s1212 + $0x84] sm:$0xf]
        %v1293 = vsel %vm1214, %v1085, %v1292
        %1294 = vst [vmem:[%s1212 + $0x84] sm:$0xf] %v1293
        %1295 = vst.msk [vmem:[%s1212 + $0x88] sm:$0xf] %vm688, %v1094
        %v1296 = vld [vmem:[%s1212 + $0x8c] sm:$0x1]
        %v1297 = vsel %vm699, %v1095, %v1296
        %1298 = vst [vmem:[%s1212 + $0x8c] sm:$0x1] %v1297
        %v1299 = vld [vmem:[%s1212 + $0x90] sm:$0xf]
        %v1300 = vsel %vm1214, %v1102, %v1299
        %1301 = vst [vmem:[%s1212 + $0x90] sm:$0xf] %v1300
        %1302 = vst.msk [vmem:[%s1212 + $0x94] sm:$0xf] %vm688, %v1111
        %v1303 = vld [vmem:[%s1212 + $0x98] sm:$0x1]
        %v1304 = vsel %vm699, %v1112, %v1303
        %1305 = vst [vmem:[%s1212 + $0x98] sm:$0x1] %v1304
        %v1306 = vld [vmem:[%s1212 + $0x9c] sm:$0xf]
        %v1307 = vsel %vm1214, %v1119, %v1306
        %1308 = vst [vmem:[%s1212 + $0x9c] sm:$0xf] %v1307
        %1309 = vst.msk [vmem:[%s1212 + $0xa0] sm:$0xf] %vm688, %v1128
        %v1310 = vld [vmem:[%s1212 + $0xa4] sm:$0x1]
        %v1311 = vsel %vm699, %v1129, %v1310
        %1312 = vst [vmem:[%s1212 + $0xa4] sm:$0x1] %v1311
        %v1313 = vld [vmem:[%s1212 + $0xa8] sm:$0xf]
        %v1314 = vsel %vm1214, %v1136, %v1313
        %1315 = vst [vmem:[%s1212 + $0xa8] sm:$0xf] %v1314
        %1316 = vst.msk [vmem:[%s1212 + $0xac] sm:$0xf] %vm688, %v1145
        %v1317 = vld [vmem:[%s1212 + $0xb0] sm:$0x1]
        %v1318 = vsel %vm699, %v1146, %v1317
        %1319 = vst [vmem:[%s1212 + $0xb0] sm:$0x1] %v1318
        %v1320 = vld [vmem:[%s1212 + $0xb4] sm:$0xf]
        %v1321 = vsel %vm1214, %v1153, %v1320
        %1322 = vst [vmem:[%s1212 + $0xb4] sm:$0xf] %v1321
        %1323 = vst.msk [vmem:[%s1212 + $0xb8] sm:$0xf] %vm688, %v1162
        %v1324 = vld [vmem:[%s1212 + $0xbc] sm:$0x1]
        %v1325 = vsel %vm699, %v1163, %v1324
        %1326 = vst [vmem:[%s1212 + $0xbc] sm:$0x1] %v1325
        %v1327 = vld [vmem:[#allocation2] sm:$0xf]
        %v1328 = vld [vmem:[#allocation2 + $0x4] sm:$0xf]
        %v1329 = vld [vmem:[#allocation2 + $0xc] sm:$0xf]
        %v1330 = vld [vmem:[#allocation2 + $0x10] sm:$0xf]
        %v1331 = vld [vmem:[#allocation2 + $0x18] sm:$0xf]
        %v1332 = vld [vmem:[#allocation2 + $0x1c] sm:$0xf]
        %v1333 = vld [vmem:[#allocation2 + $0x24] sm:$0xf]
        %v1334 = vld [vmem:[#allocation2 + $0x28] sm:$0xf]
        %v1335 = vld [vmem:[#allocation2 + $0x30] sm:$0xf]
        %v1336 = vld [vmem:[#allocation2 + $0x34] sm:$0xf]
        %v1337 = vld [vmem:[#allocation2 + $0x3c] sm:$0xf]
        %v1338 = vld [vmem:[#allocation2 + $0x40] sm:$0xf]
        %v1339 = vld [vmem:[#allocation2 + $0x48] sm:$0xf]
        %v1340 = vld [vmem:[#allocation2 + $0x4c] sm:$0xf]
        %v1341 = vld [vmem:[#allocation2 + $0x54] sm:$0xf]
        %v1342 = vld [vmem:[#allocation2 + $0x58] sm:$0xf]
        %v1343 = vld [vmem:[#allocation2 + $0x60] sm:$0xf]
        %v1344 = vld [vmem:[#allocation2 + $0x64] sm:$0xf]
        %v1345 = vld [vmem:[#allocation2 + $0x6c] sm:$0xf]
        %v1346 = vld [vmem:[#allocation2 + $0x70] sm:$0xf]
        %v1347 = vld [vmem:[#allocation2 + $0x78] sm:$0xf]
        %v1348 = vld [vmem:[#allocation2 + $0x7c] sm:$0xf]
        %v1349 = vld [vmem:[#allocation2 + $0x84] sm:$0xf]
        %v1350 = vld [vmem:[#allocation2 + $0x88] sm:$0xf]
        %v1351 = vld [vmem:[#allocation2 + $0x90] sm:$0xf]
        %v1352 = vld [vmem:[#allocation2 + $0x94] sm:$0xf]
        %v1353 = vld [vmem:[#allocation2 + $0x9c] sm:$0xf]
        %v1354 = vld [vmem:[#allocation2 + $0xa0] sm:$0xf]
        %v1355 = vld [vmem:[#allocation2 + $0xa8] sm:$0xf]
        %v1356 = vld [vmem:[#allocation2 + $0xac] sm:$0xf]
        %v1357 = vld [vmem:[#allocation2 + $0xb4] sm:$0xf]
        %v1358 = vld [vmem:[#allocation2 + $0xb8] sm:$0xf]
        %v1359 = vld [vmem:[%s4] sm:$0x3]
        %v1360 = vld [vmem:[#allocation2 + $0x8] sm:$0x1]
        %v1361 = vld [vmem:[#allocation2 + $0x14] sm:$0x1]
        %v1362 = vld [vmem:[#allocation2 + $0x20] sm:$0x1]
        %v1363 = vld [vmem:[#allocation2 + $0x2c] sm:$0x1]
        %v1364 = vld [vmem:[#allocation2 + $0x38] sm:$0x1]
        %v1365 = vld [vmem:[#allocation2 + $0x44] sm:$0x1]
        %v1366 = vld [vmem:[#allocation2 + $0x50] sm:$0x1]
        %v1367 = vld [vmem:[#allocation2 + $0x5c] sm:$0x1]
        %v1368 = vld [vmem:[#allocation2 + $0x68] sm:$0x1]
        %v1369 = vld [vmem:[#allocation2 + $0x74] sm:$0x1]
        %v1370 = vld [vmem:[#allocation2 + $0x80] sm:$0x1]
        %v1371 = vld [vmem:[#allocation2 + $0x8c] sm:$0x1]
        %v1372 = vld [vmem:[#allocation2 + $0x98] sm:$0x1]
        %v1373 = vld [vmem:[#allocation2 + $0xa4] sm:$0x1]
        %v1374 = vld [vmem:[#allocation2 + $0xb0] sm:$0x1]
        %v1375 = vld [vmem:[#allocation2 + $0xbc] sm:$0x1]
        %vm1376 = vsmask.f32 3328
        %vm1377 = vsmask.f32 7440
        %vm1378 = vmor %vm1376, %vm1377
        %v1380 = vshrl.u32 %v1327, 16
        %v1382 = vrot.slane %v1380, 4
        %v1383 = vshll.u32 %v1327, 16
        %v1385 = vrot.slane %v1383, 5
        %v1386 = vor.u32 %v1382, %v1385
        %v1387 = vrot.slane %v1386, 4
        %v1389 = vshll.u32 %v1328, 16
        %v1391 = vrot.slane %v1389, 5
        %v1392 = vsel %vm1378, %v1387, %v1391
        %v1393 = vshrl.u32 %v1328, 16
        %v1395 = vrot.slane %v1393, 4
        %v1396 = vor.u32 %v1395, %v1391
        %v1397 = vrot.slane %v1396, 4
        %v1399 = vshll.u32 %v1360, 16
        %v1401 = vrot.slane %v1399, 5
        %v1402 = vsel %vm1378, %v1397, %v1401
        %v1404 = vshrl.u32 %v1329, 16
        %v1406 = vrot.slane %v1404, 4
        %v1407 = vshll.u32 %v1329, 16
        %v1409 = vrot.slane %v1407, 5
        %v1410 = vor.u32 %v1406, %v1409
        %v1411 = vrot.slane %v1410, 4
        %v1413 = vshll.u32 %v1330, 16
        %v1415 = vrot.slane %v1413, 5
        %v1416 = vsel %vm1378, %v1411, %v1415
        %v1417 = vshrl.u32 %v1330, 16
        %v1419 = vrot.slane %v1417, 4
        %v1420 = vor.u32 %v1419, %v1415
        %v1421 = vrot.slane %v1420, 4
        %v1423 = vshll.u32 %v1361, 16
        %v1425 = vrot.slane %v1423, 5
        %v1426 = vsel %vm1378, %v1421, %v1425
        %v1428 = vshrl.u32 %v1331, 16
        %v1430 = vrot.slane %v1428, 4
        %v1431 = vshll.u32 %v1331, 16
        %v1433 = vrot.slane %v1431, 5
        %v1434 = vor.u32 %v1430, %v1433
        %v1435 = vrot.slane %v1434, 4
        %v1437 = vshll.u32 %v1332, 16
        %v1439 = vrot.slane %v1437, 5
        %v1440 = vsel %vm1378, %v1435, %v1439
        %v1441 = vshrl.u32 %v1332, 16
        %v1443 = vrot.slane %v1441, 4
        %v1444 = vor.u32 %v1443, %v1439
        %v1445 = vrot.slane %v1444, 4
        %v1447 = vshll.u32 %v1362, 16
        %v1449 = vrot.slane %v1447, 5
        %v1450 = vsel %vm1378, %v1445, %v1449
        %v1452 = vshrl.u32 %v1333, 16
        %v1454 = vrot.slane %v1452, 4
        %v1455 = vshll.u32 %v1333, 16
        %v1457 = vrot.slane %v1455, 5
        %v1458 = vor.u32 %v1454, %v1457
        %v1459 = vrot.slane %v1458, 4
        %v1461 = vshll.u32 %v1334, 16
        %v1463 = vrot.slane %v1461, 5
        %v1464 = vsel %vm1378, %v1459, %v1463
        %v1465 = vshrl.u32 %v1334, 16
        %v1467 = vrot.slane %v1465, 4
        %v1468 = vor.u32 %v1467, %v1463
        %v1469 = vrot.slane %v1468, 4
        %v1471 = vshll.u32 %v1363, 16
        %v1473 = vrot.slane %v1471, 5
        %v1474 = vsel %vm1378, %v1469, %v1473
        %v1476 = vshrl.u32 %v1335, 16
        %v1478 = vrot.slane %v1476, 4
        %v1479 = vshll.u32 %v1335, 16
        %v1481 = vrot.slane %v1479, 5
        %v1482 = vor.u32 %v1478, %v1481
        %v1483 = vrot.slane %v1482, 4
        %v1485 = vshll.u32 %v1336, 16
        %v1487 = vrot.slane %v1485, 5
        %v1488 = vsel %vm1378, %v1483, %v1487
        %v1489 = vshrl.u32 %v1336, 16
        %v1491 = vrot.slane %v1489, 4
        %v1492 = vor.u32 %v1491, %v1487
        %v1493 = vrot.slane %v1492, 4
        %v1495 = vshll.u32 %v1364, 16
        %v1497 = vrot.slane %v1495, 5
        %v1498 = vsel %vm1378, %v1493, %v1497
        %v1500 = vshrl.u32 %v1337, 16
        %v1502 = vrot.slane %v1500, 4
        %v1503 = vshll.u32 %v1337, 16
        %v1505 = vrot.slane %v1503, 5
        %v1506 = vor.u32 %v1502, %v1505
        %v1507 = vrot.slane %v1506, 4
        %v1509 = vshll.u32 %v1338, 16
        %v1511 = vrot.slane %v1509, 5
        %v1512 = vsel %vm1378, %v1507, %v1511
        %v1513 = vshrl.u32 %v1338, 16
        %v1515 = vrot.slane %v1513, 4
        %v1516 = vor.u32 %v1515, %v1511
        %v1517 = vrot.slane %v1516, 4
        %v1519 = vshll.u32 %v1365, 16
        %v1521 = vrot.slane %v1519, 5
        %v1522 = vsel %vm1378, %v1517, %v1521
        %v1524 = vshrl.u32 %v1339, 16
        %v1526 = vrot.slane %v1524, 4
        %v1527 = vshll.u32 %v1339, 16
        %v1529 = vrot.slane %v1527, 5
        %v1530 = vor.u32 %v1526, %v1529
        %v1531 = vrot.slane %v1530, 4
        %v1533 = vshll.u32 %v1340, 16
        %v1535 = vrot.slane %v1533, 5
        %v1536 = vsel %vm1378, %v1531, %v1535
        %v1537 = vshrl.u32 %v1340, 16
        %v1539 = vrot.slane %v1537, 4
        %v1540 = vor.u32 %v1539, %v1535
        %v1541 = vrot.slane %v1540, 4
        %v1543 = vshll.u32 %v1366, 16
        %v1545 = vrot.slane %v1543, 5
        %v1546 = vsel %vm1378, %v1541, %v1545
        %v1548 = vshrl.u32 %v1341, 16
        %v1550 = vrot.slane %v1548, 4
        %v1551 = vshll.u32 %v1341, 16
        %v1553 = vrot.slane %v1551, 5
        %v1554 = vor.u32 %v1550, %v1553
        %v1555 = vrot.slane %v1554, 4
        %v1557 = vshll.u32 %v1342, 16
        %v1559 = vrot.slane %v1557, 5
        %v1560 = vsel %vm1378, %v1555, %v1559
        %v1561 = vshrl.u32 %v1342, 16
        %v1563 = vrot.slane %v1561, 4
        %v1564 = vor.u32 %v1563, %v1559
        %v1565 = vrot.slane %v1564, 4
        %v1567 = vshll.u32 %v1367, 16
        %v1569 = vrot.slane %v1567, 5
        %v1570 = vsel %vm1378, %v1565, %v1569
        %v1572 = vshrl.u32 %v1343, 16
        %v1574 = vrot.slane %v1572, 4
        %v1575 = vshll.u32 %v1343, 16
        %v1577 = vrot.slane %v1575, 5
        %v1578 = vor.u32 %v1574, %v1577
        %v1579 = vrot.slane %v1578, 4
        %v1581 = vshll.u32 %v1344, 16
        %v1583 = vrot.slane %v1581, 5
        %v1584 = vsel %vm1378, %v1579, %v1583
        %v1585 = vshrl.u32 %v1344, 16
        %v1587 = vrot.slane %v1585, 4
        %v1588 = vor.u32 %v1587, %v1583
        %v1589 = vrot.slane %v1588, 4
        %v1591 = vshll.u32 %v1368, 16
        %v1593 = vrot.slane %v1591, 5
        %v1594 = vsel %vm1378, %v1589, %v1593
        %v1596 = vshrl.u32 %v1345, 16
        %v1598 = vrot.slane %v1596, 4
        %v1599 = vshll.u32 %v1345, 16
        %v1601 = vrot.slane %v1599, 5
        %v1602 = vor.u32 %v1598, %v1601
        %v1603 = vrot.slane %v1602, 4
        %v1605 = vshll.u32 %v1346, 16
        %v1607 = vrot.slane %v1605, 5
        %v1608 = vsel %vm1378, %v1603, %v1607
        %v1609 = vshrl.u32 %v1346, 16
        %v1611 = vrot.slane %v1609, 4
        %v1612 = vor.u32 %v1611, %v1607
        %v1613 = vrot.slane %v1612, 4
        %v1615 = vshll.u32 %v1369, 16
        %v1617 = vrot.slane %v1615, 5
        %v1618 = vsel %vm1378, %v1613, %v1617
        %v1620 = vshrl.u32 %v1347, 16
        %v1622 = vrot.slane %v1620, 4
        %v1623 = vshll.u32 %v1347, 16
        %v1625 = vrot.slane %v1623, 5
        %v1626 = vor.u32 %v1622, %v1625
        %v1627 = vrot.slane %v1626, 4
        %v1629 = vshll.u32 %v1348, 16
        %v1631 = vrot.slane %v1629, 5
        %v1632 = vsel %vm1378, %v1627, %v1631
        %v1633 = vshrl.u32 %v1348, 16
        %v1635 = vrot.slane %v1633, 4
        %v1636 = vor.u32 %v1635, %v1631
        %v1637 = vrot.slane %v1636, 4
        %v1639 = vshll.u32 %v1370, 16
        %v1641 = vrot.slane %v1639, 5
        %v1642 = vsel %vm1378, %v1637, %v1641
        %v1644 = vshrl.u32 %v1349, 16
        %v1646 = vrot.slane %v1644, 4
        %v1647 = vshll.u32 %v1349, 16
        %v1649 = vrot.slane %v1647, 5
        %v1650 = vor.u32 %v1646, %v1649
        %v1651 = vrot.slane %v1650, 4
        %v1653 = vshll.u32 %v1350, 16
        %v1655 = vrot.slane %v1653, 5
        %v1656 = vsel %vm1378, %v1651, %v1655
        %v1657 = vshrl.u32 %v1350, 16
        %v1659 = vrot.slane %v1657, 4
        %v1660 = vor.u32 %v1659, %v1655
        %v1661 = vrot.slane %v1660, 4
        %v1663 = vshll.u32 %v1371, 16
        %v1665 = vrot.slane %v1663, 5
        %v1666 = vsel %vm1378, %v1661, %v1665
        %v1668 = vshrl.u32 %v1351, 16
        %v1670 = vrot.slane %v1668, 4
        %v1671 = vshll.u32 %v1351, 16
        %v1673 = vrot.slane %v1671, 5
        %v1674 = vor.u32 %v1670, %v1673
        %v1675 = vrot.slane %v1674, 4
        %v1677 = vshll.u32 %v1352, 16
        %v1679 = vrot.slane %v1677, 5
        %v1680 = vsel %vm1378, %v1675, %v1679
        %v1681 = vshrl.u32 %v1352, 16
        %v1683 = vrot.slane %v1681, 4
        %v1684 = vor.u32 %v1683, %v1679
        %v1685 = vrot.slane %v1684, 4
        %v1687 = vshll.u32 %v1372, 16
        %v1689 = vrot.slane %v1687, 5
        %v1690 = vsel %vm1378, %v1685, %v1689
        %v1692 = vshrl.u32 %v1353, 16
        %v1694 = vrot.slane %v1692, 4
        %v1695 = vshll.u32 %v1353, 16
        %v1697 = vrot.slane %v1695, 5
        %v1698 = vor.u32 %v1694, %v1697
        %v1699 = vrot.slane %v1698, 4
        %v1701 = vshll.u32 %v1354, 16
        %v1703 = vrot.slane %v1701, 5
        %v1704 = vsel %vm1378, %v1699, %v1703
        %v1705 = vshrl.u32 %v1354, 16
        %v1707 = vrot.slane %v1705, 4
        %v1708 = vor.u32 %v1707, %v1703
        %v1709 = vrot.slane %v1708, 4
        %v1711 = vshll.u32 %v1373, 16
        %v1713 = vrot.slane %v1711, 5
        %v1714 = vsel %vm1378, %v1709, %v1713
        %v1716 = vshrl.u32 %v1355, 16
        %v1718 = vrot.slane %v1716, 4
        %v1719 = vshll.u32 %v1355, 16
        %v1721 = vrot.slane %v1719, 5
        %v1722 = vor.u32 %v1718, %v1721
        %v1723 = vrot.slane %v1722, 4
        %v1725 = vshll.u32 %v1356, 16
        %v1727 = vrot.slane %v1725, 5
        %v1728 = vsel %vm1378, %v1723, %v1727
        %v1729 = vshrl.u32 %v1356, 16
        %v1731 = vrot.slane %v1729, 4
        %v1732 = vor.u32 %v1731, %v1727
        %v1733 = vrot.slane %v1732, 4
        %v1735 = vshll.u32 %v1374, 16
        %v1737 = vrot.slane %v1735, 5
        %v1738 = vsel %vm1378, %v1733, %v1737
        %v1740 = vshrl.u32 %v1357, 16
        %v1742 = vrot.slane %v1740, 4
        %v1743 = vshll.u32 %v1357, 16
        %v1745 = vrot.slane %v1743, 5
        %v1746 = vor.u32 %v1742, %v1745
        %v1747 = vrot.slane %v1746, 4
        %v1749 = vshll.u32 %v1358, 16
        %v1751 = vrot.slane %v1749, 5
        %v1752 = vsel %vm1378, %v1747, %v1751
        %v1753 = vshrl.u32 %v1358, 16
        %v1755 = vrot.slane %v1753, 4
        %v1756 = vor.u32 %v1755, %v1751
        %v1757 = vrot.slane %v1756, 4
        %v1759 = vshll.u32 %v1375, 16
        %v1761 = vrot.slane %v1759, 5
        %v1762 = vsel %vm1378, %v1757, %v1761
        %s1763 = scalar_lea.vmem %s4, 2
        %v1764 = vld [vmem:[%s1763] sm:$0x3]
        %v1765 = vunpack.c.l.b16 %v1392
        %v1766 = vunpack.c.l.b16 %v1402
        %v1767 = vunpack.c.l.b16 %v1416
        %v1768 = vunpack.c.l.b16 %v1426
        %v1769 = vunpack.c.l.b16 %v1440
        %v1770 = vunpack.c.l.b16 %v1450
        %v1771 = vunpack.c.l.b16 %v1464
        %v1772 = vunpack.c.l.b16 %v1474
        %v1773 = vunpack.c.l.b16 %v1488
        %v1774 = vunpack.c.l.b16 %v1498
        %v1775 = vunpack.c.l.b16 %v1512
        %v1776 = vunpack.c.l.b16 %v1522
        %v1777 = vunpack.c.l.b16 %v1536
        %v1778 = vunpack.c.l.b16 %v1546
        %v1779 = vunpack.c.l.b16 %v1560
        %v1780 = vunpack.c.l.b16 %v1570
        %v1781 = vunpack.c.l.b16 %v1584
        %v1782 = vunpack.c.l.b16 %v1594
        %v1783 = vunpack.c.l.b16 %v1608
        %v1784 = vunpack.c.l.b16 %v1618
        %v1785 = vunpack.c.l.b16 %v1632
        %v1786 = vunpack.c.l.b16 %v1642
        %v1787 = vunpack.c.l.b16 %v1656
        %v1788 = vunpack.c.l.b16 %v1666
        %v1789 = vunpack.c.l.b16 %v1680
        %v1790 = vunpack.c.l.b16 %v1690
        %v1791 = vunpack.c.l.b16 %v1704
        %v1792 = vunpack.c.l.b16 %v1714
        %v1793 = vunpack.c.l.b16 %v1728
        %v1794 = vunpack.c.l.b16 %v1738
        %v1795 = vunpack.c.l.b16 %v1752
        %v1796 = vunpack.c.l.b16 %v1762
        %v1797 = vpack.c.b16 %v1766, %v1765
        %v1798 = vpack.c.b16 %v1768, %v1767
        %v1799 = vpack.c.b16 %v1770, %v1769
        %v1800 = vpack.c.b16 %v1772, %v1771
        %v1801 = vpack.c.b16 %v1774, %v1773
        %v1802 = vpack.c.b16 %v1776, %v1775
        %v1803 = vpack.c.b16 %v1778, %v1777
        %v1804 = vpack.c.b16 %v1780, %v1779
        %v1805 = vpack.c.b16 %v1782, %v1781
        %v1806 = vpack.c.b16 %v1784, %v1783
        %v1807 = vpack.c.b16 %v1786, %v1785
        %v1808 = vpack.c.b16 %v1788, %v1787
        %v1809 = vpack.c.b16 %v1790, %v1789
        %v1810 = vpack.c.b16 %v1792, %v1791
        %v1811 = vpack.c.b16 %v1794, %v1793
        %v1812 = vpack.c.b16 %v1796, %v1795
        %v1814 = vsel %vm315, %v1797, 0
        %v1817 = vsel %vm315, %v1798, 0
        %v1820 = vsel %vm315, %v1799, 0
        %v1823 = vsel %vm315, %v1800, 0
        %v1826 = vsel %vm315, %v1801, 0
        %v1829 = vsel %vm315, %v1802, 0
        %v1832 = vsel %vm315, %v1803, 0
        %v1835 = vsel %vm315, %v1804, 0
        %v1838 = vsel %vm315, %v1805, 0
        %v1841 = vsel %vm315, %v1806, 0
        %v1844 = vsel %vm315, %v1807, 0
        %v1847 = vsel %vm315, %v1808, 0
        %v1850 = vsel %vm315, %v1809, 0
        %v1853 = vsel %vm315, %v1810, 0
        %v1856 = vsel %vm315, %v1811, 0
        %v1859 = vsel %vm315, %v1812, 0
        %vm1861 = vcmask 1041408
        %v1863 = vsel %vm1861, %v1764, 0
        %1865 = vmatprep.subr.bf16.mxu0 0
        %1866 = vmatpush1.bf16.msra.mxu0 %v1863
        %1867 = vmatprep.subr.bf16.mxu0 0
        %1868 = vmatpush1.bf16.msra.mxu0 0
        %1869 = vmatprep.subr.bf16.mxu0 0
        %1870 = vmatpush1.bf16.msra.mxu0 0
        %1871 = vmatprep.subr.bf16.mxu0 0
        %1872 = vmatpush1.bf16.msra.mxu0 0
        %1873 = vmatprep.subr.bf16.mxu0 0
        %1874 = vmatpush1.bf16.msra.mxu0 0
        %1875 = vmatprep.subr.bf16.mxu0 0
        %1876 = vmatpush1.bf16.msra.mxu0 0
        %1877 = vmatprep.subr.bf16.mxu0 0
        %1878 = vmatpush1.bf16.msra.mxu0 0
        %1879 = vmatprep.subr.bf16.mxu0 0
        %1880 = vmatpush1.bf16.msra.mxu0 0
        %1881 = vmatprep.subr.bf16.mxu0 0
        %1882 = vmatpush1.bf16.msra.mxu0 0
        %1883 = vmatprep.subr.bf16.mxu0 0
        %1884 = vmatpush1.bf16.msra.mxu0 0
        %1885 = vmatprep.subr.bf16.mxu0 0
        %1886 = vmatpush1.bf16.msra.mxu0 0
        %1887 = vmatprep.subr.bf16.mxu0 0
        %1888 = vmatpush1.bf16.msra.mxu0 0
        %1889 = vmatprep.subr.bf16.mxu0 0
        %1890 = vmatpush1.bf16.msra.mxu0 0
        %1891 = vmatprep.subr.bf16.mxu0 0
        %1892 = vmatpush1.bf16.msra.mxu0 0
        %1893 = vmatprep.subr.bf16.mxu0 0
        %1894 = vmatpush1.bf16.msra.mxu0 0
        %1895 = vmatprep.subr.bf16.mxu0 0
        %1896 = vmatpush1.bf16.msra.mxu0 0
        %1897 = vmatprep.mubr.bf16.mxu0 0
        %1898 = vmatmul.mubr.bf16.gmra.mrb[0].mxu0 %v1814
        %v1899 = vpop.f32.mrb[0].mxu0
        %v1900 = vadd.f32 0.0, %v1899
        %v1901 = vpop.f32.mrb[0].mxu0
        %v1902 = vpop.f32.mrb[0].mxu0
        %v1903 = vadd.f32 0.0, %v1902
        %v1904 = vpop.f32.mrb[0].mxu0
        %1905 = vmatprep.mubr.bf16.mxu0 0
        %1906 = vmatmul.mubr.bf16.gmra.mrb[0].mxu0 %v1817
        %v1907 = vpop.f32.mrb[0].mxu0
        %v1908 = vadd.f32 0.0, %v1907
        %v1909 = vpop.f32.mrb[0].mxu0
        %v1910 = vpop.f32.mrb[0].mxu0
        %v1911 = vadd.f32 0.0, %v1910
        %v1912 = vpop.f32.mrb[0].mxu0
        %1913 = vmatprep.mubr.bf16.mxu0 0
        %1914 = vmatmul.mubr.bf16.gmra.mrb[0].mxu0 %v1820
        %v1915 = vpop.f32.mrb[0].mxu0
        %v1916 = vadd.f32 0.0, %v1915
        %v1917 = vpop.f32.mrb[0].mxu0
        %v1918 = vpop.f32.mrb[0].mxu0
        %v1919 = vadd.f32 0.0, %v1918
        %v1920 = vpop.f32.mrb[0].mxu0
        %1921 = vmatprep.mubr.bf16.mxu0 0
        %1922 = vmatmul.mubr.bf16.gmra.mrb[0].mxu0 %v1823
        %v1923 = vpop.f32.mrb[0].mxu0
        %v1924 = vadd.f32 0.0, %v1923
        %v1925 = vpop.f32.mrb[0].mxu0
        %v1926 = vpop.f32.mrb[0].mxu0
        %v1927 = vadd.f32 0.0, %v1926
        %v1928 = vpop.f32.mrb[0].mxu0
        %1929 = vmatprep.mubr.bf16.mxu0 0
        %1930 = vmatmul.mubr.bf16.gmra.mrb[0].mxu0 %v1826
        %v1931 = vpop.f32.mrb[0].mxu0
        %v1932 = vadd.f32 0.0, %v1931
        %v1933 = vpop.f32.mrb[0].mxu0
        %v1934 = vpop.f32.mrb[0].mxu0
        %v1935 = vadd.f32 0.0, %v1934
        %v1936 = vpop.f32.mrb[0].mxu0
        %1937 = vmatprep.mubr.bf16.mxu0 0
        %1938 = vmatmul.mubr.bf16.gmra.mrb[0].mxu0 %v1829
        %v1939 = vpop.f32.mrb[0].mxu0
        %v1940 = vadd.f32 0.0, %v1939
        %v1941 = vpop.f32.mrb[0].mxu0
        %v1942 = vpop.f32.mrb[0].mxu0
        %v1943 = vadd.f32 0.0, %v1942
        %v1944 = vpop.f32.mrb[0].mxu0
        %1945 = vmatprep.mubr.bf16.mxu0 0
        %1946 = vmatmul.mubr.bf16.gmra.mrb[0].mxu0 %v1832
        %v1947 = vpop.f32.mrb[0].mxu0
        %v1948 = vadd.f32 0.0, %v1947
        %v1949 = vpop.f32.mrb[0].mxu0
        %v1950 = vpop.f32.mrb[0].mxu0
        %v1951 = vadd.f32 0.0, %v1950
        %v1952 = vpop.f32.mrb[0].mxu0
        %1953 = vmatprep.mubr.bf16.mxu0 0
        %1954 = vmatmul.mubr.bf16.gmra.mrb[0].mxu0 %v1835
        %v1955 = vpop.f32.mrb[0].mxu0
        %v1956 = vadd.f32 0.0, %v1955
        %v1957 = vpop.f32.mrb[0].mxu0
        %v1958 = vpop.f32.mrb[0].mxu0
        %v1959 = vadd.f32 0.0, %v1958
        %v1960 = vpop.f32.mrb[0].mxu0
        %1961 = vmatprep.mubr.bf16.mxu0 0
        %1962 = vmatmul.mubr.bf16.gmra.mrb[0].mxu0 %v1838
        %v1963 = vpop.f32.mrb[0].mxu0
        %v1964 = vadd.f32 0.0, %v1963
        %v1965 = vpop.f32.mrb[0].mxu0
        %v1966 = vpop.f32.mrb[0].mxu0
        %v1967 = vadd.f32 0.0, %v1966
        %v1968 = vpop.f32.mrb[0].mxu0
        %1969 = vmatprep.mubr.bf16.mxu0 0
        %1970 = vmatmul.mubr.bf16.gmra.mrb[0].mxu0 %v1841
        %v1971 = vpop.f32.mrb[0].mxu0
        %v1972 = vadd.f32 0.0, %v1971
        %v1973 = vpop.f32.mrb[0].mxu0
        %v1974 = vpop.f32.mrb[0].mxu0
        %v1975 = vadd.f32 0.0, %v1974
        %v1976 = vpop.f32.mrb[0].mxu0
        %1977 = vmatprep.mubr.bf16.mxu0 0
        %1978 = vmatmul.mubr.bf16.gmra.mrb[0].mxu0 %v1844
        %v1979 = vpop.f32.mrb[0].mxu0
        %v1980 = vadd.f32 0.0, %v1979
        %v1981 = vpop.f32.mrb[0].mxu0
        %v1982 = vpop.f32.mrb[0].mxu0
        %v1983 = vadd.f32 0.0, %v1982
        %v1984 = vpop.f32.mrb[0].mxu0
        %1985 = vmatprep.mubr.bf16.mxu0 0
        %1986 = vmatmul.mubr.bf16.gmra.mrb[0].mxu0 %v1847
        %v1987 = vpop.f32.mrb[0].mxu0
        %v1988 = vadd.f32 0.0, %v1987
        %v1989 = vpop.f32.mrb[0].mxu0
        %v1990 = vpop.f32.mrb[0].mxu0
        %v1991 = vadd.f32 0.0, %v1990
        %v1992 = vpop.f32.mrb[0].mxu0
        %1993 = vmatprep.mubr.bf16.mxu0 0
        %1994 = vmatmul.mubr.bf16.gmra.mrb[0].mxu0 %v1850
        %v1995 = vpop.f32.mrb[0].mxu0
        %v1996 = vadd.f32 0.0, %v1995
        %v1997 = vpop.f32.mrb[0].mxu0
        %v1998 = vpop.f32.mrb[0].mxu0
        %v1999 = vadd.f32 0.0, %v1998
        %v2000 = vpop.f32.mrb[0].mxu0
        %2001 = vmatprep.mubr.bf16.mxu0 0
        %2002 = vmatmul.mubr.bf16.gmra.mrb[0].mxu0 %v1853
        %v2003 = vpop.f32.mrb[0].mxu0
        %v2004 = vadd.f32 0.0, %v2003
        %v2005 = vpop.f32.mrb[0].mxu0
        %v2006 = vpop.f32.mrb[0].mxu0
        %v2007 = vadd.f32 0.0, %v2006
        %v2008 = vpop.f32.mrb[0].mxu0
        %2009 = vmatprep.mubr.bf16.mxu0 0
        %2010 = vmatmul.mubr.bf16.gmra.mrb[0].mxu0 %v1856
        %v2011 = vpop.f32.mrb[0].mxu0
        %v2012 = vadd.f32 0.0, %v2011
        %v2013 = vpop.f32.mrb[0].mxu0
        %v2014 = vpop.f32.mrb[0].mxu0
        %v2015 = vadd.f32 0.0, %v2014
        %v2016 = vpop.f32.mrb[0].mxu0
        %2017 = vmatprep.mubr.bf16.mxu0 0
        %2018 = vmatmul.mubr.bf16.gmra.mrb[0].mxu0 %v1859
        %v2019 = vpop.f32.mrb[0].mxu0
        %v2020 = vadd.f32 0.0, %v2019
        %v2021 = vpop.f32.mrb[0].mxu0
        %v2022 = vpop.f32.mrb[0].mxu0
        %v2023 = vadd.f32 0.0, %v2022
        %v2024 = vpop.f32.mrb[0].mxu0
        %2025 = vdwg.mxu0
        %v2058 = vunpack.c.l.b16 %v1327
        %v2059 = vunpack.c.l.b16 %v1328
        %v2060 = vunpack.c.l.b16 %v1329
        %v2061 = vunpack.c.l.b16 %v1330
        %v2062 = vunpack.c.l.b16 %v1331
        %v2063 = vunpack.c.l.b16 %v1332
        %v2064 = vunpack.c.l.b16 %v1333
        %v2065 = vunpack.c.l.b16 %v1334
        %v2066 = vunpack.c.l.b16 %v1335
        %v2067 = vunpack.c.l.b16 %v1336
        %v2068 = vunpack.c.l.b16 %v1337
        %v2069 = vunpack.c.l.b16 %v1338
        %v2070 = vunpack.c.l.b16 %v1339
        %v2071 = vunpack.c.l.b16 %v1340
        %v2072 = vunpack.c.l.b16 %v1341
        %v2073 = vunpack.c.l.b16 %v1342
        %v2074 = vunpack.c.l.b16 %v1343
        %v2075 = vunpack.c.l.b16 %v1344
        %v2076 = vunpack.c.l.b16 %v1345
        %v2077 = vunpack.c.l.b16 %v1346
        %v2078 = vunpack.c.l.b16 %v1347
        %v2079 = vunpack.c.l.b16 %v1348
        %v2080 = vunpack.c.l.b16 %v1349
        %v2081 = vunpack.c.l.b16 %v1350
        %v2082 = vunpack.c.l.b16 %v1351
        %v2083 = vunpack.c.l.b16 %v1352
        %v2084 = vunpack.c.l.b16 %v1353
        %v2085 = vunpack.c.l.b16 %v1354
        %v2086 = vunpack.c.l.b16 %v1355
        %v2087 = vunpack.c.l.b16 %v1356
        %v2088 = vunpack.c.l.b16 %v1357
        %v2089 = vunpack.c.l.b16 %v1358
        %v2090 = vpack.c.b16 %v2059, %v2058
        %v2091 = vpack.c.b16 %v2061, %v2060
        %v2092 = vpack.c.b16 %v2063, %v2062
        %v2093 = vpack.c.b16 %v2065, %v2064
        %v2094 = vpack.c.b16 %v2067, %v2066
        %v2095 = vpack.c.b16 %v2069, %v2068
        %v2096 = vpack.c.b16 %v2071, %v2070
        %v2097 = vpack.c.b16 %v2073, %v2072
        %v2098 = vpack.c.b16 %v2075, %v2074
        %v2099 = vpack.c.b16 %v2077, %v2076
        %v2100 = vpack.c.b16 %v2079, %v2078
        %v2101 = vpack.c.b16 %v2081, %v2080
        %v2102 = vpack.c.b16 %v2083, %v2082
        %v2103 = vpack.c.b16 %v2085, %v2084
        %v2104 = vpack.c.b16 %v2087, %v2086
        %v2105 = vpack.c.b16 %v2089, %v2088
        %v2107 = vsel %vm315, %v2090, 0
        %v2110 = vsel %vm315, %v2091, 0
        %v2113 = vsel %vm315, %v2092, 0
        %v2116 = vsel %vm315, %v2093, 0
        %v2119 = vsel %vm315, %v2094, 0
        %v2122 = vsel %vm315, %v2095, 0
        %v2125 = vsel %vm315, %v2096, 0
        %v2128 = vsel %vm315, %v2097, 0
        %v2131 = vsel %vm315, %v2098, 0
        %v2134 = vsel %vm315, %v2099, 0
        %v2137 = vsel %vm315, %v2100, 0
        %v2140 = vsel %vm315, %v2101, 0
        %v2143 = vsel %vm315, %v2102, 0
        %v2146 = vsel %vm315, %v2103, 0
        %v2149 = vsel %vm315, %v2104, 0
        %v2152 = vsel %vm315, %v2105, 0
        %v2155 = vsel %vm1861, %v1359, 0
        %2157 = vmatprep.subr.bf16.mxu0 0
        %2158 = vmatpush1.bf16.msra.mxu0 %v2155
        %2159 = vmatprep.subr.bf16.mxu0 0
        %2160 = vmatpush1.bf16.msra.mxu0 0
        %2161 = vmatprep.subr.bf16.mxu0 0
        %2162 = vmatpush1.bf16.msra.mxu0 0
        %2163 = vmatprep.subr.bf16.mxu0 0
        %2164 = vmatpush1.bf16.msra.mxu0 0
        %2165 = vmatprep.subr.bf16.mxu0 0
        %2166 = vmatpush1.bf16.msra.mxu0 0
        %2167 = vmatprep.subr.bf16.mxu0 0
        %2168 = vmatpush1.bf16.msra.mxu0 0
        %2169 = vmatprep.subr.bf16.mxu0 0
        %2170 = vmatpush1.bf16.msra.mxu0 0
        %2171 = vmatprep.subr.bf16.mxu0 0
        %2172 = vmatpush1.bf16.msra.mxu0 0
        %2173 = vmatprep.subr.bf16.mxu0 0
        %2174 = vmatpush1.bf16.msra.mxu0 0
        %2175 = vmatprep.subr.bf16.mxu0 0
        %2176 = vmatpush1.bf16.msra.mxu0 0
        %2177 = vmatprep.subr.bf16.mxu0 0
        %2178 = vmatpush1.bf16.msra.mxu0 0
        %2179 = vmatprep.subr.bf16.mxu0 0
        %2180 = vmatpush1.bf16.msra.mxu0 0
        %2181 = vmatprep.subr.bf16.mxu0 0
        %2182 = vmatpush1.bf16.msra.mxu0 0
        %2183 = vmatprep.subr.bf16.mxu0 0
        %2184 = vmatpush1.bf16.msra.mxu0 0
        %2185 = vmatprep.subr.bf16.mxu0 0
        %2186 = vmatpush1.bf16.msra.mxu0 0
        %2187 = vmatprep.subr.bf16.mxu0 0
        %2188 = vmatpush1.bf16.msra.mxu0 0
        %2189 = vmatprep.mubr.bf16.mxu0 0
        %2190 = vmatmul.mubr.bf16.gmra.mrb[0].mxu0 %v2107
        %v2191 = vpop.f32.mrb[0].mxu0
        %v2192 = vadd.f32 %v1900, %v2191
        %v2193 = vpop.f32.mrb[0].mxu0
        %v2194 = vpop.f32.mrb[0].mxu0
        %v2195 = vadd.f32 %v1903, %v2194
        %v2196 = vpop.f32.mrb[0].mxu0
        %2197 = vmatprep.mubr.bf16.mxu0 0
        %2198 = vmatmul.mubr.bf16.gmra.mrb[0].mxu0 %v2110
        %v2199 = vpop.f32.mrb[0].mxu0
        %v2200 = vadd.f32 %v1908, %v2199
        %v2201 = vpop.f32.mrb[0].mxu0
        %v2202 = vpop.f32.mrb[0].mxu0
        %v2203 = vadd.f32 %v1911, %v2202
        %v2204 = vpop.f32.mrb[0].mxu0
        %2205 = vmatprep.mubr.bf16.mxu0 0
        %2206 = vmatmul.mubr.bf16.gmra.mrb[0].mxu0 %v2113
        %v2207 = vpop.f32.mrb[0].mxu0
        %v2208 = vadd.f32 %v1916, %v2207
        %v2209 = vpop.f32.mrb[0].mxu0
        %v2210 = vpop.f32.mrb[0].mxu0
        %v2211 = vadd.f32 %v1919, %v2210
        %v2212 = vpop.f32.mrb[0].mxu0
        %2213 = vmatprep.mubr.bf16.mxu0 0
        %2214 = vmatmul.mubr.bf16.gmra.mrb[0].mxu0 %v2116
        %v2215 = vpop.f32.mrb[0].mxu0
        %v2216 = vadd.f32 %v1924, %v2215
        %v2217 = vpop.f32.mrb[0].mxu0
        %v2218 = vpop.f32.mrb[0].mxu0
        %v2219 = vadd.f32 %v1927, %v2218
        %v2220 = vpop.f32.mrb[0].mxu0
        %2221 = vmatprep.mubr.bf16.mxu0 0
        %2222 = vmatmul.mubr.bf16.gmra.mrb[0].mxu0 %v2119
        %v2223 = vpop.f32.mrb[0].mxu0
        %v2224 = vadd.f32 %v1932, %v2223
        %v2225 = vpop.f32.mrb[0].mxu0
        %v2226 = vpop.f32.mrb[0].mxu0
        %v2227 = vadd.f32 %v1935, %v2226
        %v2228 = vpop.f32.mrb[0].mxu0
        %2229 = vmatprep.mubr.bf16.mxu0 0
        %2230 = vmatmul.mubr.bf16.gmra.mrb[0].mxu0 %v2122
        %v2231 = vpop.f32.mrb[0].mxu0
        %v2232 = vadd.f32 %v1940, %v2231
        %v2233 = vpop.f32.mrb[0].mxu0
        %v2234 = vpop.f32.mrb[0].mxu0
        %v2235 = vadd.f32 %v1943, %v2234
        %v2236 = vpop.f32.mrb[0].mxu0
        %2237 = vmatprep.mubr.bf16.mxu0 0
        %2238 = vmatmul.mubr.bf16.gmra.mrb[0].mxu0 %v2125
        %v2239 = vpop.f32.mrb[0].mxu0
        %v2240 = vadd.f32 %v1948, %v2239
        %v2241 = vpop.f32.mrb[0].mxu0
        %v2242 = vpop.f32.mrb[0].mxu0
        %v2243 = vadd.f32 %v1951, %v2242
        %v2244 = vpop.f32.mrb[0].mxu0
        %2245 = vmatprep.mubr.bf16.mxu0 0
        %2246 = vmatmul.mubr.bf16.gmra.mrb[0].mxu0 %v2128
        %v2247 = vpop.f32.mrb[0].mxu0
        %v2248 = vadd.f32 %v1956, %v2247
        %v2249 = vpop.f32.mrb[0].mxu0
        %v2250 = vpop.f32.mrb[0].mxu0
        %v2251 = vadd.f32 %v1959, %v2250
        %v2252 = vpop.f32.mrb[0].mxu0
        %2253 = vmatprep.mubr.bf16.mxu0 0
        %2254 = vmatmul.mubr.bf16.gmra.mrb[0].mxu0 %v2131
        %v2255 = vpop.f32.mrb[0].mxu0
        %v2256 = vadd.f32 %v1964, %v2255
        %v2257 = vpop.f32.mrb[0].mxu0
        %v2258 = vpop.f32.mrb[0].mxu0
        %v2259 = vadd.f32 %v1967, %v2258
        %v2260 = vpop.f32.mrb[0].mxu0
        %2261 = vmatprep.mubr.bf16.mxu0 0
        %2262 = vmatmul.mubr.bf16.gmra.mrb[0].mxu0 %v2134
        %v2263 = vpop.f32.mrb[0].mxu0
        %v2264 = vadd.f32 %v1972, %v2263
        %v2265 = vpop.f32.mrb[0].mxu0
        %v2266 = vpop.f32.mrb[0].mxu0
        %v2267 = vadd.f32 %v1975, %v2266
        %v2268 = vpop.f32.mrb[0].mxu0
        %2269 = vmatprep.mubr.bf16.mxu0 0
        %2270 = vmatmul.mubr.bf16.gmra.mrb[0].mxu0 %v2137
        %v2271 = vpop.f32.mrb[0].mxu0
        %v2272 = vadd.f32 %v1980, %v2271
        %v2273 = vpop.f32.mrb[0].mxu0
        %v2274 = vpop.f32.mrb[0].mxu0
        %v2275 = vadd.f32 %v1983, %v2274
        %v2276 = vpop.f32.mrb[0].mxu0
        %2277 = vmatprep.mubr.bf16.mxu0 0
        %2278 = vmatmul.mubr.bf16.gmra.mrb[0].mxu0 %v2140
        %v2279 = vpop.f32.mrb[0].mxu0
        %v2280 = vadd.f32 %v1988, %v2279
        %v2281 = vpop.f32.mrb[0].mxu0
        %v2282 = vpop.f32.mrb[0].mxu0
        %v2283 = vadd.f32 %v1991, %v2282
        %v2284 = vpop.f32.mrb[0].mxu0
        %2285 = vmatprep.mubr.bf16.mxu0 0
        %2286 = vmatmul.mubr.bf16.gmra.mrb[0].mxu0 %v2143
        %v2287 = vpop.f32.mrb[0].mxu0
        %v2288 = vadd.f32 %v1996, %v2287
        %v2289 = vpop.f32.mrb[0].mxu0
        %v2290 = vpop.f32.mrb[0].mxu0
        %v2291 = vadd.f32 %v1999, %v2290
        %v2292 = vpop.f32.mrb[0].mxu0
        %2293 = vmatprep.mubr.bf16.mxu0 0
        %2294 = vmatmul.mubr.bf16.gmra.mrb[0].mxu0 %v2146
        %v2295 = vpop.f32.mrb[0].mxu0
        %v2296 = vadd.f32 %v2004, %v2295
        %v2297 = vpop.f32.mrb[0].mxu0
        %v2298 = vpop.f32.mrb[0].mxu0
        %v2299 = vadd.f32 %v2007, %v2298
        %v2300 = vpop.f32.mrb[0].mxu0
        %2301 = vmatprep.mubr.bf16.mxu0 0
        %2302 = vmatmul.mubr.bf16.gmra.mrb[0].mxu0 %v2149
        %v2303 = vpop.f32.mrb[0].mxu0
        %v2304 = vadd.f32 %v2012, %v2303
        %v2305 = vpop.f32.mrb[0].mxu0
        %v2306 = vpop.f32.mrb[0].mxu0
        %v2307 = vadd.f32 %v2015, %v2306
        %v2308 = vpop.f32.mrb[0].mxu0
        %2309 = vmatprep.mubr.bf16.mxu0 0
        %2310 = vmatmul.mubr.bf16.gmra.mrb[0].mxu0 %v2152
        %v2311 = vpop.f32.mrb[0].mxu0
        %v2312 = vadd.f32 %v2020, %v2311
        %v2313 = vpop.f32.mrb[0].mxu0
        %v2314 = vpop.f32.mrb[0].mxu0
        %v2315 = vadd.f32 %v2023, %v2314
        %v2316 = vpop.f32.mrb[0].mxu0
        %2317 = vdwg.mxu0
        %v2318 = vld [vmem:[#allocation2] sm:$0xe]
        %v2319 = vld [vmem:[#allocation2 + $0xc] sm:$0xe]
        %v2320 = vld [vmem:[#allocation2 + $0x18] sm:$0xe]
        %v2321 = vld [vmem:[#allocation2 + $0x24] sm:$0xe]
        %v2322 = vld [vmem:[#allocation2 + $0x30] sm:$0xe]
        %v2323 = vld [vmem:[#allocation2 + $0x3c] sm:$0xe]
        %v2324 = vld [vmem:[#allocation2 + $0x48] sm:$0xe]
        %v2325 = vld [vmem:[#allocation2 + $0x54] sm:$0xe]
        %v2326 = vld [vmem:[#allocation2 + $0x60] sm:$0xe]
        %v2327 = vld [vmem:[#allocation2 + $0x6c] sm:$0xe]
        %v2328 = vld [vmem:[#allocation2 + $0x78] sm:$0xe]
        %v2329 = vld [vmem:[#allocation2 + $0x84] sm:$0xe]
        %v2330 = vld [vmem:[#allocation2 + $0x90] sm:$0xe]
        %v2331 = vld [vmem:[#allocation2 + $0x9c] sm:$0xe]
        %v2332 = vld [vmem:[#allocation2 + $0xa8] sm:$0xe]
        %v2333 = vld [vmem:[#allocation2 + $0xb4] sm:$0xe]
        %vm2366 = vcmask 1042432
        %vm2367 = vcmask 1046532
        %vm2368 = vmor %vm2366, %vm2367
        %v2369 = vrot.slane %v2318, 5
        %v2370 = vrot.slane %v2369, 4
        %v2371 = vrot.slane %v1328, 5
        %v2372 = vsel %vm2368, %v2370, %v2371
        %v2373 = vrot.slane %v2371, 4
        %v2374 = vrot.slane %v1360, 5
        %v2375 = vsel %vm2368, %v2373, %v2374
        %v2376 = vrot.slane %v2319, 5
        %v2377 = vrot.slane %v2376, 4
        %v2378 = vrot.slane %v1330, 5
        %v2379 = vsel %vm2368, %v2377, %v2378
        %v2380 = vrot.slane %v2378, 4
        %v2381 = vrot.slane %v1361, 5
        %v2382 = vsel %vm2368, %v2380, %v2381
        %v2383 = vrot.slane %v2320, 5
        %v2384 = vrot.slane %v2383, 4
        %v2385 = vrot.slane %v1332, 5
        %v2386 = vsel %vm2368, %v2384, %v2385
        %v2387 = vrot.slane %v2385, 4
        %v2388 = vrot.slane %v1362, 5
        %v2389 = vsel %vm2368, %v2387, %v2388
        %v2390 = vrot.slane %v2321, 5
        %v2391 = vrot.slane %v2390, 4
        %v2392 = vrot.slane %v1334, 5
        %v2393 = vsel %vm2368, %v2391, %v2392
        %v2394 = vrot.slane %v2392, 4
        %v2395 = vrot.slane %v1363, 5
        %v2396 = vsel %vm2368, %v2394, %v2395
        %v2397 = vrot.slane %v2322, 5
        %v2398 = vrot.slane %v2397, 4
        %v2399 = vrot.slane %v1336, 5
        %v2400 = vsel %vm2368, %v2398, %v2399
        %v2401 = vrot.slane %v2399, 4
        %v2402 = vrot.slane %v1364, 5
        %v2403 = vsel %vm2368, %v2401, %v2402
        %v2404 = vrot.slane %v2323, 5
        %v2405 = vrot.slane %v2404, 4
        %v2406 = vrot.slane %v1338, 5
        %v2407 = vsel %vm2368, %v2405, %v2406
        %v2408 = vrot.slane %v2406, 4
        %v2409 = vrot.slane %v1365, 5
        %v2410 = vsel %vm2368, %v2408, %v2409
        %v2411 = vrot.slane %v2324, 5
        %v2412 = vrot.slane %v2411, 4
        %v2413 = vrot.slane %v1340, 5
        %v2414 = vsel %vm2368, %v2412, %v2413
        %v2415 = vrot.slane %v2413, 4
        %v2416 = vrot.slane %v1366, 5
        %v2417 = vsel %vm2368, %v2415, %v2416
        %v2418 = vrot.slane %v2325, 5
        %v2419 = vrot.slane %v2418, 4
        %v2420 = vrot.slane %v1342, 5
        %v2421 = vsel %vm2368, %v2419, %v2420
        %v2422 = vrot.slane %v2420, 4
        %v2423 = vrot.slane %v1367, 5
        %v2424 = vsel %vm2368, %v2422, %v2423
        %v2425 = vrot.slane %v2326, 5
        %v2426 = vrot.slane %v2425, 4
        %v2427 = vrot.slane %v1344, 5
        %v2428 = vsel %vm2368, %v2426, %v2427
        %v2429 = vrot.slane %v2427, 4
        %v2430 = vrot.slane %v1368, 5
        %v2431 = vsel %vm2368, %v2429, %v2430
        %v2432 = vrot.slane %v2327, 5
        %v2433 = vrot.slane %v2432, 4
        %v2434 = vrot.slane %v1346, 5
        %v2435 = vsel %vm2368, %v2433, %v2434
        %v2436 = vrot.slane %v2434, 4
        %v2437 = vrot.slane %v1369, 5
        %v2438 = vsel %vm2368, %v2436, %v2437
        %v2439 = vrot.slane %v2328, 5
        %v2440 = vrot.slane %v2439, 4
        %v2441 = vrot.slane %v1348, 5
        %v2442 = vsel %vm2368, %v2440, %v2441
        %v2443 = vrot.slane %v2441, 4
        %v2444 = vrot.slane %v1370, 5
        %v2445 = vsel %vm2368, %v2443, %v2444
        %v2446 = vrot.slane %v2329, 5
        %v2447 = vrot.slane %v2446, 4
        %v2448 = vrot.slane %v1350, 5
        %v2449 = vsel %vm2368, %v2447, %v2448
        %v2450 = vrot.slane %v2448, 4
        %v2451 = vrot.slane %v1371, 5
        %v2452 = vsel %vm2368, %v2450, %v2451
        %v2453 = vrot.slane %v2330, 5
        %v2454 = vrot.slane %v2453, 4
        %v2455 = vrot.slane %v1352, 5
        %v2456 = vsel %vm2368, %v2454, %v2455
        %v2457 = vrot.slane %v2455, 4
        %v2458 = vrot.slane %v1372, 5
        %v2459 = vsel %vm2368, %v2457, %v2458
        %v2460 = vrot.slane %v2331, 5
        %v2461 = vrot.slane %v2460, 4
        %v2462 = vrot.slane %v1354, 5
        %v2463 = vsel %vm2368, %v2461, %v2462
        %v2464 = vrot.slane %v2462, 4
        %v2465 = vrot.slane %v1373, 5
        %v2466 = vsel %vm2368, %v2464, %v2465
        %v2467 = vrot.slane %v2332, 5
        %v2468 = vrot.slane %v2467, 4
        %v2469 = vrot.slane %v1356, 5
        %v2470 = vsel %vm2368, %v2468, %v2469
        %v2471 = vrot.slane %v2469, 4
        %v2472 = vrot.slane %v1374, 5
        %v2473 = vsel %vm2368, %v2471, %v2472
        %v2474 = vrot.slane %v2333, 5
        %v2475 = vrot.slane %v2474, 4
        %v2476 = vrot.slane %v1358, 5
        %v2477 = vsel %vm2368, %v2475, %v2476
        %v2478 = vrot.slane %v2476, 4
        %v2479 = vrot.slane %v1375, 5
        %v2480 = vsel %vm2368, %v2478, %v2479
        %s2481 = scalar_lea.vmem %s4, 4
        %v2482 = vld [vmem:[%s2481] sm:$0x3]
        %v2483 = vunpack.c.l.b16 %v2372
        %v2484 = vunpack.c.l.b16 %v2375
        %v2485 = vunpack.c.l.b16 %v2379
        %v2486 = vunpack.c.l.b16 %v2382
        %v2487 = vunpack.c.l.b16 %v2386
        %v2488 = vunpack.c.l.b16 %v2389
        %v2489 = vunpack.c.l.b16 %v2393
        %v2490 = vunpack.c.l.b16 %v2396
        %v2491 = vunpack.c.l.b16 %v2400
        %v2492 = vunpack.c.l.b16 %v2403
        %v2493 = vunpack.c.l.b16 %v2407
        %v2494 = vunpack.c.l.b16 %v2410
        %v2495 = vunpack.c.l.b16 %v2414
        %v2496 = vunpack.c.l.b16 %v2417
        %v2497 = vunpack.c.l.b16 %v2421
        %v2498 = vunpack.c.l.b16 %v2424
        %v2499 = vunpack.c.l.b16 %v2428
        %v2500 = vunpack.c.l.b16 %v2431
        %v2501 = vunpack.c.l.b16 %v2435
        %v2502 = vunpack.c.l.b16 %v2438
        %v2503 = vunpack.c.l.b16 %v2442
        %v2504 = vunpack.c.l.b16 %v2445
        %v2505 = vunpack.c.l.b16 %v2449
        %v2506 = vunpack.c.l.b16 %v2452
        %v2507 = vunpack.c.l.b16 %v2456
        %v2508 = vunpack.c.l.b16 %v2459
        %v2509 = vunpack.c.l.b16 %v2463
        %v2510 = vunpack.c.l.b16 %v2466
        %v2511 = vunpack.c.l.b16 %v2470
        %v2512 = vunpack.c.l.b16 %v2473
        %v2513 = vunpack.c.l.b16 %v2477
        %v2514 = vunpack.c.l.b16 %v2480
        %v2515 = vpack.c.b16 %v2484, %v2483
        %v2516 = vpack.c.b16 %v2486, %v2485
        %v2517 = vpack.c.b16 %v2488, %v2487
        %v2518 = vpack.c.b16 %v2490, %v2489
        %v2519 = vpack.c.b16 %v2492, %v2491
        %v2520 = vpack.c.b16 %v2494, %v2493
        %v2521 = vpack.c.b16 %v2496, %v2495
        %v2522 = vpack.c.b16 %v2498, %v2497
        %v2523 = vpack.c.b16 %v2500, %v2499
        %v2524 = vpack.c.b16 %v2502, %v2501
        %v2525 = vpack.c.b16 %v2504, %v2503
        %v2526 = vpack.c.b16 %v2506, %v2505
        %v2527 = vpack.c.b16 %v2508, %v2507
        %v2528 = vpack.c.b16 %v2510, %v2509
        %v2529 = vpack.c.b16 %v2512, %v2511
        %v2530 = vpack.c.b16 %v2514, %v2513
        %v2532 = vsel %vm315, %v2515, 0
        %v2535 = vsel %vm315, %v2516, 0
        %v2538 = vsel %vm315, %v2517, 0
        %v2541 = vsel %vm315, %v2518, 0
        %v2544 = vsel %vm315, %v2519, 0
        %v2547 = vsel %vm315, %v2520, 0
        %v2550 = vsel %vm315, %v2521, 0
        %v2553 = vsel %vm315, %v2522, 0
        %v2556 = vsel %vm315, %v2523, 0
        %v2559 = vsel %vm315, %v2524, 0
        %v2562 = vsel %vm315, %v2525, 0
        %v2565 = vsel %vm315, %v2526, 0
        %v2568 = vsel %vm315, %v2527, 0
        %v2571 = vsel %vm315, %v2528, 0
        %v2574 = vsel %vm315, %v2529, 0
        %v2577 = vsel %vm315, %v2530, 0
        %v2580 = vsel %vm1861, %v2482, 0
        %2582 = vmatprep.subr.bf16.mxu0 0
        %2583 = vmatpush1.bf16.msra.mxu0 %v2580
        %2584 = vmatprep.subr.bf16.mxu0 0
        %2585 = vmatpush1.bf16.msra.mxu0 0
        %2586 = vmatprep.subr.bf16.mxu0 0
        %2587 = vmatpush1.bf16.msra.mxu0 0
        %2588 = vmatprep.subr.bf16.mxu0 0
        %2589 = vmatpush1.bf16.msra.mxu0 0
        %2590 = vmatprep.subr.bf16.mxu0 0
        %2591 = vmatpush1.bf16.msra.mxu0 0
        %2592 = vmatprep.subr.bf16.mxu0 0
        %2593 = vmatpush1.bf16.msra.mxu0 0
        %2594 = vmatprep.subr.bf16.mxu0 0
        %2595 = vmatpush1.bf16.msra.mxu0 0
        %2596 = vmatprep.subr.bf16.mxu0 0
        %2597 = vmatpush1.bf16.msra.mxu0 0
        %2598 = vmatprep.subr.bf16.mxu0 0
        %2599 = vmatpush1.bf16.msra.mxu0 0
        %2600 = vmatprep.subr.bf16.mxu0 0
        %2601 = vmatpush1.bf16.msra.mxu0 0
        %2602 = vmatprep.subr.bf16.mxu0 0
        %2603 = vmatpush1.bf16.msra.mxu0 0
        %2604 = vmatprep.subr.bf16.mxu0 0
        %2605 = vmatpush1.bf16.msra.mxu0 0
        %2606 = vmatprep.subr.bf16.mxu0 0
        %2607 = vmatpush1.bf16.msra.mxu0 0
        %2608 = vmatprep.subr.bf16.mxu0 0
        %2609 = vmatpush1.bf16.msra.mxu0 0
        %2610 = vmatprep.subr.bf16.mxu0 0
        %2611 = vmatpush1.bf16.msra.mxu0 0
        %2612 = vmatprep.subr.bf16.mxu0 0
        %2613 = vmatpush1.bf16.msra.mxu0 0
        %2614 = vmatprep.mubr.bf16.mxu0 0
        %2615 = vmatmul.mubr.bf16.gmra.mrb[0].mxu0 %v2532
        %v2616 = vpop.f32.mrb[0].mxu0
        %v2617 = vadd.f32 0.0, %v2616
        %v2618 = vpop.f32.mrb[0].mxu0
        %v2619 = vpop.f32.mrb[0].mxu0
        %v2620 = vadd.f32 0.0, %v2619
        %v2621 = vpop.f32.mrb[0].mxu0
        %2622 = vmatprep.mubr.bf16.mxu0 0
        %2623 = vmatmul.mubr.bf16.gmra.mrb[0].mxu0 %v2535
        %v2624 = vpop.f32.mrb[0].mxu0
        %v2625 = vadd.f32 0.0, %v2624
        %v2626 = vpop.f32.mrb[0].mxu0
        %v2627 = vpop.f32.mrb[0].mxu0
        %v2628 = vadd.f32 0.0, %v2627
        %v2629 = vpop.f32.mrb[0].mxu0
        %2630 = vmatprep.mubr.bf16.mxu0 0
        %2631 = vmatmul.mubr.bf16.gmra.mrb[0].mxu0 %v2538
        %v2632 = vpop.f32.mrb[0].mxu0
        %v2633 = vadd.f32 0.0, %v2632
        %v2634 = vpop.f32.mrb[0].mxu0
        %v2635 = vpop.f32.mrb[0].mxu0
        %v2636 = vadd.f32 0.0, %v2635
        %v2637 = vpop.f32.mrb[0].mxu0
        %2638 = vmatprep.mubr.bf16.mxu0 0
        %2639 = vmatmul.mubr.bf16.gmra.mrb[0].mxu0 %v2541
        %v2640 = vpop.f32.mrb[0].mxu0
        %v2641 = vadd.f32 0.0, %v2640
        %v2642 = vpop.f32.mrb[0].mxu0
        %v2643 = vpop.f32.mrb[0].mxu0
        %v2644 = vadd.f32 0.0, %v2643
        %v2645 = vpop.f32.mrb[0].mxu0
        %2646 = vmatprep.mubr.bf16.mxu0 0
        %2647 = vmatmul.mubr.bf16.gmra.mrb[0].mxu0 %v2544
        %v2648 = vpop.f32.mrb[0].mxu0
        %v2649 = vadd.f32 0.0, %v2648
        %v2650 = vpop.f32.mrb[0].mxu0
        %v2651 = vpop.f32.mrb[0].mxu0
        %v2652 = vadd.f32 0.0, %v2651
        %v2653 = vpop.f32.mrb[0].mxu0
        %2654 = vmatprep.mubr.bf16.mxu0 0
        %2655 = vmatmul.mubr.bf16.gmra.mrb[0].mxu0 %v2547
        %v2656 = vpop.f32.mrb[0].mxu0
        %v2657 = vadd.f32 0.0, %v2656
        %v2658 = vpop.f32.mrb[0].mxu0
        %v2659 = vpop.f32.mrb[0].mxu0
        %v2660 = vadd.f32 0.0, %v2659
        %v2661 = vpop.f32.mrb[0].mxu0
        %2662 = vmatprep.mubr.bf16.mxu0 0
        %2663 = vmatmul.mubr.bf16.gmra.mrb[0].mxu0 %v2550
        %v2664 = vpop.f32.mrb[0].mxu0
        %v2665 = vadd.f32 0.0, %v2664
        %v2666 = vpop.f32.mrb[0].mxu0
        %v2667 = vpop.f32.mrb[0].mxu0
        %v2668 = vadd.f32 0.0, %v2667
        %v2669 = vpop.f32.mrb[0].mxu0
        %2670 = vmatprep.mubr.bf16.mxu0 0
        %2671 = vmatmul.mubr.bf16.gmra.mrb[0].mxu0 %v2553
        %v2672 = vpop.f32.mrb[0].mxu0
        %v2673 = vadd.f32 0.0, %v2672
        %v2674 = vpop.f32.mrb[0].mxu0
        %v2675 = vpop.f32.mrb[0].mxu0
        %v2676 = vadd.f32 0.0, %v2675
        %v2677 = vpop.f32.mrb[0].mxu0
        %2678 = vmatprep.mubr.bf16.mxu0 0
        %2679 = vmatmul.mubr.bf16.gmra.mrb[0].mxu0 %v2556
        %v2680 = vpop.f32.mrb[0].mxu0
        %v2681 = vadd.f32 0.0, %v2680
        %v2682 = vpop.f32.mrb[0].mxu0
        %v2683 = vpop.f32.mrb[0].mxu0
        %v2684 = vadd.f32 0.0, %v2683
        %v2685 = vpop.f32.mrb[0].mxu0
        %2686 = vmatprep.mubr.bf16.mxu0 0
        %2687 = vmatmul.mubr.bf16.gmra.mrb[0].mxu0 %v2559
        %v2688 = vpop.f32.mrb[0].mxu0
        %v2689 = vadd.f32 0.0, %v2688
        %v2690 = vpop.f32.mrb[0].mxu0
        %v2691 = vpop.f32.mrb[0].mxu0
        %v2692 = vadd.f32 0.0, %v2691
        %v2693 = vpop.f32.mrb[0].mxu0
        %2694 = vmatprep.mubr.bf16.mxu0 0
        %2695 = vmatmul.mubr.bf16.gmra.mrb[0].mxu0 %v2562
        %v2696 = vpop.f32.mrb[0].mxu0
        %v2697 = vadd.f32 0.0, %v2696
        %v2698 = vpop.f32.mrb[0].mxu0
        %v2699 = vpop.f32.mrb[0].mxu0
        %v2700 = vadd.f32 0.0, %v2699
        %v2701 = vpop.f32.mrb[0].mxu0
        %2702 = vmatprep.mubr.bf16.mxu0 0
        %2703 = vmatmul.mubr.bf16.gmra.mrb[0].mxu0 %v2565
        %v2704 = vpop.f32.mrb[0].mxu0
        %v2705 = vadd.f32 0.0, %v2704
        %v2706 = vpop.f32.mrb[0].mxu0
        %v2707 = vpop.f32.mrb[0].mxu0
        %v2708 = vadd.f32 0.0, %v2707
        %v2709 = vpop.f32.mrb[0].mxu0
        %2710 = vmatprep.mubr.bf16.mxu0 0
        %2711 = vmatmul.mubr.bf16.gmra.mrb[0].mxu0 %v2568
        %v2712 = vpop.f32.mrb[0].mxu0
        %v2713 = vadd.f32 0.0, %v2712
        %v2714 = vpop.f32.mrb[0].mxu0
        %v2715 = vpop.f32.mrb[0].mxu0
        %v2716 = vadd.f32 0.0, %v2715
        %v2717 = vpop.f32.mrb[0].mxu0
        %2718 = vmatprep.mubr.bf16.mxu0 0
        %2719 = vmatmul.mubr.bf16.gmra.mrb[0].mxu0 %v2571
        %v2720 = vpop.f32.mrb[0].mxu0
        %v2721 = vadd.f32 0.0, %v2720
        %v2722 = vpop.f32.mrb[0].mxu0
        %v2723 = vpop.f32.mrb[0].mxu0
        %v2724 = vadd.f32 0.0, %v2723
        %v2725 = vpop.f32.mrb[0].mxu0
        %2726 = vmatprep.mubr.bf16.mxu0 0
        %2727 = vmatmul.mubr.bf16.gmra.mrb[0].mxu0 %v2574
        %v2728 = vpop.f32.mrb[0].mxu0
        %v2729 = vadd.f32 0.0, %v2728
        %v2730 = vpop.f32.mrb[0].mxu0
        %v2731 = vpop.f32.mrb[0].mxu0
        %v2732 = vadd.f32 0.0, %v2731
        %v2733 = vpop.f32.mrb[0].mxu0
        %2734 = vmatprep.mubr.bf16.mxu0 0
        %2735 = vmatmul.mubr.bf16.gmra.mrb[0].mxu0 %v2577
        %v2736 = vpop.f32.mrb[0].mxu0
        %v2737 = vadd.f32 0.0, %v2736
        %v2738 = vpop.f32.mrb[0].mxu0
        %v2739 = vpop.f32.mrb[0].mxu0
        %v2740 = vadd.f32 0.0, %v2739
        %v2741 = vpop.f32.mrb[0].mxu0
        %2742 = vdwg.mxu0
        %v2743 = vadd.f32 %v2192, %v2617
        %v2744 = vadd.f32 %v2195, %v2620
        %v2745 = vadd.f32 %v2200, %v2625
        %v2746 = vadd.f32 %v2203, %v2628
        %v2747 = vadd.f32 %v2208, %v2633
        %v2748 = vadd.f32 %v2211, %v2636
        %v2749 = vadd.f32 %v2216, %v2641
        %v2750 = vadd.f32 %v2219, %v2644
        %v2751 = vadd.f32 %v2224, %v2649
        %v2752 = vadd.f32 %v2227, %v2652
        %v2753 = vadd.f32 %v2232, %v2657
        %v2754 = vadd.f32 %v2235, %v2660
        %v2755 = vadd.f32 %v2240, %v2665
        %v2756 = vadd.f32 %v2243, %v2668
        %v2757 = vadd.f32 %v2248, %v2673
        %v2758 = vadd.f32 %v2251, %v2676
        %v2759 = vadd.f32 %v2256, %v2681
        %v2760 = vadd.f32 %v2259, %v2684
        %v2761 = vadd.f32 %v2264, %v2689
        %v2762 = vadd.f32 %v2267, %v2692
        %v2763 = vadd.f32 %v2272, %v2697
        %v2764 = vadd.f32 %v2275, %v2700
        %v2765 = vadd.f32 %v2280, %v2705
        %v2766 = vadd.f32 %v2283, %v2708
        %v2767 = vadd.f32 %v2288, %v2713
        %v2768 = vadd.f32 %v2291, %v2716
        %v2769 = vadd.f32 %v2296, %v2721
        %v2770 = vadd.f32 %v2299, %v2724
        %v2771 = vadd.f32 %v2304, %v2729
        %v2772 = vadd.f32 %v2307, %v2732
        %v2773 = vadd.f32 %v2312, %v2737
        %v2774 = vadd.f32 %v2315, %v2740
        %v2775 = vld [vmem:[%s1212] sm:$0xf]
        %v2776 = vld [vmem:[%s1212 + $0x4] sm:$0xf]
        %v2777 = vld [vmem:[%s1212 + $0xc] sm:$0xf]
        %v2778 = vld [vmem:[%s1212 + $0x10] sm:$0xf]
        %v2779 = vld [vmem:[%s1212 + $0x18] sm:$0xf]
        %v2780 = vld [vmem:[%s1212 + $0x1c] sm:$0xf]
        %v2781 = vld [vmem:[%s1212 + $0x24] sm:$0xf]
        %v2782 = vld [vmem:[%s1212 + $0x28] sm:$0xf]
        %v2783 = vld [vmem:[%s1212 + $0x30] sm:$0xf]
        %v2784 = vld [vmem:[%s1212 + $0x34] sm:$0xf]
        %v2785 = vld [vmem:[%s1212 + $0x3c] sm:$0xf]
        %v2786 = vld [vmem:[%s1212 + $0x40] sm:$0xf]
        %v2787 = vld [vmem:[%s1212 + $0x48] sm:$0xf]
        %v2788 = vld [vmem:[%s1212 + $0x4c] sm:$0xf]
        %v2789 = vld [vmem:[%s1212 + $0x54] sm:$0xf]
        %v2790 = vld [vmem:[%s1212 + $0x58] sm:$0xf]
        %v2791 = vld [vmem:[%s1212 + $0x60] sm:$0xf]
        %v2792 = vld [vmem:[%s1212 + $0x64] sm:$0xf]
        %v2793 = vld [vmem:[%s1212 + $0x6c] sm:$0xf]
        %v2794 = vld [vmem:[%s1212 + $0x70] sm:$0xf]
        %v2795 = vld [vmem:[%s1212 + $0x78] sm:$0xf]
        %v2796 = vld [vmem:[%s1212 + $0x7c] sm:$0xf]
        %v2797 = vld [vmem:[%s1212 + $0x84] sm:$0xf]
        %v2798 = vld [vmem:[%s1212 + $0x88] sm:$0xf]
        %v2799 = vld [vmem:[%s1212 + $0x90] sm:$0xf]
        %v2800 = vld [vmem:[%s1212 + $0x94] sm:$0xf]
        %v2801 = vld [vmem:[%s1212 + $0x9c] sm:$0xf]
        %v2802 = vld [vmem:[%s1212 + $0xa0] sm:$0xf]
        %v2803 = vld [vmem:[%s1212 + $0xa8] sm:$0xf]
        %v2804 = vld [vmem:[%s1212 + $0xac] sm:$0xf]
        %v2805 = vld [vmem:[%s1212 + $0xb4] sm:$0xf]
        %v2806 = vld [vmem:[%s1212 + $0xb8] sm:$0xf]
        %s2807 = scalar_lea.vmem %s4, 6
        %v2808 = vld [vmem:[%s2807] sm:$0x3]
        %v2841 = vunpack.c.l.b16 %v2775
        %v2842 = vunpack.c.l.b16 %v2776
        %v2843 = vunpack.c.l.b16 %v2777
        %v2844 = vunpack.c.l.b16 %v2778
        %v2845 = vunpack.c.l.b16 %v2779
        %v2846 = vunpack.c.l.b16 %v2780
        %v2847 = vunpack.c.l.b16 %v2781
        %v2848 = vunpack.c.l.b16 %v2782
        %v2849 = vunpack.c.l.b16 %v2783
        %v2850 = vunpack.c.l.b16 %v2784
        %v2851 = vunpack.c.l.b16 %v2785
        %v2852 = vunpack.c.l.b16 %v2786
        %v2853 = vunpack.c.l.b16 %v2787
        %v2854 = vunpack.c.l.b16 %v2788
        %v2855 = vunpack.c.l.b16 %v2789
        %v2856 = vunpack.c.l.b16 %v2790
        %v2857 = vunpack.c.l.b16 %v2791
        %v2858 = vunpack.c.l.b16 %v2792
        %v2859 = vunpack.c.l.b16 %v2793
        %v2860 = vunpack.c.l.b16 %v2794
        %v2861 = vunpack.c.l.b16 %v2795
        %v2862 = vunpack.c.l.b16 %v2796
        %v2863 = vunpack.c.l.b16 %v2797
        %v2864 = vunpack.c.l.b16 %v2798
        %v2865 = vunpack.c.l.b16 %v2799
        %v2866 = vunpack.c.l.b16 %v2800
        %v2867 = vunpack.c.l.b16 %v2801
        %v2868 = vunpack.c.l.b16 %v2802
        %v2869 = vunpack.c.l.b16 %v2803
        %v2870 = vunpack.c.l.b16 %v2804
        %v2871 = vunpack.c.l.b16 %v2805
        %v2872 = vunpack.c.l.b16 %v2806
        %v2873 = vpack.c.b16 %v2842, %v2841
        %v2874 = vpack.c.b16 %v2844, %v2843
        %v2875 = vpack.c.b16 %v2846, %v2845
        %v2876 = vpack.c.b16 %v2848, %v2847
        %v2877 = vpack.c.b16 %v2850, %v2849
        %v2878 = vpack.c.b16 %v2852, %v2851
        %v2879 = vpack.c.b16 %v2854, %v2853
        %v2880 = vpack.c.b16 %v2856, %v2855
        %v2881 = vpack.c.b16 %v2858, %v2857
        %v2882 = vpack.c.b16 %v2860, %v2859
        %v2883 = vpack.c.b16 %v2862, %v2861
        %v2884 = vpack.c.b16 %v2864, %v2863
        %v2885 = vpack.c.b16 %v2866, %v2865
        %v2886 = vpack.c.b16 %v2868, %v2867
        %v2887 = vpack.c.b16 %v2870, %v2869
        %v2888 = vpack.c.b16 %v2872, %v2871
        %v2890 = vsel %vm315, %v2873, 0
        %v2893 = vsel %vm315, %v2874, 0
        %v2896 = vsel %vm315, %v2875, 0
        %v2899 = vsel %vm315, %v2876, 0
        %v2902 = vsel %vm315, %v2877, 0
        %v2905 = vsel %vm315, %v2878, 0
        %v2908 = vsel %vm315, %v2879, 0
        %v2911 = vsel %vm315, %v2880, 0
        %v2914 = vsel %vm315, %v2881, 0
        %v2917 = vsel %vm315, %v2882, 0
        %v2920 = vsel %vm315, %v2883, 0
        %v2923 = vsel %vm315, %v2884, 0
        %v2926 = vsel %vm315, %v2885, 0
        %v2929 = vsel %vm315, %v2886, 0
        %v2932 = vsel %vm315, %v2887, 0
        %v2935 = vsel %vm315, %v2888, 0
        %v2938 = vsel %vm1861, %v2808, 0
        %2940 = vmatprep.subr.bf16.mxu0 0
        %2941 = vmatpush1.bf16.msra.mxu0 %v2938
        %2942 = vmatprep.subr.bf16.mxu0 0
        %2943 = vmatpush1.bf16.msra.mxu0 0
        %2944 = vmatprep.subr.bf16.mxu0 0
        %2945 = vmatpush1.bf16.msra.mxu0 0
        %2946 = vmatprep.subr.bf16.mxu0 0
        %2947 = vmatpush1.bf16.msra.mxu0 0
        %2948 = vmatprep.subr.bf16.mxu0 0
        %2949 = vmatpush1.bf16.msra.mxu0 0
        %2950 = vmatprep.subr.bf16.mxu0 0
        %2951 = vmatpush1.bf16.msra.mxu0 0
        %2952 = vmatprep.subr.bf16.mxu0 0
        %2953 = vmatpush1.bf16.msra.mxu0 0
        %2954 = vmatprep.subr.bf16.mxu0 0
        %2955 = vmatpush1.bf16.msra.mxu0 0
        %2956 = vmatprep.subr.bf16.mxu0 0
        %2957 = vmatpush1.bf16.msra.mxu0 0
        %2958 = vmatprep.subr.bf16.mxu0 0
        %2959 = vmatpush1.bf16.msra.mxu0 0
        %2960 = vmatprep.subr.bf16.mxu0 0
        %2961 = vmatpush1.bf16.msra.mxu0 0
        %2962 = vmatprep.subr.bf16.mxu0 0
        %2963 = vmatpush1.bf16.msra.mxu0 0
        %2964 = vmatprep.subr.bf16.mxu0 0
        %2965 = vmatpush1.bf16.msra.mxu0 0
        %2966 = vmatprep.subr.bf16.mxu0 0
        %2967 = vmatpush1.bf16.msra.mxu0 0
        %2968 = vmatprep.subr.bf16.mxu0 0
        %2969 = vmatpush1.bf16.msra.mxu0 0
        %2970 = vmatprep.subr.bf16.mxu0 0
        %2971 = vmatpush1.bf16.msra.mxu0 0
        %2972 = vmatprep.mubr.bf16.mxu0 0
        %2973 = vmatmul.mubr.bf16.gmra.mrb[0].mxu0 %v2890
        %v2974 = vpop.f32.mrb[0].mxu0
        %v2975 = vadd.f32 0.0, %v2974
        %v2976 = vpop.f32.mrb[0].mxu0
        %v2977 = vpop.f32.mrb[0].mxu0
        %v2978 = vadd.f32 0.0, %v2977
        %v2979 = vpop.f32.mrb[0].mxu0
        %2980 = vmatprep.mubr.bf16.mxu0 0
        %2981 = vmatmul.mubr.bf16.gmra.mrb[0].mxu0 %v2893
        %v2982 = vpop.f32.mrb[0].mxu0
        %v2983 = vadd.f32 0.0, %v2982
        %v2984 = vpop.f32.mrb[0].mxu0
        %v2985 = vpop.f32.mrb[0].mxu0
        %v2986 = vadd.f32 0.0, %v2985
        %v2987 = vpop.f32.mrb[0].mxu0
        %2988 = vmatprep.mubr.bf16.mxu0 0
        %2989 = vmatmul.mubr.bf16.gmra.mrb[0].mxu0 %v2896
        %v2990 = vpop.f32.mrb[0].mxu0
        %v2991 = vadd.f32 0.0, %v2990
        %v2992 = vpop.f32.mrb[0].mxu0
        %v2993 = vpop.f32.mrb[0].mxu0
        %v2994 = vadd.f32 0.0, %v2993
        %v2995 = vpop.f32.mrb[0].mxu0
        %2996 = vmatprep.mubr.bf16.mxu0 0
        %2997 = vmatmul.mubr.bf16.gmra.mrb[0].mxu0 %v2899
        %v2998 = vpop.f32.mrb[0].mxu0
        %v2999 = vadd.f32 0.0, %v2998
        %v3000 = vpop.f32.mrb[0].mxu0
        %v3001 = vpop.f32.mrb[0].mxu0
        %v3002 = vadd.f32 0.0, %v3001
        %v3003 = vpop.f32.mrb[0].mxu0
        %3004 = vmatprep.mubr.bf16.mxu0 0
        %3005 = vmatmul.mubr.bf16.gmra.mrb[0].mxu0 %v2902
        %v3006 = vpop.f32.mrb[0].mxu0
        %v3007 = vadd.f32 0.0, %v3006
        %v3008 = vpop.f32.mrb[0].mxu0
        %v3009 = vpop.f32.mrb[0].mxu0
        %v3010 = vadd.f32 0.0, %v3009
        %v3011 = vpop.f32.mrb[0].mxu0
        %3012 = vmatprep.mubr.bf16.mxu0 0
        %3013 = vmatmul.mubr.bf16.gmra.mrb[0].mxu0 %v2905
        %v3014 = vpop.f32.mrb[0].mxu0
        %v3015 = vadd.f32 0.0, %v3014
        %v3016 = vpop.f32.mrb[0].mxu0
        %v3017 = vpop.f32.mrb[0].mxu0
        %v3018 = vadd.f32 0.0, %v3017
        %v3019 = vpop.f32.mrb[0].mxu0
        %3020 = vmatprep.mubr.bf16.mxu0 0
        %3021 = vmatmul.mubr.bf16.gmra.mrb[0].mxu0 %v2908
        %v3022 = vpop.f32.mrb[0].mxu0
        %v3023 = vadd.f32 0.0, %v3022
        %v3024 = vpop.f32.mrb[0].mxu0
        %v3025 = vpop.f32.mrb[0].mxu0
        %v3026 = vadd.f32 0.0, %v3025
        %v3027 = vpop.f32.mrb[0].mxu0
        %3028 = vmatprep.mubr.bf16.mxu0 0
        %3029 = vmatmul.mubr.bf16.gmra.mrb[0].mxu0 %v2911
        %v3030 = vpop.f32.mrb[0].mxu0
        %v3031 = vadd.f32 0.0, %v3030
        %v3032 = vpop.f32.mrb[0].mxu0
        %v3033 = vpop.f32.mrb[0].mxu0
        %v3034 = vadd.f32 0.0, %v3033
        %v3035 = vpop.f32.mrb[0].mxu0
        %3036 = vmatprep.mubr.bf16.mxu0 0
        %3037 = vmatmul.mubr.bf16.gmra.mrb[0].mxu0 %v2914
        %v3038 = vpop.f32.mrb[0].mxu0
        %v3039 = vadd.f32 0.0, %v3038
        %v3040 = vpop.f32.mrb[0].mxu0
        %v3041 = vpop.f32.mrb[0].mxu0
        %v3042 = vadd.f32 0.0, %v3041
        %v3043 = vpop.f32.mrb[0].mxu0
        %3044 = vmatprep.mubr.bf16.mxu0 0
        %3045 = vmatmul.mubr.bf16.gmra.mrb[0].mxu0 %v2917
        %v3046 = vpop.f32.mrb[0].mxu0
        %v3047 = vadd.f32 0.0, %v3046
        %v3048 = vpop.f32.mrb[0].mxu0
        %v3049 = vpop.f32.mrb[0].mxu0
        %v3050 = vadd.f32 0.0, %v3049
        %v3051 = vpop.f32.mrb[0].mxu0
        %3052 = vmatprep.mubr.bf16.mxu0 0
        %3053 = vmatmul.mubr.bf16.gmra.mrb[0].mxu0 %v2920
        %v3054 = vpop.f32.mrb[0].mxu0
        %v3055 = vadd.f32 0.0, %v3054
        %v3056 = vpop.f32.mrb[0].mxu0
        %v3057 = vpop.f32.mrb[0].mxu0
        %v3058 = vadd.f32 0.0, %v3057
        %v3059 = vpop.f32.mrb[0].mxu0
        %3060 = vmatprep.mubr.bf16.mxu0 0
        %3061 = vmatmul.mubr.bf16.gmra.mrb[0].mxu0 %v2923
        %v3062 = vpop.f32.mrb[0].mxu0
        %v3063 = vadd.f32 0.0, %v3062
        %v3064 = vpop.f32.mrb[0].mxu0
        %v3065 = vpop.f32.mrb[0].mxu0
        %v3066 = vadd.f32 0.0, %v3065
        %v3067 = vpop.f32.mrb[0].mxu0
        %3068 = vmatprep.mubr.bf16.mxu0 0
        %3069 = vmatmul.mubr.bf16.gmra.mrb[0].mxu0 %v2926
        %v3070 = vpop.f32.mrb[0].mxu0
        %v3071 = vadd.f32 0.0, %v3070
        %v3072 = vpop.f32.mrb[0].mxu0
        %v3073 = vpop.f32.mrb[0].mxu0
        %v3074 = vadd.f32 0.0, %v3073
        %v3075 = vpop.f32.mrb[0].mxu0
        %3076 = vmatprep.mubr.bf16.mxu0 0
        %3077 = vmatmul.mubr.bf16.gmra.mrb[0].mxu0 %v2929
        %v3078 = vpop.f32.mrb[0].mxu0
        %v3079 = vadd.f32 0.0, %v3078
        %v3080 = vpop.f32.mrb[0].mxu0
        %v3081 = vpop.f32.mrb[0].mxu0
        %v3082 = vadd.f32 0.0, %v3081
        %v3083 = vpop.f32.mrb[0].mxu0
        %3084 = vmatprep.mubr.bf16.mxu0 0
        %3085 = vmatmul.mubr.bf16.gmra.mrb[0].mxu0 %v2932
        %v3086 = vpop.f32.mrb[0].mxu0
        %v3087 = vadd.f32 0.0, %v3086
        %v3088 = vpop.f32.mrb[0].mxu0
        %v3089 = vpop.f32.mrb[0].mxu0
        %v3090 = vadd.f32 0.0, %v3089
        %v3091 = vpop.f32.mrb[0].mxu0
        %3092 = vmatprep.mubr.bf16.mxu0 0
        %3093 = vmatmul.mubr.bf16.gmra.mrb[0].mxu0 %v2935
        %v3094 = vpop.f32.mrb[0].mxu0
        %v3095 = vadd.f32 0.0, %v3094
        %v3096 = vpop.f32.mrb[0].mxu0
        %v3097 = vpop.f32.mrb[0].mxu0
        %v3098 = vadd.f32 0.0, %v3097
        %v3099 = vpop.f32.mrb[0].mxu0
        %3100 = vdwg.mxu0
        %v3101 = vadd.f32 %v2743, %v2975
        %v3102 = vadd.f32 %v2744, %v2978
        %v3103 = vadd.f32 %v2745, %v2983
        %v3104 = vadd.f32 %v2746, %v2986
        %v3105 = vadd.f32 %v2747, %v2991
        %v3106 = vadd.f32 %v2748, %v2994
        %v3107 = vadd.f32 %v2749, %v2999
        %v3108 = vadd.f32 %v2750, %v3002
        %v3109 = vadd.f32 %v2751, %v3007
        %v3110 = vadd.f32 %v2752, %v3010
        %v3111 = vadd.f32 %v2753, %v3015
        %v3112 = vadd.f32 %v2754, %v3018
        %v3113 = vadd.f32 %v2755, %v3023
        %v3114 = vadd.f32 %v2756, %v3026
        %v3115 = vadd.f32 %v2757, %v3031
        %v3116 = vadd.f32 %v2758, %v3034
        %v3117 = vadd.f32 %v2759, %v3039
        %v3118 = vadd.f32 %v2760, %v3042
        %v3119 = vadd.f32 %v2761, %v3047
        %v3120 = vadd.f32 %v2762, %v3050
        %v3121 = vadd.f32 %v2763, %v3055
        %v3122 = vadd.f32 %v2764, %v3058
        %v3123 = vadd.f32 %v2765, %v3063
        %v3124 = vadd.f32 %v2766, %v3066
        %v3125 = vadd.f32 %v2767, %v3071
        %v3126 = vadd.f32 %v2768, %v3074
        %v3127 = vadd.f32 %v2769, %v3079
        %v3128 = vadd.f32 %v2770, %v3082
        %v3129 = vadd.f32 %v2771, %v3087
        %v3130 = vadd.f32 %v2772, %v3090
        %v3131 = vadd.f32 %v2773, %v3095
        %v3132 = vadd.f32 %v2774, %v3098
        %v3133 = vld [vmem:[%s1212] sm:$0xf]
        %v3134 = vld [vmem:[%s1212 + $0x4] sm:$0xf]
        %v3135 = vld [vmem:[%s1212 + $0x8] sm:$0x1]
        %v3136 = vld [vmem:[%s1212 + $0xc] sm:$0xf]
        %v3137 = vld [vmem:[%s1212 + $0x10] sm:$0xf]
        %v3138 = vld [vmem:[%s1212 + $0x14] sm:$0x1]
        %v3139 = vld [vmem:[%s1212 + $0x18] sm:$0xf]
        %v3140 = vld [vmem:[%s1212 + $0x1c] sm:$0xf]
        %v3141 = vld [vmem:[%s1212 + $0x20] sm:$0x1]
        %v3142 = vld [vmem:[%s1212 + $0x24] sm:$0xf]
        %v3143 = vld [vmem:[%s1212 + $0x28] sm:$0xf]
        %v3144 = vld [vmem:[%s1212 + $0x2c] sm:$0x1]
        %v3145 = vld [vmem:[%s1212 + $0x30] sm:$0xf]
        %v3146 = vld [vmem:[%s1212 + $0x34] sm:$0xf]
        %v3147 = vld [vmem:[%s1212 + $0x38] sm:$0x1]
        %v3148 = vld [vmem:[%s1212 + $0x3c] sm:$0xf]
        %v3149 = vld [vmem:[%s1212 + $0x40] sm:$0xf]
        %v3150 = vld [vmem:[%s1212 + $0x44] sm:$0x1]
        %v3151 = vld [vmem:[%s1212 + $0x48] sm:$0xf]
        %v3152 = vld [vmem:[%s1212 + $0x4c] sm:$0xf]
        %v3153 = vld [vmem:[%s1212 + $0x50] sm:$0x1]
        %v3154 = vld [vmem:[%s1212 + $0x54] sm:$0xf]
        %v3155 = vld [vmem:[%s1212 + $0x58] sm:$0xf]
        %v3156 = vld [vmem:[%s1212 + $0x5c] sm:$0x1]
        %v3157 = vld [vmem:[%s1212 + $0x60] sm:$0xf]
        %v3158 = vld [vmem:[%s1212 + $0x64] sm:$0xf]
        %v3159 = vld [vmem:[%s1212 + $0x68] sm:$0x1]
        %v3160 = vld [vmem:[%s1212 + $0x6c] sm:$0xf]
        %v3161 = vld [vmem:[%s1212 + $0x70] sm:$0xf]
        %v3162 = vld [vmem:[%s1212 + $0x74] sm:$0x1]
        %v3163 = vld [vmem:[%s1212 + $0x78] sm:$0xf]
        %v3164 = vld [vmem:[%s1212 + $0x7c] sm:$0xf]
        %v3165 = vld [vmem:[%s1212 + $0x80] sm:$0x1]
        %v3166 = vld [vmem:[%s1212 + $0x84] sm:$0xf]
        %v3167 = vld [vmem:[%s1212 + $0x88] sm:$0xf]
        %v3168 = vld [vmem:[%s1212 + $0x8c] sm:$0x1]
        %v3169 = vld [vmem:[%s1212 + $0x90] sm:$0xf]
        %v3170 = vld [vmem:[%s1212 + $0x94] sm:$0xf]
        %v3171 = vld [vmem:[%s1212 + $0x98] sm:$0x1]
        %v3172 = vld [vmem:[%s1212 + $0x9c] sm:$0xf]
        %v3173 = vld [vmem:[%s1212 + $0xa0] sm:$0xf]
        %v3174 = vld [vmem:[%s1212 + $0xa4] sm:$0x1]
        %v3175 = vld [vmem:[%s1212 + $0xa8] sm:$0xf]
        %v3176 = vld [vmem:[%s1212 + $0xac] sm:$0xf]
        %v3177 = vld [vmem:[%s1212 + $0xb0] sm:$0x1]
        %v3178 = vld [vmem:[%s1212 + $0xb4] sm:$0xf]
        %v3179 = vld [vmem:[%s1212 + $0xb8] sm:$0xf]
        %v3180 = vld [vmem:[%s1212 + $0xbc] sm:$0x1]
        %v3182 = vshrl.u32 %v3133, 16
        %v3184 = vrot.slane %v3182, 4
        %v3185 = vshll.u32 %v3133, 16
        %v3187 = vrot.slane %v3185, 5
        %v3188 = vor.u32 %v3184, %v3187
        %v3189 = vrot.slane %v3188, 4
        %v3191 = vshll.u32 %v3134, 16
        %v3193 = vrot.slane %v3191, 5
        %v3194 = vsel %vm1378, %v3189, %v3193
        %v3195 = vshrl.u32 %v3134, 16
        %v3197 = vrot.slane %v3195, 4
        %v3198 = vor.u32 %v3197, %v3193
        %v3199 = vrot.slane %v3198, 4
        %v3201 = vshll.u32 %v3135, 16
        %v3203 = vrot.slane %v3201, 5
        %v3204 = vsel %vm1378, %v3199, %v3203
        %v3206 = vshrl.u32 %v3136, 16
        %v3208 = vrot.slane %v3206, 4
        %v3209 = vshll.u32 %v3136, 16
        %v3211 = vrot.slane %v3209, 5
        %v3212 = vor.u32 %v3208, %v3211
        %v3213 = vrot.slane %v3212, 4
        %v3215 = vshll.u32 %v3137, 16
        %v3217 = vrot.slane %v3215, 5
        %v3218 = vsel %vm1378, %v3213, %v3217
        %v3219 = vshrl.u32 %v3137, 16
        %v3221 = vrot.slane %v3219, 4
        %v3222 = vor.u32 %v3221, %v3217
        %v3223 = vrot.slane %v3222, 4
        %v3225 = vshll.u32 %v3138, 16
        %v3227 = vrot.slane %v3225, 5
        %v3228 = vsel %vm1378, %v3223, %v3227
        %v3230 = vshrl.u32 %v3139, 16
        %v3232 = vrot.slane %v3230, 4
        %v3233 = vshll.u32 %v3139, 16
        %v3235 = vrot.slane %v3233, 5
        %v3236 = vor.u32 %v3232, %v3235
        %v3237 = vrot.slane %v3236, 4
        %v3239 = vshll.u32 %v3140, 16
        %v3241 = vrot.slane %v3239, 5
        %v3242 = vsel %vm1378, %v3237, %v3241
        %v3243 = vshrl.u32 %v3140, 16
        %v3245 = vrot.slane %v3243, 4
        %v3246 = vor.u32 %v3245, %v3241
        %v3247 = vrot.slane %v3246, 4
        %v3249 = vshll.u32 %v3141, 16
        %v3251 = vrot.slane %v3249, 5
        %v3252 = vsel %vm1378, %v3247, %v3251
        %v3254 = vshrl.u32 %v3142, 16
        %v3256 = vrot.slane %v3254, 4
        %v3257 = vshll.u32 %v3142, 16
        %v3259 = vrot.slane %v3257, 5
        %v3260 = vor.u32 %v3256, %v3259
        %v3261 = vrot.slane %v3260, 4
        %v3263 = vshll.u32 %v3143, 16
        %v3265 = vrot.slane %v3263, 5
        %v3266 = vsel %vm1378, %v3261, %v3265
        %v3267 = vshrl.u32 %v3143, 16
        %v3269 = vrot.slane %v3267, 4
        %v3270 = vor.u32 %v3269, %v3265
        %v3271 = vrot.slane %v3270, 4
        %v3273 = vshll.u32 %v3144, 16
        %v3275 = vrot.slane %v3273, 5
        %v3276 = vsel %vm1378, %v3271, %v3275
        %v3278 = vshrl.u32 %v3145, 16
        %v3280 = vrot.slane %v3278, 4
        %v3281 = vshll.u32 %v3145, 16
        %v3283 = vrot.slane %v3281, 5
        %v3284 = vor.u32 %v3280, %v3283
        %v3285 = vrot.slane %v3284, 4
        %v3287 = vshll.u32 %v3146, 16
        %v3289 = vrot.slane %v3287, 5
        %v3290 = vsel %vm1378, %v3285, %v3289
        %v3291 = vshrl.u32 %v3146, 16
        %v3293 = vrot.slane %v3291, 4
        %v3294 = vor.u32 %v3293, %v3289
        %v3295 = vrot.slane %v3294, 4
        %v3297 = vshll.u32 %v3147, 16
        %v3299 = vrot.slane %v3297, 5
        %v3300 = vsel %vm1378, %v3295, %v3299
        %v3302 = vshrl.u32 %v3148, 16
        %v3304 = vrot.slane %v3302, 4
        %v3305 = vshll.u32 %v3148, 16
        %v3307 = vrot.slane %v3305, 5
        %v3308 = vor.u32 %v3304, %v3307
        %v3309 = vrot.slane %v3308, 4
        %v3311 = vshll.u32 %v3149, 16
        %v3313 = vrot.slane %v3311, 5
        %v3314 = vsel %vm1378, %v3309, %v3313
        %v3315 = vshrl.u32 %v3149, 16
        %v3317 = vrot.slane %v3315, 4
        %v3318 = vor.u32 %v3317, %v3313
        %v3319 = vrot.slane %v3318, 4
        %v3321 = vshll.u32 %v3150, 16
        %v3323 = vrot.slane %v3321, 5
        %v3324 = vsel %vm1378, %v3319, %v3323
        %v3326 = vshrl.u32 %v3151, 16
        %v3328 = vrot.slane %v3326, 4
        %v3329 = vshll.u32 %v3151, 16
        %v3331 = vrot.slane %v3329, 5
        %v3332 = vor.u32 %v3328, %v3331
        %v3333 = vrot.slane %v3332, 4
        %v3335 = vshll.u32 %v3152, 16
        %v3337 = vrot.slane %v3335, 5
        %v3338 = vsel %vm1378, %v3333, %v3337
        %v3339 = vshrl.u32 %v3152, 16
        %v3341 = vrot.slane %v3339, 4
        %v3342 = vor.u32 %v3341, %v3337
        %v3343 = vrot.slane %v3342, 4
        %v3345 = vshll.u32 %v3153, 16
        %v3347 = vrot.slane %v3345, 5
        %v3348 = vsel %vm1378, %v3343, %v3347
        %v3350 = vshrl.u32 %v3154, 16
        %v3352 = vrot.slane %v3350, 4
        %v3353 = vshll.u32 %v3154, 16
        %v3355 = vrot.slane %v3353, 5
        %v3356 = vor.u32 %v3352, %v3355
        %v3357 = vrot.slane %v3356, 4
        %v3359 = vshll.u32 %v3155, 16
        %v3361 = vrot.slane %v3359, 5
        %v3362 = vsel %vm1378, %v3357, %v3361
        %v3363 = vshrl.u32 %v3155, 16
        %v3365 = vrot.slane %v3363, 4
        %v3366 = vor.u32 %v3365, %v3361
        %v3367 = vrot.slane %v3366, 4
        %v3369 = vshll.u32 %v3156, 16
        %v3371 = vrot.slane %v3369, 5
        %v3372 = vsel %vm1378, %v3367, %v3371
        %v3374 = vshrl.u32 %v3157, 16
        %v3376 = vrot.slane %v3374, 4
        %v3377 = vshll.u32 %v3157, 16
        %v3379 = vrot.slane %v3377, 5
        %v3380 = vor.u32 %v3376, %v3379
        %v3381 = vrot.slane %v3380, 4
        %v3383 = vshll.u32 %v3158, 16
        %v3385 = vrot.slane %v3383, 5
        %v3386 = vsel %vm1378, %v3381, %v3385
        %v3387 = vshrl.u32 %v3158, 16
        %v3389 = vrot.slane %v3387, 4
        %v3390 = vor.u32 %v3389, %v3385
        %v3391 = vrot.slane %v3390, 4
        %v3393 = vshll.u32 %v3159, 16
        %v3395 = vrot.slane %v3393, 5
        %v3396 = vsel %vm1378, %v3391, %v3395
        %v3398 = vshrl.u32 %v3160, 16
        %v3400 = vrot.slane %v3398, 4
        %v3401 = vshll.u32 %v3160, 16
        %v3403 = vrot.slane %v3401, 5
        %v3404 = vor.u32 %v3400, %v3403
        %v3405 = vrot.slane %v3404, 4
        %v3407 = vshll.u32 %v3161, 16
        %v3409 = vrot.slane %v3407, 5
        %v3410 = vsel %vm1378, %v3405, %v3409
        %v3411 = vshrl.u32 %v3161, 16
        %v3413 = vrot.slane %v3411, 4
        %v3414 = vor.u32 %v3413, %v3409
        %v3415 = vrot.slane %v3414, 4
        %v3417 = vshll.u32 %v3162, 16
        %v3419 = vrot.slane %v3417, 5
        %v3420 = vsel %vm1378, %v3415, %v3419
        %v3422 = vshrl.u32 %v3163, 16
        %v3424 = vrot.slane %v3422, 4
        %v3425 = vshll.u32 %v3163, 16
        %v3427 = vrot.slane %v3425, 5
        %v3428 = vor.u32 %v3424, %v3427
        %v3429 = vrot.slane %v3428, 4
        %v3431 = vshll.u32 %v3164, 16
        %v3433 = vrot.slane %v3431, 5
        %v3434 = vsel %vm1378, %v3429, %v3433
        %v3435 = vshrl.u32 %v3164, 16
        %v3437 = vrot.slane %v3435, 4
        %v3438 = vor.u32 %v3437, %v3433
        %v3439 = vrot.slane %v3438, 4
        %v3441 = vshll.u32 %v3165, 16
        %v3443 = vrot.slane %v3441, 5
        %v3444 = vsel %vm1378, %v3439, %v3443
        %v3446 = vshrl.u32 %v3166, 16
        %v3448 = vrot.slane %v3446, 4
        %v3449 = vshll.u32 %v3166, 16
        %v3451 = vrot.slane %v3449, 5
        %v3452 = vor.u32 %v3448, %v3451
        %v3453 = vrot.slane %v3452, 4
        %v3455 = vshll.u32 %v3167, 16
        %v3457 = vrot.slane %v3455, 5
        %v3458 = vsel %vm1378, %v3453, %v3457
        %v3459 = vshrl.u32 %v3167, 16
        %v3461 = vrot.slane %v3459, 4
        %v3462 = vor.u32 %v3461, %v3457
        %v3463 = vrot.slane %v3462, 4
        %v3465 = vshll.u32 %v3168, 16
        %v3467 = vrot.slane %v3465, 5
        %v3468 = vsel %vm1378, %v3463, %v3467
        %v3470 = vshrl.u32 %v3169, 16
        %v3472 = vrot.slane %v3470, 4
        %v3473 = vshll.u32 %v3169, 16
        %v3475 = vrot.slane %v3473, 5
        %v3476 = vor.u32 %v3472, %v3475
        %v3477 = vrot.slane %v3476, 4
        %v3479 = vshll.u32 %v3170, 16
        %v3481 = vrot.slane %v3479, 5
        %v3482 = vsel %vm1378, %v3477, %v3481
        %v3483 = vshrl.u32 %v3170, 16
        %v3485 = vrot.slane %v3483, 4
        %v3486 = vor.u32 %v3485, %v3481
        %v3487 = vrot.slane %v3486, 4
        %v3489 = vshll.u32 %v3171, 16
        %v3491 = vrot.slane %v3489, 5
        %v3492 = vsel %vm1378, %v3487, %v3491
        %v3494 = vshrl.u32 %v3172, 16
        %v3496 = vrot.slane %v3494, 4
        %v3497 = vshll.u32 %v3172, 16
        %v3499 = vrot.slane %v3497, 5
        %v3500 = vor.u32 %v3496, %v3499
        %v3501 = vrot.slane %v3500, 4
        %v3503 = vshll.u32 %v3173, 16
        %v3505 = vrot.slane %v3503, 5
        %v3506 = vsel %vm1378, %v3501, %v3505
        %v3507 = vshrl.u32 %v3173, 16
        %v3509 = vrot.slane %v3507, 4
        %v3510 = vor.u32 %v3509, %v3505
        %v3511 = vrot.slane %v3510, 4
        %v3513 = vshll.u32 %v3174, 16
        %v3515 = vrot.slane %v3513, 5
        %v3516 = vsel %vm1378, %v3511, %v3515
        %v3518 = vshrl.u32 %v3175, 16
        %v3520 = vrot.slane %v3518, 4
        %v3521 = vshll.u32 %v3175, 16
        %v3523 = vrot.slane %v3521, 5
        %v3524 = vor.u32 %v3520, %v3523
        %v3525 = vrot.slane %v3524, 4
        %v3527 = vshll.u32 %v3176, 16
        %v3529 = vrot.slane %v3527, 5
        %v3530 = vsel %vm1378, %v3525, %v3529
        %v3531 = vshrl.u32 %v3176, 16
        %v3533 = vrot.slane %v3531, 4
        %v3534 = vor.u32 %v3533, %v3529
        %v3535 = vrot.slane %v3534, 4
        %v3537 = vshll.u32 %v3177, 16
        %v3539 = vrot.slane %v3537, 5
        %v3540 = vsel %vm1378, %v3535, %v3539
        %v3542 = vshrl.u32 %v3178, 16
        %v3544 = vrot.slane %v3542, 4
        %v3545 = vshll.u32 %v3178, 16
        %v3547 = vrot.slane %v3545, 5
        %v3548 = vor.u32 %v3544, %v3547
        %v3549 = vrot.slane %v3548, 4
        %v3551 = vshll.u32 %v3179, 16
        %v3553 = vrot.slane %v3551, 5
        %v3554 = vsel %vm1378, %v3549, %v3553
        %v3555 = vshrl.u32 %v3179, 16
        %v3557 = vrot.slane %v3555, 4
        %v3558 = vor.u32 %v3557, %v3553
        %v3559 = vrot.slane %v3558, 4
        %v3561 = vshll.u32 %v3180, 16
        %v3563 = vrot.slane %v3561, 5
        %v3564 = vsel %vm1378, %v3559, %v3563
        %s3565 = scalar_lea.vmem %s4, 8
        %v3566 = vld [vmem:[%s3565] sm:$0x3]
        %v3567 = vunpack.c.l.b16 %v3194
        %v3568 = vunpack.c.l.b16 %v3204
        %v3569 = vunpack.c.l.b16 %v3218
        %v3570 = vunpack.c.l.b16 %v3228
        %v3571 = vunpack.c.l.b16 %v3242
        %v3572 = vunpack.c.l.b16 %v3252
        %v3573 = vunpack.c.l.b16 %v3266
        %v3574 = vunpack.c.l.b16 %v3276
        %v3575 = vunpack.c.l.b16 %v3290
        %v3576 = vunpack.c.l.b16 %v3300
        %v3577 = vunpack.c.l.b16 %v3314
        %v3578 = vunpack.c.l.b16 %v3324
        %v3579 = vunpack.c.l.b16 %v3338
        %v3580 = vunpack.c.l.b16 %v3348
        %v3581 = vunpack.c.l.b16 %v3362
        %v3582 = vunpack.c.l.b16 %v3372
        %v3583 = vunpack.c.l.b16 %v3386
        %v3584 = vunpack.c.l.b16 %v3396
        %v3585 = vunpack.c.l.b16 %v3410
        %v3586 = vunpack.c.l.b16 %v3420
        %v3587 = vunpack.c.l.b16 %v3434
        %v3588 = vunpack.c.l.b16 %v3444
        %v3589 = vunpack.c.l.b16 %v3458
        %v3590 = vunpack.c.l.b16 %v3468
        %v3591 = vunpack.c.l.b16 %v3482
        %v3592 = vunpack.c.l.b16 %v3492
        %v3593 = vunpack.c.l.b16 %v3506
        %v3594 = vunpack.c.l.b16 %v3516
        %v3595 = vunpack.c.l.b16 %v3530
        %v3596 = vunpack.c.l.b16 %v3540
        %v3597 = vunpack.c.l.b16 %v3554
        %v3598 = vunpack.c.l.b16 %v3564
        %v3599 = vpack.c.b16 %v3568, %v3567
        %v3600 = vpack.c.b16 %v3570, %v3569
        %v3601 = vpack.c.b16 %v3572, %v3571
        %v3602 = vpack.c.b16 %v3574, %v3573
        %v3603 = vpack.c.b16 %v3576, %v3575
        %v3604 = vpack.c.b16 %v3578, %v3577
        %v3605 = vpack.c.b16 %v3580, %v3579
        %v3606 = vpack.c.b16 %v3582, %v3581
        %v3607 = vpack.c.b16 %v3584, %v3583
        %v3608 = vpack.c.b16 %v3586, %v3585
        %v3609 = vpack.c.b16 %v3588, %v3587
        %v3610 = vpack.c.b16 %v3590, %v3589
        %v3611 = vpack.c.b16 %v3592, %v3591
        %v3612 = vpack.c.b16 %v3594, %v3593
        %v3613 = vpack.c.b16 %v3596, %v3595
        %v3614 = vpack.c.b16 %v3598, %v3597
        %v3616 = vsel %vm315, %v3599, 0
        %v3619 = vsel %vm315, %v3600, 0
        %v3622 = vsel %vm315, %v3601, 0
        %v3625 = vsel %vm315, %v3602, 0
        %v3628 = vsel %vm315, %v3603, 0
        %v3631 = vsel %vm315, %v3604, 0
        %v3634 = vsel %vm315, %v3605, 0
        %v3637 = vsel %vm315, %v3606, 0
        %v3640 = vsel %vm315, %v3607, 0
        %v3643 = vsel %vm315, %v3608, 0
        %v3646 = vsel %vm315, %v3609, 0
        %v3649 = vsel %vm315, %v3610, 0
        %v3652 = vsel %vm315, %v3611, 0
        %v3655 = vsel %vm315, %v3612, 0
        %v3658 = vsel %vm315, %v3613, 0
        %v3661 = vsel %vm315, %v3614, 0
        %v3664 = vsel %vm1861, %v3566, 0
        %3666 = vmatprep.subr.bf16.mxu0 0
        %3667 = vmatpush1.bf16.msra.mxu0 %v3664
        %3668 = vmatprep.subr.bf16.mxu0 0
        %3669 = vmatpush1.bf16.msra.mxu0 0
        %3670 = vmatprep.subr.bf16.mxu0 0
        %3671 = vmatpush1.bf16.msra.mxu0 0
        %3672 = vmatprep.subr.bf16.mxu0 0
        %3673 = vmatpush1.bf16.msra.mxu0 0
        %3674 = vmatprep.subr.bf16.mxu0 0
        %3675 = vmatpush1.bf16.msra.mxu0 0
        %3676 = vmatprep.subr.bf16.mxu0 0
        %3677 = vmatpush1.bf16.msra.mxu0 0
        %3678 = vmatprep.subr.bf16.mxu0 0
        %3679 = vmatpush1.bf16.msra.mxu0 0
        %3680 = vmatprep.subr.bf16.mxu0 0
        %3681 = vmatpush1.bf16.msra.mxu0 0
        %3682 = vmatprep.subr.bf16.mxu0 0
        %3683 = vmatpush1.bf16.msra.mxu0 0
        %3684 = vmatprep.subr.bf16.mxu0 0
        %3685 = vmatpush1.bf16.msra.mxu0 0
        %3686 = vmatprep.subr.bf16.mxu0 0
        %3687 = vmatpush1.bf16.msra.mxu0 0
        %3688 = vmatprep.subr.bf16.mxu0 0
        %3689 = vmatpush1.bf16.msra.mxu0 0
        %3690 = vmatprep.subr.bf16.mxu0 0
        %3691 = vmatpush1.bf16.msra.mxu0 0
        %3692 = vmatprep.subr.bf16.mxu0 0
        %3693 = vmatpush1.bf16.msra.mxu0 0
        %3694 = vmatprep.subr.bf16.mxu0 0
        %3695 = vmatpush1.bf16.msra.mxu0 0
        %3696 = vmatprep.subr.bf16.mxu0 0
        %3697 = vmatpush1.bf16.msra.mxu0 0
        %3698 = vmatprep.mubr.bf16.mxu0 0
        %3699 = vmatmul.mubr.bf16.gmra.mrb[0].mxu0 %v3616
        %v3700 = vpop.f32.mrb[0].mxu0
        %v3701 = vadd.f32 0.0, %v3700
        %v3702 = vpop.f32.mrb[0].mxu0
        %v3703 = vpop.f32.mrb[0].mxu0
        %v3704 = vadd.f32 0.0, %v3703
        %v3705 = vpop.f32.mrb[0].mxu0
        %3706 = vmatprep.mubr.bf16.mxu0 0
        %3707 = vmatmul.mubr.bf16.gmra.mrb[0].mxu0 %v3619
        %v3708 = vpop.f32.mrb[0].mxu0
        %v3709 = vadd.f32 0.0, %v3708
        %v3710 = vpop.f32.mrb[0].mxu0
        %v3711 = vpop.f32.mrb[0].mxu0
        %v3712 = vadd.f32 0.0, %v3711
        %v3713 = vpop.f32.mrb[0].mxu0
        %3714 = vmatprep.mubr.bf16.mxu0 0
        %3715 = vmatmul.mubr.bf16.gmra.mrb[0].mxu0 %v3622
        %v3716 = vpop.f32.mrb[0].mxu0
        %v3717 = vadd.f32 0.0, %v3716
        %v3718 = vpop.f32.mrb[0].mxu0
        %v3719 = vpop.f32.mrb[0].mxu0
        %v3720 = vadd.f32 0.0, %v3719
        %v3721 = vpop.f32.mrb[0].mxu0
        %3722 = vmatprep.mubr.bf16.mxu0 0
        %3723 = vmatmul.mubr.bf16.gmra.mrb[0].mxu0 %v3625
        %v3724 = vpop.f32.mrb[0].mxu0
        %v3725 = vadd.f32 0.0, %v3724
        %v3726 = vpop.f32.mrb[0].mxu0
        %v3727 = vpop.f32.mrb[0].mxu0
        %v3728 = vadd.f32 0.0, %v3727
        %v3729 = vpop.f32.mrb[0].mxu0
        %3730 = vmatprep.mubr.bf16.mxu0 0
        %3731 = vmatmul.mubr.bf16.gmra.mrb[0].mxu0 %v3628
        %v3732 = vpop.f32.mrb[0].mxu0
        %v3733 = vadd.f32 0.0, %v3732
        %v3734 = vpop.f32.mrb[0].mxu0
        %v3735 = vpop.f32.mrb[0].mxu0
        %v3736 = vadd.f32 0.0, %v3735
        %v3737 = vpop.f32.mrb[0].mxu0
        %3738 = vmatprep.mubr.bf16.mxu0 0
        %3739 = vmatmul.mubr.bf16.gmra.mrb[0].mxu0 %v3631
        %v3740 = vpop.f32.mrb[0].mxu0
        %v3741 = vadd.f32 0.0, %v3740
        %v3742 = vpop.f32.mrb[0].mxu0
        %v3743 = vpop.f32.mrb[0].mxu0
        %v3744 = vadd.f32 0.0, %v3743
        %v3745 = vpop.f32.mrb[0].mxu0
        %3746 = vmatprep.mubr.bf16.mxu0 0
        %3747 = vmatmul.mubr.bf16.gmra.mrb[0].mxu0 %v3634
        %v3748 = vpop.f32.mrb[0].mxu0
        %v3749 = vadd.f32 0.0, %v3748
        %v3750 = vpop.f32.mrb[0].mxu0
        %v3751 = vpop.f32.mrb[0].mxu0
        %v3752 = vadd.f32 0.0, %v3751
        %v3753 = vpop.f32.mrb[0].mxu0
        %3754 = vmatprep.mubr.bf16.mxu0 0
        %3755 = vmatmul.mubr.bf16.gmra.mrb[0].mxu0 %v3637
        %v3756 = vpop.f32.mrb[0].mxu0
        %v3757 = vadd.f32 0.0, %v3756
        %v3758 = vpop.f32.mrb[0].mxu0
        %v3759 = vpop.f32.mrb[0].mxu0
        %v3760 = vadd.f32 0.0, %v3759
        %v3761 = vpop.f32.mrb[0].mxu0
        %3762 = vmatprep.mubr.bf16.mxu0 0
        %3763 = vmatmul.mubr.bf16.gmra.mrb[0].mxu0 %v3640
        %v3764 = vpop.f32.mrb[0].mxu0
        %v3765 = vadd.f32 0.0, %v3764
        %v3766 = vpop.f32.mrb[0].mxu0
        %v3767 = vpop.f32.mrb[0].mxu0
        %v3768 = vadd.f32 0.0, %v3767
        %v3769 = vpop.f32.mrb[0].mxu0
        %3770 = vmatprep.mubr.bf16.mxu0 0
        %3771 = vmatmul.mubr.bf16.gmra.mrb[0].mxu0 %v3643
        %v3772 = vpop.f32.mrb[0].mxu0
        %v3773 = vadd.f32 0.0, %v3772
        %v3774 = vpop.f32.mrb[0].mxu0
        %v3775 = vpop.f32.mrb[0].mxu0
        %v3776 = vadd.f32 0.0, %v3775
        %v3777 = vpop.f32.mrb[0].mxu0
        %3778 = vmatprep.mubr.bf16.mxu0 0
        %3779 = vmatmul.mubr.bf16.gmra.mrb[0].mxu0 %v3646
        %v3780 = vpop.f32.mrb[0].mxu0
        %v3781 = vadd.f32 0.0, %v3780
        %v3782 = vpop.f32.mrb[0].mxu0
        %v3783 = vpop.f32.mrb[0].mxu0
        %v3784 = vadd.f32 0.0, %v3783
        %v3785 = vpop.f32.mrb[0].mxu0
        %3786 = vmatprep.mubr.bf16.mxu0 0
        %3787 = vmatmul.mubr.bf16.gmra.mrb[0].mxu0 %v3649
        %v3788 = vpop.f32.mrb[0].mxu0
        %v3789 = vadd.f32 0.0, %v3788
        %v3790 = vpop.f32.mrb[0].mxu0
        %v3791 = vpop.f32.mrb[0].mxu0
        %v3792 = vadd.f32 0.0, %v3791
        %v3793 = vpop.f32.mrb[0].mxu0
        %3794 = vmatprep.mubr.bf16.mxu0 0
        %3795 = vmatmul.mubr.bf16.gmra.mrb[0].mxu0 %v3652
        %v3796 = vpop.f32.mrb[0].mxu0
        %v3797 = vadd.f32 0.0, %v3796
        %v3798 = vpop.f32.mrb[0].mxu0
        %v3799 = vpop.f32.mrb[0].mxu0
        %v3800 = vadd.f32 0.0, %v3799
        %v3801 = vpop.f32.mrb[0].mxu0
        %3802 = vmatprep.mubr.bf16.mxu0 0
        %3803 = vmatmul.mubr.bf16.gmra.mrb[0].mxu0 %v3655
        %v3804 = vpop.f32.mrb[0].mxu0
        %v3805 = vadd.f32 0.0, %v3804
        %v3806 = vpop.f32.mrb[0].mxu0
        %v3807 = vpop.f32.mrb[0].mxu0
        %v3808 = vadd.f32 0.0, %v3807
        %v3809 = vpop.f32.mrb[0].mxu0
        %3810 = vmatprep.mubr.bf16.mxu0 0
        %3811 = vmatmul.mubr.bf16.gmra.mrb[0].mxu0 %v3658
        %v3812 = vpop.f32.mrb[0].mxu0
        %v3813 = vadd.f32 0.0, %v3812
        %v3814 = vpop.f32.mrb[0].mxu0
        %v3815 = vpop.f32.mrb[0].mxu0
        %v3816 = vadd.f32 0.0, %v3815
        %v3817 = vpop.f32.mrb[0].mxu0
        %3818 = vmatprep.mubr.bf16.mxu0 0
        %3819 = vmatmul.mubr.bf16.gmra.mrb[0].mxu0 %v3661
        %v3820 = vpop.f32.mrb[0].mxu0
        %v3821 = vadd.f32 0.0, %v3820
        %v3822 = vpop.f32.mrb[0].mxu0
        %v3823 = vpop.f32.mrb[0].mxu0
        %v3824 = vadd.f32 0.0, %v3823
        %v3825 = vpop.f32.mrb[0].mxu0
        %3826 = vdwg.mxu0
        %v3827 = vadd.f32 %v3101, %v3701
        %v3828 = vadd.f32 %v3102, %v3704
        %v3829 = vadd.f32 %v3103, %v3709
        %v3830 = vadd.f32 %v3104, %v3712
        %v3831 = vadd.f32 %v3105, %v3717
        %v3832 = vadd.f32 %v3106, %v3720
        %v3833 = vadd.f32 %v3107, %v3725
        %v3834 = vadd.f32 %v3108, %v3728
        %v3835 = vadd.f32 %v3109, %v3733
        %v3836 = vadd.f32 %v3110, %v3736
        %v3837 = vadd.f32 %v3111, %v3741
        %v3838 = vadd.f32 %v3112, %v3744
        %v3839 = vadd.f32 %v3113, %v3749
        %v3840 = vadd.f32 %v3114, %v3752
        %v3841 = vadd.f32 %v3115, %v3757
        %v3842 = vadd.f32 %v3116, %v3760
        %v3843 = vadd.f32 %v3117, %v3765
        %v3844 = vadd.f32 %v3118, %v3768
        %v3845 = vadd.f32 %v3119, %v3773
        %v3846 = vadd.f32 %v3120, %v3776
        %v3847 = vadd.f32 %v3121, %v3781
        %v3848 = vadd.f32 %v3122, %v3784
        %v3849 = vadd.f32 %v3123, %v3789
        %v3850 = vadd.f32 %v3124, %v3792
        %v3851 = vadd.f32 %v3125, %v3797
        %v3852 = vadd.f32 %v3126, %v3800
        %v3853 = vadd.f32 %v3127, %v3805
        %v3854 = vadd.f32 %v3128, %v3808
        %v3855 = vadd.f32 %v3129, %v3813
        %v3856 = vadd.f32 %v3130, %v3816
        %v3857 = vadd.f32 %v3131, %v3821
        %v3858 = vadd.f32 %v3132, %v3824
        %v3859 = vld [vmem:[%s1212] sm:$0xe]
        %v3860 = vld [vmem:[%s1212 + $0xc] sm:$0xe]
        %v3861 = vld [vmem:[%s1212 + $0x18] sm:$0xe]
        %v3862 = vld [vmem:[%s1212 + $0x24] sm:$0xe]
        %v3863 = vld [vmem:[%s1212 + $0x30] sm:$0xe]
        %v3864 = vld [vmem:[%s1212 + $0x3c] sm:$0xe]
        %v3865 = vld [vmem:[%s1212 + $0x48] sm:$0xe]
        %v3866 = vld [vmem:[%s1212 + $0x54] sm:$0xe]
        %v3867 = vld [vmem:[%s1212 + $0x60] sm:$0xe]
        %v3868 = vld [vmem:[%s1212 + $0x6c] sm:$0xe]
        %v3869 = vld [vmem:[%s1212 + $0x78] sm:$0xe]
        %v3870 = vld [vmem:[%s1212 + $0x84] sm:$0xe]
        %v3871 = vld [vmem:[%s1212 + $0x90] sm:$0xe]
        %v3872 = vld [vmem:[%s1212 + $0x9c] sm:$0xe]
        %v3873 = vld [vmem:[%s1212 + $0xa8] sm:$0xe]
        %v3874 = vld [vmem:[%s1212 + $0xb4] sm:$0xe]
        %v3923 = vrot.slane %v3859, 5
        %v3924 = vrot.slane %v3923, 4
        %v3925 = vrot.slane %v3134, 5
        %v3926 = vsel %vm2368, %v3924, %v3925
        %v3927 = vrot.slane %v3925, 4
        %v3928 = vrot.slane %v3135, 5
        %v3929 = vsel %vm2368, %v3927, %v3928
        %v3930 = vrot.slane %v3860, 5
        %v3931 = vrot.slane %v3930, 4
        %v3932 = vrot.slane %v3137, 5
        %v3933 = vsel %vm2368, %v3931, %v3932
        %v3934 = vrot.slane %v3932, 4
        %v3935 = vrot.slane %v3138, 5
        %v3936 = vsel %vm2368, %v3934, %v3935
        %v3937 = vrot.slane %v3861, 5
        %v3938 = vrot.slane %v3937, 4
        %v3939 = vrot.slane %v3140, 5
        %v3940 = vsel %vm2368, %v3938, %v3939
        %v3941 = vrot.slane %v3939, 4
        %v3942 = vrot.slane %v3141, 5
        %v3943 = vsel %vm2368, %v3941, %v3942
        %v3944 = vrot.slane %v3862, 5
        %v3945 = vrot.slane %v3944, 4
        %v3946 = vrot.slane %v3143, 5
        %v3947 = vsel %vm2368, %v3945, %v3946
        %v3948 = vrot.slane %v3946, 4
        %v3949 = vrot.slane %v3144, 5
        %v3950 = vsel %vm2368, %v3948, %v3949
        %v3951 = vrot.slane %v3863, 5
        %v3952 = vrot.slane %v3951, 4
        %v3953 = vrot.slane %v3146, 5
        %v3954 = vsel %vm2368, %v3952, %v3953
        %v3955 = vrot.slane %v3953, 4
        %v3956 = vrot.slane %v3147, 5
        %v3957 = vsel %vm2368, %v3955, %v3956
        %v3958 = vrot.slane %v3864, 5
        %v3959 = vrot.slane %v3958, 4
        %v3960 = vrot.slane %v3149, 5
        %v3961 = vsel %vm2368, %v3959, %v3960
        %v3962 = vrot.slane %v3960, 4
        %v3963 = vrot.slane %v3150, 5
        %v3964 = vsel %vm2368, %v3962, %v3963
        %v3965 = vrot.slane %v3865, 5
        %v3966 = vrot.slane %v3965, 4
        %v3967 = vrot.slane %v3152, 5
        %v3968 = vsel %vm2368, %v3966, %v3967
        %v3969 = vrot.slane %v3967, 4
        %v3970 = vrot.slane %v3153, 5
        %v3971 = vsel %vm2368, %v3969, %v3970
        %v3972 = vrot.slane %v3866, 5
        %v3973 = vrot.slane %v3972, 4
        %v3974 = vrot.slane %v3155, 5
        %v3975 = vsel %vm2368, %v3973, %v3974
        %v3976 = vrot.slane %v3974, 4
        %v3977 = vrot.slane %v3156, 5
        %v3978 = vsel %vm2368, %v3976, %v3977
        %v3979 = vrot.slane %v3867, 5
        %v3980 = vrot.slane %v3979, 4
        %v3981 = vrot.slane %v3158, 5
        %v3982 = vsel %vm2368, %v3980, %v3981
        %v3983 = vrot.slane %v3981, 4
        %v3984 = vrot.slane %v3159, 5
        %v3985 = vsel %vm2368, %v3983, %v3984
        %v3986 = vrot.slane %v3868, 5
        %v3987 = vrot.slane %v3986, 4
        %v3988 = vrot.slane %v3161, 5
        %v3989 = vsel %vm2368, %v3987, %v3988
        %v3990 = vrot.slane %v3988, 4
        %v3991 = vrot.slane %v3162, 5
        %v3992 = vsel %vm2368, %v3990, %v3991
        %v3993 = vrot.slane %v3869, 5
        %v3994 = vrot.slane %v3993, 4
        %v3995 = vrot.slane %v3164, 5
        %v3996 = vsel %vm2368, %v3994, %v3995
        %v3997 = vrot.slane %v3995, 4
        %v3998 = vrot.slane %v3165, 5
        %v3999 = vsel %vm2368, %v3997, %v3998
        %v4000 = vrot.slane %v3870, 5
        %v4001 = vrot.slane %v4000, 4
        %v4002 = vrot.slane %v3167, 5
        %v4003 = vsel %vm2368, %v4001, %v4002
        %v4004 = vrot.slane %v4002, 4
        %v4005 = vrot.slane %v3168, 5
        %v4006 = vsel %vm2368, %v4004, %v4005
        %v4007 = vrot.slane %v3871, 5
        %v4008 = vrot.slane %v4007, 4
        %v4009 = vrot.slane %v3170, 5
        %v4010 = vsel %vm2368, %v4008, %v4009
        %v4011 = vrot.slane %v4009, 4
        %v4012 = vrot.slane %v3171, 5
        %v4013 = vsel %vm2368, %v4011, %v4012
        %v4014 = vrot.slane %v3872, 5
        %v4015 = vrot.slane %v4014, 4
        %v4016 = vrot.slane %v3173, 5
        %v4017 = vsel %vm2368, %v4015, %v4016
        %v4018 = vrot.slane %v4016, 4
        %v4019 = vrot.slane %v3174, 5
        %v4020 = vsel %vm2368, %v4018, %v4019
        %v4021 = vrot.slane %v3873, 5
        %v4022 = vrot.slane %v4021, 4
        %v4023 = vrot.slane %v3176, 5
        %v4024 = vsel %vm2368, %v4022, %v4023
        %v4025 = vrot.slane %v4023, 4
        %v4026 = vrot.slane %v3177, 5
        %v4027 = vsel %vm2368, %v4025, %v4026
        %v4028 = vrot.slane %v3874, 5
        %v4029 = vrot.slane %v4028, 4
        %v4030 = vrot.slane %v3179, 5
        %v4031 = vsel %vm2368, %v4029, %v4030
        %v4032 = vrot.slane %v4030, 4
        %v4033 = vrot.slane %v3180, 5
        %v4034 = vsel %vm2368, %v4032, %v4033
        %s4035 = scalar_lea.vmem %s4, 10
        %v4036 = vld [vmem:[%s4035] sm:$0x3]
        %v4037 = vunpack.c.l.b16 %v3926
        %v4038 = vunpack.c.l.b16 %v3929
        %v4039 = vunpack.c.l.b16 %v3933
        %v4040 = vunpack.c.l.b16 %v3936
        %v4041 = vunpack.c.l.b16 %v3940
        %v4042 = vunpack.c.l.b16 %v3943
        %v4043 = vunpack.c.l.b16 %v3947
        %v4044 = vunpack.c.l.b16 %v3950
        %v4045 = vunpack.c.l.b16 %v3954
        %v4046 = vunpack.c.l.b16 %v3957
        %v4047 = vunpack.c.l.b16 %v3961
        %v4048 = vunpack.c.l.b16 %v3964
        %v4049 = vunpack.c.l.b16 %v3968
        %v4050 = vunpack.c.l.b16 %v3971
        %v4051 = vunpack.c.l.b16 %v3975
        %v4052 = vunpack.c.l.b16 %v3978
        %v4053 = vunpack.c.l.b16 %v3982
        %v4054 = vunpack.c.l.b16 %v3985
        %v4055 = vunpack.c.l.b16 %v3989
        %v4056 = vunpack.c.l.b16 %v3992
        %v4057 = vunpack.c.l.b16 %v3996
        %v4058 = vunpack.c.l.b16 %v3999
        %v4059 = vunpack.c.l.b16 %v4003
        %v4060 = vunpack.c.l.b16 %v4006
        %v4061 = vunpack.c.l.b16 %v4010
        %v4062 = vunpack.c.l.b16 %v4013
        %v4063 = vunpack.c.l.b16 %v4017
        %v4064 = vunpack.c.l.b16 %v4020
        %v4065 = vunpack.c.l.b16 %v4024
        %v4066 = vunpack.c.l.b16 %v4027
        %v4067 = vunpack.c.l.b16 %v4031
        %v4068 = vunpack.c.l.b16 %v4034
        %v4069 = vpack.c.b16 %v4038, %v4037
        %v4070 = vpack.c.b16 %v4040, %v4039
        %v4071 = vpack.c.b16 %v4042, %v4041
        %v4072 = vpack.c.b16 %v4044, %v4043
        %v4073 = vpack.c.b16 %v4046, %v4045
        %v4074 = vpack.c.b16 %v4048, %v4047
        %v4075 = vpack.c.b16 %v4050, %v4049
        %v4076 = vpack.c.b16 %v4052, %v4051
        %v4077 = vpack.c.b16 %v4054, %v4053
        %v4078 = vpack.c.b16 %v4056, %v4055
        %v4079 = vpack.c.b16 %v4058, %v4057
        %v4080 = vpack.c.b16 %v4060, %v4059
        %v4081 = vpack.c.b16 %v4062, %v4061
        %v4082 = vpack.c.b16 %v4064, %v4063
        %v4083 = vpack.c.b16 %v4066, %v4065
        %v4084 = vpack.c.b16 %v4068, %v4067
        %v4086 = vsel %vm315, %v4069, 0
        %v4089 = vsel %vm315, %v4070, 0
        %v4092 = vsel %vm315, %v4071, 0
        %v4095 = vsel %vm315, %v4072, 0
        %v4098 = vsel %vm315, %v4073, 0
        %v4101 = vsel %vm315, %v4074, 0
        %v4104 = vsel %vm315, %v4075, 0
        %v4107 = vsel %vm315, %v4076, 0
        %v4110 = vsel %vm315, %v4077, 0
        %v4113 = vsel %vm315, %v4078, 0
        %v4116 = vsel %vm315, %v4079, 0
        %v4119 = vsel %vm315, %v4080, 0
        %v4122 = vsel %vm315, %v4081, 0
        %v4125 = vsel %vm315, %v4082, 0
        %v4128 = vsel %vm315, %v4083, 0
        %v4131 = vsel %vm315, %v4084, 0
        %v4134 = vsel %vm1861, %v4036, 0
        %4136 = vmatprep.subr.bf16.mxu0 0
        %4137 = vmatpush1.bf16.msra.mxu0 %v4134
        %4138 = vmatprep.subr.bf16.mxu0 0
        %4139 = vmatpush1.bf16.msra.mxu0 0
        %4140 = vmatprep.subr.bf16.mxu0 0
        %4141 = vmatpush1.bf16.msra.mxu0 0
        %4142 = vmatprep.subr.bf16.mxu0 0
        %4143 = vmatpush1.bf16.msra.mxu0 0
        %4144 = vmatprep.subr.bf16.mxu0 0
        %4145 = vmatpush1.bf16.msra.mxu0 0
        %4146 = vmatprep.subr.bf16.mxu0 0
        %4147 = vmatpush1.bf16.msra.mxu0 0
        %4148 = vmatprep.subr.bf16.mxu0 0
        %4149 = vmatpush1.bf16.msra.mxu0 0
        %4150 = vmatprep.subr.bf16.mxu0 0
        %4151 = vmatpush1.bf16.msra.mxu0 0
        %4152 = vmatprep.subr.bf16.mxu0 0
        %4153 = vmatpush1.bf16.msra.mxu0 0
        %4154 = vmatprep.subr.bf16.mxu0 0
        %4155 = vmatpush1.bf16.msra.mxu0 0
        %4156 = vmatprep.subr.bf16.mxu0 0
        %4157 = vmatpush1.bf16.msra.mxu0 0
        %4158 = vmatprep.subr.bf16.mxu0 0
        %4159 = vmatpush1.bf16.msra.mxu0 0
        %4160 = vmatprep.subr.bf16.mxu0 0
        %4161 = vmatpush1.bf16.msra.mxu0 0
        %4162 = vmatprep.subr.bf16.mxu0 0
        %4163 = vmatpush1.bf16.msra.mxu0 0
        %4164 = vmatprep.subr.bf16.mxu0 0
        %4165 = vmatpush1.bf16.msra.mxu0 0
        %4166 = vmatprep.subr.bf16.mxu0 0
        %4167 = vmatpush1.bf16.msra.mxu0 0
        %4168 = vmatprep.mubr.bf16.mxu0 0
        %4169 = vmatmul.mubr.bf16.gmra.mrb[0].mxu0 %v4086
        %v4170 = vpop.f32.mrb[0].mxu0
        %v4171 = vadd.f32 0.0, %v4170
        %v4172 = vpop.f32.mrb[0].mxu0
        %v4173 = vpop.f32.mrb[0].mxu0
        %v4174 = vadd.f32 0.0, %v4173
        %v4175 = vpop.f32.mrb[0].mxu0
        %4176 = vmatprep.mubr.bf16.mxu0 0
        %4177 = vmatmul.mubr.bf16.gmra.mrb[0].mxu0 %v4089
        %v4178 = vpop.f32.mrb[0].mxu0
        %v4179 = vadd.f32 0.0, %v4178
        %v4180 = vpop.f32.mrb[0].mxu0
        %v4181 = vpop.f32.mrb[0].mxu0
        %v4182 = vadd.f32 0.0, %v4181
        %v4183 = vpop.f32.mrb[0].mxu0
        %4184 = vmatprep.mubr.bf16.mxu0 0
        %4185 = vmatmul.mubr.bf16.gmra.mrb[0].mxu0 %v4092
        %v4186 = vpop.f32.mrb[0].mxu0
        %v4187 = vadd.f32 0.0, %v4186
        %v4188 = vpop.f32.mrb[0].mxu0
        %v4189 = vpop.f32.mrb[0].mxu0
        %v4190 = vadd.f32 0.0, %v4189
        %v4191 = vpop.f32.mrb[0].mxu0
        %4192 = vmatprep.mubr.bf16.mxu0 0
        %4193 = vmatmul.mubr.bf16.gmra.mrb[0].mxu0 %v4095
        %v4194 = vpop.f32.mrb[0].mxu0
        %v4195 = vadd.f32 0.0, %v4194
        %v4196 = vpop.f32.mrb[0].mxu0
        %v4197 = vpop.f32.mrb[0].mxu0
        %v4198 = vadd.f32 0.0, %v4197
        %v4199 = vpop.f32.mrb[0].mxu0
        %4200 = vmatprep.mubr.bf16.mxu0 0
        %4201 = vmatmul.mubr.bf16.gmra.mrb[0].mxu0 %v4098
        %v4202 = vpop.f32.mrb[0].mxu0
        %v4203 = vadd.f32 0.0, %v4202
        %v4204 = vpop.f32.mrb[0].mxu0
        %v4205 = vpop.f32.mrb[0].mxu0
        %v4206 = vadd.f32 0.0, %v4205
        %v4207 = vpop.f32.mrb[0].mxu0
        %4208 = vmatprep.mubr.bf16.mxu0 0
        %4209 = vmatmul.mubr.bf16.gmra.mrb[0].mxu0 %v4101
        %v4210 = vpop.f32.mrb[0].mxu0
        %v4211 = vadd.f32 0.0, %v4210
        %v4212 = vpop.f32.mrb[0].mxu0
        %v4213 = vpop.f32.mrb[0].mxu0
        %v4214 = vadd.f32 0.0, %v4213
        %v4215 = vpop.f32.mrb[0].mxu0
        %4216 = vmatprep.mubr.bf16.mxu0 0
        %4217 = vmatmul.mubr.bf16.gmra.mrb[0].mxu0 %v4104
        %v4218 = vpop.f32.mrb[0].mxu0
        %v4219 = vadd.f32 0.0, %v4218
        %v4220 = vpop.f32.mrb[0].mxu0
        %v4221 = vpop.f32.mrb[0].mxu0
        %v4222 = vadd.f32 0.0, %v4221
        %v4223 = vpop.f32.mrb[0].mxu0
        %4224 = vmatprep.mubr.bf16.mxu0 0
        %4225 = vmatmul.mubr.bf16.gmra.mrb[0].mxu0 %v4107
        %v4226 = vpop.f32.mrb[0].mxu0
        %v4227 = vadd.f32 0.0, %v4226
        %v4228 = vpop.f32.mrb[0].mxu0
        %v4229 = vpop.f32.mrb[0].mxu0
        %v4230 = vadd.f32 0.0, %v4229
        %v4231 = vpop.f32.mrb[0].mxu0
        %4232 = vmatprep.mubr.bf16.mxu0 0
        %4233 = vmatmul.mubr.bf16.gmra.mrb[0].mxu0 %v4110
        %v4234 = vpop.f32.mrb[0].mxu0
        %v4235 = vadd.f32 0.0, %v4234
        %v4236 = vpop.f32.mrb[0].mxu0
        %v4237 = vpop.f32.mrb[0].mxu0
        %v4238 = vadd.f32 0.0, %v4237
        %v4239 = vpop.f32.mrb[0].mxu0
        %4240 = vmatprep.mubr.bf16.mxu0 0
        %4241 = vmatmul.mubr.bf16.gmra.mrb[0].mxu0 %v4113
        %v4242 = vpop.f32.mrb[0].mxu0
        %v4243 = vadd.f32 0.0, %v4242
        %v4244 = vpop.f32.mrb[0].mxu0
        %v4245 = vpop.f32.mrb[0].mxu0
        %v4246 = vadd.f32 0.0, %v4245
        %v4247 = vpop.f32.mrb[0].mxu0
        %4248 = vmatprep.mubr.bf16.mxu0 0
        %4249 = vmatmul.mubr.bf16.gmra.mrb[0].mxu0 %v4116
        %v4250 = vpop.f32.mrb[0].mxu0
        %v4251 = vadd.f32 0.0, %v4250
        %v4252 = vpop.f32.mrb[0].mxu0
        %v4253 = vpop.f32.mrb[0].mxu0
        %v4254 = vadd.f32 0.0, %v4253
        %v4255 = vpop.f32.mrb[0].mxu0
        %4256 = vmatprep.mubr.bf16.mxu0 0
        %4257 = vmatmul.mubr.bf16.gmra.mrb[0].mxu0 %v4119
        %v4258 = vpop.f32.mrb[0].mxu0
        %v4259 = vadd.f32 0.0, %v4258
        %v4260 = vpop.f32.mrb[0].mxu0
        %v4261 = vpop.f32.mrb[0].mxu0
        %v4262 = vadd.f32 0.0, %v4261
        %v4263 = vpop.f32.mrb[0].mxu0
        %4264 = vmatprep.mubr.bf16.mxu0 0
        %4265 = vmatmul.mubr.bf16.gmra.mrb[0].mxu0 %v4122
        %v4266 = vpop.f32.mrb[0].mxu0
        %v4267 = vadd.f32 0.0, %v4266
        %v4268 = vpop.f32.mrb[0].mxu0
        %v4269 = vpop.f32.mrb[0].mxu0
        %v4270 = vadd.f32 0.0, %v4269
        %v4271 = vpop.f32.mrb[0].mxu0
        %4272 = vmatprep.mubr.bf16.mxu0 0
        %4273 = vmatmul.mubr.bf16.gmra.mrb[0].mxu0 %v4125
        %v4274 = vpop.f32.mrb[0].mxu0
        %v4275 = vadd.f32 0.0, %v4274
        %v4276 = vpop.f32.mrb[0].mxu0
        %v4277 = vpop.f32.mrb[0].mxu0
        %v4278 = vadd.f32 0.0, %v4277
        %v4279 = vpop.f32.mrb[0].mxu0
        %4280 = vmatprep.mubr.bf16.mxu0 0
        %4281 = vmatmul.mubr.bf16.gmra.mrb[0].mxu0 %v4128
        %v4282 = vpop.f32.mrb[0].mxu0
        %v4283 = vadd.f32 0.0, %v4282
        %v4284 = vpop.f32.mrb[0].mxu0
        %v4285 = vpop.f32.mrb[0].mxu0
        %v4286 = vadd.f32 0.0, %v4285
        %v4287 = vpop.f32.mrb[0].mxu0
        %4288 = vmatprep.mubr.bf16.mxu0 0
        %4289 = vmatmul.mubr.bf16.gmra.mrb[0].mxu0 %v4131
        %v4290 = vpop.f32.mrb[0].mxu0
        %v4291 = vadd.f32 0.0, %v4290
        %v4292 = vpop.f32.mrb[0].mxu0
        %v4293 = vpop.f32.mrb[0].mxu0
        %v4294 = vadd.f32 0.0, %v4293
        %v4295 = vpop.f32.mrb[0].mxu0
        %4296 = vdwg.mxu0
        %v4297 = vadd.f32 %v3827, %v4171
        %v4298 = vadd.f32 %v3828, %v4174
        %v4299 = vadd.f32 %v3829, %v4179
        %v4300 = vadd.f32 %v3830, %v4182
        %v4301 = vadd.f32 %v3831, %v4187
        %v4302 = vadd.f32 %v3832, %v4190
        %v4303 = vadd.f32 %v3833, %v4195
        %v4304 = vadd.f32 %v3834, %v4198
        %v4305 = vadd.f32 %v3835, %v4203
        %v4306 = vadd.f32 %v3836, %v4206
        %v4307 = vadd.f32 %v3837, %v4211
        %v4308 = vadd.f32 %v3838, %v4214
        %v4309 = vadd.f32 %v3839, %v4219
        %v4310 = vadd.f32 %v3840, %v4222
        %v4311 = vadd.f32 %v3841, %v4227
        %v4312 = vadd.f32 %v3842, %v4230
        %v4313 = vadd.f32 %v3843, %v4235
        %v4314 = vadd.f32 %v3844, %v4238
        %v4315 = vadd.f32 %v3845, %v4243
        %v4316 = vadd.f32 %v3846, %v4246
        %v4317 = vadd.f32 %v3847, %v4251
        %v4318 = vadd.f32 %v3848, %v4254
        %v4319 = vadd.f32 %v3849, %v4259
        %v4320 = vadd.f32 %v3850, %v4262
        %v4321 = vadd.f32 %v3851, %v4267
        %v4322 = vadd.f32 %v3852, %v4270
        %v4323 = vadd.f32 %v3853, %v4275
        %v4324 = vadd.f32 %v3854, %v4278
        %v4325 = vadd.f32 %v3855, %v4283
        %v4326 = vadd.f32 %v3856, %v4286
        %v4327 = vadd.f32 %v3857, %v4291
        %v4328 = vadd.f32 %v3858, %v4294
        %s4329 = scalar_lea.vmem [#allocation2], 24
        %v4330 = vld [vmem:[%s4329] sm:$0xf]
        %v4331 = vld [vmem:[%s4329 + $0x4] sm:$0xf]
        %v4332 = vld [vmem:[%s4329 + $0xc] sm:$0xf]
        %v4333 = vld [vmem:[%s4329 + $0x10] sm:$0xf]
        %v4334 = vld [vmem:[%s4329 + $0x18] sm:$0xf]
        %v4335 = vld [vmem:[%s4329 + $0x1c] sm:$0xf]
        %v4336 = vld [vmem:[%s4329 + $0x24] sm:$0xf]
        %v4337 = vld [vmem:[%s4329 + $0x28] sm:$0xf]
        %v4338 = vld [vmem:[%s4329 + $0x30] sm:$0xf]
        %v4339 = vld [vmem:[%s4329 + $0x34] sm:$0xf]
        %v4340 = vld [vmem:[%s4329 + $0x3c] sm:$0xf]
        %v4341 = vld [vmem:[%s4329 + $0x40] sm:$0xf]
        %v4342 = vld [vmem:[%s4329 + $0x48] sm:$0xf]
        %v4343 = vld [vmem:[%s4329 + $0x4c] sm:$0xf]
        %v4344 = vld [vmem:[%s4329 + $0x54] sm:$0xf]
        %v4345 = vld [vmem:[%s4329 + $0x58] sm:$0xf]
        %v4346 = vld [vmem:[%s4329 + $0x60] sm:$0xf]
        %v4347 = vld [vmem:[%s4329 + $0x64] sm:$0xf]
        %v4348 = vld [vmem:[%s4329 + $0x6c] sm:$0xf]
        %v4349 = vld [vmem:[%s4329 + $0x70] sm:$0xf]
        %v4350 = vld [vmem:[%s4329 + $0x78] sm:$0xf]
        %v4351 = vld [vmem:[%s4329 + $0x7c] sm:$0xf]
        %v4352 = vld [vmem:[%s4329 + $0x84] sm:$0xf]
        %v4353 = vld [vmem:[%s4329 + $0x88] sm:$0xf]
        %v4354 = vld [vmem:[%s4329 + $0x90] sm:$0xf]
        %v4355 = vld [vmem:[%s4329 + $0x94] sm:$0xf]
        %v4356 = vld [vmem:[%s4329 + $0x9c] sm:$0xf]
        %v4357 = vld [vmem:[%s4329 + $0xa0] sm:$0xf]
        %v4358 = vld [vmem:[%s4329 + $0xa8] sm:$0xf]
        %v4359 = vld [vmem:[%s4329 + $0xac] sm:$0xf]
        %v4360 = vld [vmem:[%s4329 + $0xb4] sm:$0xf]
        %v4361 = vld [vmem:[%s4329 + $0xb8] sm:$0xf]
        %s4362 = scalar_lea.vmem %s4, 12
        %v4363 = vld [vmem:[%s4362] sm:$0x3]
        %v4396 = vunpack.c.l.b16 %v4330
        %v4397 = vunpack.c.l.b16 %v4331
        %v4398 = vunpack.c.l.b16 %v4332
        %v4399 = vunpack.c.l.b16 %v4333
        %v4400 = vunpack.c.l.b16 %v4334
        %v4401 = vunpack.c.l.b16 %v4335
        %v4402 = vunpack.c.l.b16 %v4336
        %v4403 = vunpack.c.l.b16 %v4337
        %v4404 = vunpack.c.l.b16 %v4338
        %v4405 = vunpack.c.l.b16 %v4339
        %v4406 = vunpack.c.l.b16 %v4340
        %v4407 = vunpack.c.l.b16 %v4341
        %v4408 = vunpack.c.l.b16 %v4342
        %v4409 = vunpack.c.l.b16 %v4343
        %v4410 = vunpack.c.l.b16 %v4344
        %v4411 = vunpack.c.l.b16 %v4345
        %v4412 = vunpack.c.l.b16 %v4346
        %v4413 = vunpack.c.l.b16 %v4347
        %v4414 = vunpack.c.l.b16 %v4348
        %v4415 = vunpack.c.l.b16 %v4349
        %v4416 = vunpack.c.l.b16 %v4350
        %v4417 = vunpack.c.l.b16 %v4351
        %v4418 = vunpack.c.l.b16 %v4352
        %v4419 = vunpack.c.l.b16 %v4353
        %v4420 = vunpack.c.l.b16 %v4354
        %v4421 = vunpack.c.l.b16 %v4355
        %v4422 = vunpack.c.l.b16 %v4356
        %v4423 = vunpack.c.l.b16 %v4357
        %v4424 = vunpack.c.l.b16 %v4358
        %v4425 = vunpack.c.l.b16 %v4359
        %v4426 = vunpack.c.l.b16 %v4360
        %v4427 = vunpack.c.l.b16 %v4361
        %v4428 = vpack.c.b16 %v4397, %v4396
        %v4429 = vpack.c.b16 %v4399, %v4398
        %v4430 = vpack.c.b16 %v4401, %v4400
        %v4431 = vpack.c.b16 %v4403, %v4402
        %v4432 = vpack.c.b16 %v4405, %v4404
        %v4433 = vpack.c.b16 %v4407, %v4406
        %v4434 = vpack.c.b16 %v4409, %v4408
        %v4435 = vpack.c.b16 %v4411, %v4410
        %v4436 = vpack.c.b16 %v4413, %v4412
        %v4437 = vpack.c.b16 %v4415, %v4414
        %v4438 = vpack.c.b16 %v4417, %v4416
        %v4439 = vpack.c.b16 %v4419, %v4418
        %v4440 = vpack.c.b16 %v4421, %v4420
        %v4441 = vpack.c.b16 %v4423, %v4422
        %v4442 = vpack.c.b16 %v4425, %v4424
        %v4443 = vpack.c.b16 %v4427, %v4426
        %v4445 = vsel %vm315, %v4428, 0
        %v4448 = vsel %vm315, %v4429, 0
        %v4451 = vsel %vm315, %v4430, 0
        %v4454 = vsel %vm315, %v4431, 0
        %v4457 = vsel %vm315, %v4432, 0
        %v4460 = vsel %vm315, %v4433, 0
        %v4463 = vsel %vm315, %v4434, 0
        %v4466 = vsel %vm315, %v4435, 0
        %v4469 = vsel %vm315, %v4436, 0
        %v4472 = vsel %vm315, %v4437, 0
        %v4475 = vsel %vm315, %v4438, 0
        %v4478 = vsel %vm315, %v4439, 0
        %v4481 = vsel %vm315, %v4440, 0
        %v4484 = vsel %vm315, %v4441, 0
        %v4487 = vsel %vm315, %v4442, 0
        %v4490 = vsel %vm315, %v4443, 0
        %v4493 = vsel %vm1861, %v4363, 0
        %4495 = vmatprep.subr.bf16.mxu0 0
        %4496 = vmatpush1.bf16.msra.mxu0 %v4493
        %4497 = vmatprep.subr.bf16.mxu0 0
        %4498 = vmatpush1.bf16.msra.mxu0 0
        %4499 = vmatprep.subr.bf16.mxu0 0
        %4500 = vmatpush1.bf16.msra.mxu0 0
        %4501 = vmatprep.subr.bf16.mxu0 0
        %4502 = vmatpush1.bf16.msra.mxu0 0
        %4503 = vmatprep.subr.bf16.mxu0 0
        %4504 = vmatpush1.bf16.msra.mxu0 0
        %4505 = vmatprep.subr.bf16.mxu0 0
        %4506 = vmatpush1.bf16.msra.mxu0 0
        %4507 = vmatprep.subr.bf16.mxu0 0
        %4508 = vmatpush1.bf16.msra.mxu0 0
        %4509 = vmatprep.subr.bf16.mxu0 0
        %4510 = vmatpush1.bf16.msra.mxu0 0
        %4511 = vmatprep.subr.bf16.mxu0 0
        %4512 = vmatpush1.bf16.msra.mxu0 0
        %4513 = vmatprep.subr.bf16.mxu0 0
        %4514 = vmatpush1.bf16.msra.mxu0 0
        %4515 = vmatprep.subr.bf16.mxu0 0
        %4516 = vmatpush1.bf16.msra.mxu0 0
        %4517 = vmatprep.subr.bf16.mxu0 0
        %4518 = vmatpush1.bf16.msra.mxu0 0
        %4519 = vmatprep.subr.bf16.mxu0 0
        %4520 = vmatpush1.bf16.msra.mxu0 0
        %4521 = vmatprep.subr.bf16.mxu0 0
        %4522 = vmatpush1.bf16.msra.mxu0 0
        %4523 = vmatprep.subr.bf16.mxu0 0
        %4524 = vmatpush1.bf16.msra.mxu0 0
        %4525 = vmatprep.subr.bf16.mxu0 0
        %4526 = vmatpush1.bf16.msra.mxu0 0
        %4527 = vmatprep.mubr.bf16.mxu0 0
        %4528 = vmatmul.mubr.bf16.gmra.mrb[0].mxu0 %v4445
        %v4529 = vpop.f32.mrb[0].mxu0
        %v4530 = vadd.f32 0.0, %v4529
        %v4531 = vpop.f32.mrb[0].mxu0
        %v4532 = vpop.f32.mrb[0].mxu0
        %v4533 = vadd.f32 0.0, %v4532
        %v4534 = vpop.f32.mrb[0].mxu0
        %4535 = vmatprep.mubr.bf16.mxu0 0
        %4536 = vmatmul.mubr.bf16.gmra.mrb[0].mxu0 %v4448
        %v4537 = vpop.f32.mrb[0].mxu0
        %v4538 = vadd.f32 0.0, %v4537
        %v4539 = vpop.f32.mrb[0].mxu0
        %v4540 = vpop.f32.mrb[0].mxu0
        %v4541 = vadd.f32 0.0, %v4540
        %v4542 = vpop.f32.mrb[0].mxu0
        %4543 = vmatprep.mubr.bf16.mxu0 0
        %4544 = vmatmul.mubr.bf16.gmra.mrb[0].mxu0 %v4451
        %v4545 = vpop.f32.mrb[0].mxu0
        %v4546 = vadd.f32 0.0, %v4545
        %v4547 = vpop.f32.mrb[0].mxu0
        %v4548 = vpop.f32.mrb[0].mxu0
        %v4549 = vadd.f32 0.0, %v4548
        %v4550 = vpop.f32.mrb[0].mxu0
        %4551 = vmatprep.mubr.bf16.mxu0 0
        %4552 = vmatmul.mubr.bf16.gmra.mrb[0].mxu0 %v4454
        %v4553 = vpop.f32.mrb[0].mxu0
        %v4554 = vadd.f32 0.0, %v4553
        %v4555 = vpop.f32.mrb[0].mxu0
        %v4556 = vpop.f32.mrb[0].mxu0
        %v4557 = vadd.f32 0.0, %v4556
        %v4558 = vpop.f32.mrb[0].mxu0
        %4559 = vmatprep.mubr.bf16.mxu0 0
        %4560 = vmatmul.mubr.bf16.gmra.mrb[0].mxu0 %v4457
        %v4561 = vpop.f32.mrb[0].mxu0
        %v4562 = vadd.f32 0.0, %v4561
        %v4563 = vpop.f32.mrb[0].mxu0
        %v4564 = vpop.f32.mrb[0].mxu0
        %v4565 = vadd.f32 0.0, %v4564
        %v4566 = vpop.f32.mrb[0].mxu0
        %4567 = vmatprep.mubr.bf16.mxu0 0
        %4568 = vmatmul.mubr.bf16.gmra.mrb[0].mxu0 %v4460
        %v4569 = vpop.f32.mrb[0].mxu0
        %v4570 = vadd.f32 0.0, %v4569
        %v4571 = vpop.f32.mrb[0].mxu0
        %v4572 = vpop.f32.mrb[0].mxu0
        %v4573 = vadd.f32 0.0, %v4572
        %v4574 = vpop.f32.mrb[0].mxu0
        %4575 = vmatprep.mubr.bf16.mxu0 0
        %4576 = vmatmul.mubr.bf16.gmra.mrb[0].mxu0 %v4463
        %v4577 = vpop.f32.mrb[0].mxu0
        %v4578 = vadd.f32 0.0, %v4577
        %v4579 = vpop.f32.mrb[0].mxu0
        %v4580 = vpop.f32.mrb[0].mxu0
        %v4581 = vadd.f32 0.0, %v4580
        %v4582 = vpop.f32.mrb[0].mxu0
        %4583 = vmatprep.mubr.bf16.mxu0 0
        %4584 = vmatmul.mubr.bf16.gmra.mrb[0].mxu0 %v4466
        %v4585 = vpop.f32.mrb[0].mxu0
        %v4586 = vadd.f32 0.0, %v4585
        %v4587 = vpop.f32.mrb[0].mxu0
        %v4588 = vpop.f32.mrb[0].mxu0
        %v4589 = vadd.f32 0.0, %v4588
        %v4590 = vpop.f32.mrb[0].mxu0
        %4591 = vmatprep.mubr.bf16.mxu0 0
        %4592 = vmatmul.mubr.bf16.gmra.mrb[0].mxu0 %v4469
        %v4593 = vpop.f32.mrb[0].mxu0
        %v4594 = vadd.f32 0.0, %v4593
        %v4595 = vpop.f32.mrb[0].mxu0
        %v4596 = vpop.f32.mrb[0].mxu0
        %v4597 = vadd.f32 0.0, %v4596
        %v4598 = vpop.f32.mrb[0].mxu0
        %4599 = vmatprep.mubr.bf16.mxu0 0
        %4600 = vmatmul.mubr.bf16.gmra.mrb[0].mxu0 %v4472
        %v4601 = vpop.f32.mrb[0].mxu0
        %v4602 = vadd.f32 0.0, %v4601
        %v4603 = vpop.f32.mrb[0].mxu0
        %v4604 = vpop.f32.mrb[0].mxu0
        %v4605 = vadd.f32 0.0, %v4604
        %v4606 = vpop.f32.mrb[0].mxu0
        %4607 = vmatprep.mubr.bf16.mxu0 0
        %4608 = vmatmul.mubr.bf16.gmra.mrb[0].mxu0 %v4475
        %v4609 = vpop.f32.mrb[0].mxu0
        %v4610 = vadd.f32 0.0, %v4609
        %v4611 = vpop.f32.mrb[0].mxu0
        %v4612 = vpop.f32.mrb[0].mxu0
        %v4613 = vadd.f32 0.0, %v4612
        %v4614 = vpop.f32.mrb[0].mxu0
        %4615 = vmatprep.mubr.bf16.mxu0 0
        %4616 = vmatmul.mubr.bf16.gmra.mrb[0].mxu0 %v4478
        %v4617 = vpop.f32.mrb[0].mxu0
        %v4618 = vadd.f32 0.0, %v4617
        %v4619 = vpop.f32.mrb[0].mxu0
        %v4620 = vpop.f32.mrb[0].mxu0
        %v4621 = vadd.f32 0.0, %v4620
        %v4622 = vpop.f32.mrb[0].mxu0
        %4623 = vmatprep.mubr.bf16.mxu0 0
        %4624 = vmatmul.mubr.bf16.gmra.mrb[0].mxu0 %v4481
        %v4625 = vpop.f32.mrb[0].mxu0
        %v4626 = vadd.f32 0.0, %v4625
        %v4627 = vpop.f32.mrb[0].mxu0
        %v4628 = vpop.f32.mrb[0].mxu0
        %v4629 = vadd.f32 0.0, %v4628
        %v4630 = vpop.f32.mrb[0].mxu0
        %4631 = vmatprep.mubr.bf16.mxu0 0
        %4632 = vmatmul.mubr.bf16.gmra.mrb[0].mxu0 %v4484
        %v4633 = vpop.f32.mrb[0].mxu0
        %v4634 = vadd.f32 0.0, %v4633
        %v4635 = vpop.f32.mrb[0].mxu0
        %v4636 = vpop.f32.mrb[0].mxu0
        %v4637 = vadd.f32 0.0, %v4636
        %v4638 = vpop.f32.mrb[0].mxu0
        %4639 = vmatprep.mubr.bf16.mxu0 0
        %4640 = vmatmul.mubr.bf16.gmra.mrb[0].mxu0 %v4487
        %v4641 = vpop.f32.mrb[0].mxu0
        %v4642 = vadd.f32 0.0, %v4641
        %v4643 = vpop.f32.mrb[0].mxu0
        %v4644 = vpop.f32.mrb[0].mxu0
        %v4645 = vadd.f32 0.0, %v4644
        %v4646 = vpop.f32.mrb[0].mxu0
        %4647 = vmatprep.mubr.bf16.mxu0 0
        %4648 = vmatmul.mubr.bf16.gmra.mrb[0].mxu0 %v4490
        %v4649 = vpop.f32.mrb[0].mxu0
        %v4650 = vadd.f32 0.0, %v4649
        %v4651 = vpop.f32.mrb[0].mxu0
        %v4652 = vpop.f32.mrb[0].mxu0
        %v4653 = vadd.f32 0.0, %v4652
        %v4654 = vpop.f32.mrb[0].mxu0
        %4655 = vdwg.mxu0
        %v4656 = vadd.f32 %v4297, %v4530
        %v4657 = vadd.f32 %v4298, %v4533
        %v4658 = vadd.f32 %v4299, %v4538
        %v4659 = vadd.f32 %v4300, %v4541
        %v4660 = vadd.f32 %v4301, %v4546
        %v4661 = vadd.f32 %v4302, %v4549
        %v4662 = vadd.f32 %v4303, %v4554
        %v4663 = vadd.f32 %v4304, %v4557
        %v4664 = vadd.f32 %v4305, %v4562
        %v4665 = vadd.f32 %v4306, %v4565
        %v4666 = vadd.f32 %v4307, %v4570
        %v4667 = vadd.f32 %v4308, %v4573
        %v4668 = vadd.f32 %v4309, %v4578
        %v4669 = vadd.f32 %v4310, %v4581
        %v4670 = vadd.f32 %v4311, %v4586
        %v4671 = vadd.f32 %v4312, %v4589
        %v4672 = vadd.f32 %v4313, %v4594
        %v4673 = vadd.f32 %v4314, %v4597
        %v4674 = vadd.f32 %v4315, %v4602
        %v4675 = vadd.f32 %v4316, %v4605
        %v4676 = vadd.f32 %v4317, %v4610
        %v4677 = vadd.f32 %v4318, %v4613
        %v4678 = vadd.f32 %v4319, %v4618
        %v4679 = vadd.f32 %v4320, %v4621
        %v4680 = vadd.f32 %v4321, %v4626
        %v4681 = vadd.f32 %v4322, %v4629
        %v4682 = vadd.f32 %v4323, %v4634
        %v4683 = vadd.f32 %v4324, %v4637
        %v4684 = vadd.f32 %v4325, %v4642
        %v4685 = vadd.f32 %v4326, %v4645
        %v4686 = vadd.f32 %v4327, %v4650
        %v4687 = vadd.f32 %v4328, %v4653
        %v4688 = vld [vmem:[%s4329] sm:$0xf]
        %v4689 = vld [vmem:[%s4329 + $0x4] sm:$0xf]
        %v4690 = vld [vmem:[%s4329 + $0x8] sm:$0x1]
        %v4691 = vld [vmem:[%s4329 + $0xc] sm:$0xf]
        %v4692 = vld [vmem:[%s4329 + $0x10] sm:$0xf]
        %v4693 = vld [vmem:[%s4329 + $0x14] sm:$0x1]
        %v4694 = vld [vmem:[%s4329 + $0x18] sm:$0xf]
        %v4695 = vld [vmem:[%s4329 + $0x1c] sm:$0xf]
        %v4696 = vld [vmem:[%s4329 + $0x20] sm:$0x1]
        %v4697 = vld [vmem:[%s4329 + $0x24] sm:$0xf]
        %v4698 = vld [vmem:[%s4329 + $0x28] sm:$0xf]
        %v4699 = vld [vmem:[%s4329 + $0x2c] sm:$0x1]
        %v4700 = vld [vmem:[%s4329 + $0x30] sm:$0xf]
        %v4701 = vld [vmem:[%s4329 + $0x34] sm:$0xf]
        %v4702 = vld [vmem:[%s4329 + $0x38] sm:$0x1]
        %v4703 = vld [vmem:[%s4329 + $0x3c] sm:$0xf]
        %v4704 = vld [vmem:[%s4329 + $0x40] sm:$0xf]
        %v4705 = vld [vmem:[%s4329 + $0x44] sm:$0x1]
        %v4706 = vld [vmem:[%s4329 + $0x48] sm:$0xf]
        %v4707 = vld [vmem:[%s4329 + $0x4c] sm:$0xf]
        %v4708 = vld [vmem:[%s4329 + $0x50] sm:$0x1]
        %v4709 = vld [vmem:[%s4329 + $0x54] sm:$0xf]
        %v4710 = vld [vmem:[%s4329 + $0x58] sm:$0xf]
        %v4711 = vld [vmem:[%s4329 + $0x5c] sm:$0x1]
        %v4712 = vld [vmem:[%s4329 + $0x60] sm:$0xf]
        %v4713 = vld [vmem:[%s4329 + $0x64] sm:$0xf]
        %v4714 = vld [vmem:[%s4329 + $0x68] sm:$0x1]
        %v4715 = vld [vmem:[%s4329 + $0x6c] sm:$0xf]
        %v4716 = vld [vmem:[%s4329 + $0x70] sm:$0xf]
        %v4717 = vld [vmem:[%s4329 + $0x74] sm:$0x1]
        %v4718 = vld [vmem:[%s4329 + $0x78] sm:$0xf]
        %v4719 = vld [vmem:[%s4329 + $0x7c] sm:$0xf]
        %v4720 = vld [vmem:[%s4329 + $0x80] sm:$0x1]
        %v4721 = vld [vmem:[%s4329 + $0x84] sm:$0xf]
        %v4722 = vld [vmem:[%s4329 + $0x88] sm:$0xf]
        %v4723 = vld [vmem:[%s4329 + $0x8c] sm:$0x1]
        %v4724 = vld [vmem:[%s4329 + $0x90] sm:$0xf]
        %v4725 = vld [vmem:[%s4329 + $0x94] sm:$0xf]
        %v4726 = vld [vmem:[%s4329 + $0x98] sm:$0x1]
        %v4727 = vld [vmem:[%s4329 + $0x9c] sm:$0xf]
        %v4728 = vld [vmem:[%s4329 + $0xa0] sm:$0xf]
        %v4729 = vld [vmem:[%s4329 + $0xa4] sm:$0x1]
        %v4730 = vld [vmem:[%s4329 + $0xa8] sm:$0xf]
        %v4731 = vld [vmem:[%s4329 + $0xac] sm:$0xf]
        %v4732 = vld [vmem:[%s4329 + $0xb0] sm:$0x1]
        %v4733 = vld [vmem:[%s4329 + $0xb4] sm:$0xf]
        %v4734 = vld [vmem:[%s4329 + $0xb8] sm:$0xf]
        %v4735 = vld [vmem:[%s4329 + $0xbc] sm:$0x1]
        %v4737 = vshrl.u32 %v4688, 16
        %v4739 = vrot.slane %v4737, 4
        %v4740 = vshll.u32 %v4688, 16
        %v4742 = vrot.slane %v4740, 5
        %v4743 = vor.u32 %v4739, %v4742
        %v4744 = vrot.slane %v4743, 4
        %v4746 = vshll.u32 %v4689, 16
        %v4748 = vrot.slane %v4746, 5
        %v4749 = vsel %vm1378, %v4744, %v4748
        %v4750 = vshrl.u32 %v4689, 16
        %v4752 = vrot.slane %v4750, 4
        %v4753 = vor.u32 %v4752, %v4748
        %v4754 = vrot.slane %v4753, 4
        %v4756 = vshll.u32 %v4690, 16
        %v4758 = vrot.slane %v4756, 5
        %v4759 = vsel %vm1378, %v4754, %v4758
        %v4761 = vshrl.u32 %v4691, 16
        %v4763 = vrot.slane %v4761, 4
        %v4764 = vshll.u32 %v4691, 16
        %v4766 = vrot.slane %v4764, 5
        %v4767 = vor.u32 %v4763, %v4766
        %v4768 = vrot.slane %v4767, 4
        %v4770 = vshll.u32 %v4692, 16
        %v4772 = vrot.slane %v4770, 5
        %v4773 = vsel %vm1378, %v4768, %v4772
        %v4774 = vshrl.u32 %v4692, 16
        %v4776 = vrot.slane %v4774, 4
        %v4777 = vor.u32 %v4776, %v4772
        %v4778 = vrot.slane %v4777, 4
        %v4780 = vshll.u32 %v4693, 16
        %v4782 = vrot.slane %v4780, 5
        %v4783 = vsel %vm1378, %v4778, %v4782
        %v4785 = vshrl.u32 %v4694, 16
        %v4787 = vrot.slane %v4785, 4
        %v4788 = vshll.u32 %v4694, 16
        %v4790 = vrot.slane %v4788, 5
        %v4791 = vor.u32 %v4787, %v4790
        %v4792 = vrot.slane %v4791, 4
        %v4794 = vshll.u32 %v4695, 16
        %v4796 = vrot.slane %v4794, 5
        %v4797 = vsel %vm1378, %v4792, %v4796
        %v4798 = vshrl.u32 %v4695, 16
        %v4800 = vrot.slane %v4798, 4
        %v4801 = vor.u32 %v4800, %v4796
        %v4802 = vrot.slane %v4801, 4
        %v4804 = vshll.u32 %v4696, 16
        %v4806 = vrot.slane %v4804, 5
        %v4807 = vsel %vm1378, %v4802, %v4806
        %v4809 = vshrl.u32 %v4697, 16
        %v4811 = vrot.slane %v4809, 4
        %v4812 = vshll.u32 %v4697, 16
        %v4814 = vrot.slane %v4812, 5
        %v4815 = vor.u32 %v4811, %v4814
        %v4816 = vrot.slane %v4815, 4
        %v4818 = vshll.u32 %v4698, 16
        %v4820 = vrot.slane %v4818, 5
        %v4821 = vsel %vm1378, %v4816, %v4820
        %v4822 = vshrl.u32 %v4698, 16
        %v4824 = vrot.slane %v4822, 4
        %v4825 = vor.u32 %v4824, %v4820
        %v4826 = vrot.slane %v4825, 4
        %v4828 = vshll.u32 %v4699, 16
        %v4830 = vrot.slane %v4828, 5
        %v4831 = vsel %vm1378, %v4826, %v4830
        %v4833 = vshrl.u32 %v4700, 16
        %v4835 = vrot.slane %v4833, 4
        %v4836 = vshll.u32 %v4700, 16
        %v4838 = vrot.slane %v4836, 5
        %v4839 = vor.u32 %v4835, %v4838
        %v4840 = vrot.slane %v4839, 4
        %v4842 = vshll.u32 %v4701, 16
        %v4844 = vrot.slane %v4842, 5
        %v4845 = vsel %vm1378, %v4840, %v4844
        %v4846 = vshrl.u32 %v4701, 16
        %v4848 = vrot.slane %v4846, 4
        %v4849 = vor.u32 %v4848, %v4844
        %v4850 = vrot.slane %v4849, 4
        %v4852 = vshll.u32 %v4702, 16
        %v4854 = vrot.slane %v4852, 5
        %v4855 = vsel %vm1378, %v4850, %v4854
        %v4857 = vshrl.u32 %v4703, 16
        %v4859 = vrot.slane %v4857, 4
        %v4860 = vshll.u32 %v4703, 16
        %v4862 = vrot.slane %v4860, 5
        %v4863 = vor.u32 %v4859, %v4862
        %v4864 = vrot.slane %v4863, 4
        %v4866 = vshll.u32 %v4704, 16
        %v4868 = vrot.slane %v4866, 5
        %v4869 = vsel %vm1378, %v4864, %v4868
        %v4870 = vshrl.u32 %v4704, 16
        %v4872 = vrot.slane %v4870, 4
        %v4873 = vor.u32 %v4872, %v4868
        %v4874 = vrot.slane %v4873, 4
        %v4876 = vshll.u32 %v4705, 16
        %v4878 = vrot.slane %v4876, 5
        %v4879 = vsel %vm1378, %v4874, %v4878
        %v4881 = vshrl.u32 %v4706, 16
        %v4883 = vrot.slane %v4881, 4
        %v4884 = vshll.u32 %v4706, 16
        %v4886 = vrot.slane %v4884, 5
        %v4887 = vor.u32 %v4883, %v4886
        %v4888 = vrot.slane %v4887, 4
        %v4890 = vshll.u32 %v4707, 16
        %v4892 = vrot.slane %v4890, 5
        %v4893 = vsel %vm1378, %v4888, %v4892
        %v4894 = vshrl.u32 %v4707, 16
        %v4896 = vrot.slane %v4894, 4
        %v4897 = vor.u32 %v4896, %v4892
        %v4898 = vrot.slane %v4897, 4
        %v4900 = vshll.u32 %v4708, 16
        %v4902 = vrot.slane %v4900, 5
        %v4903 = vsel %vm1378, %v4898, %v4902
        %v4905 = vshrl.u32 %v4709, 16
        %v4907 = vrot.slane %v4905, 4
        %v4908 = vshll.u32 %v4709, 16
        %v4910 = vrot.slane %v4908, 5
        %v4911 = vor.u32 %v4907, %v4910
        %v4912 = vrot.slane %v4911, 4
        %v4914 = vshll.u32 %v4710, 16
        %v4916 = vrot.slane %v4914, 5
        %v4917 = vsel %vm1378, %v4912, %v4916
        %v4918 = vshrl.u32 %v4710, 16
        %v4920 = vrot.slane %v4918, 4
        %v4921 = vor.u32 %v4920, %v4916
        %v4922 = vrot.slane %v4921, 4
        %v4924 = vshll.u32 %v4711, 16
        %v4926 = vrot.slane %v4924, 5
        %v4927 = vsel %vm1378, %v4922, %v4926
        %v4929 = vshrl.u32 %v4712, 16
        %v4931 = vrot.slane %v4929, 4
        %v4932 = vshll.u32 %v4712, 16
        %v4934 = vrot.slane %v4932, 5
        %v4935 = vor.u32 %v4931, %v4934
        %v4936 = vrot.slane %v4935, 4
        %v4938 = vshll.u32 %v4713, 16
        %v4940 = vrot.slane %v4938, 5
        %v4941 = vsel %vm1378, %v4936, %v4940
        %v4942 = vshrl.u32 %v4713, 16
        %v4944 = vrot.slane %v4942, 4
        %v4945 = vor.u32 %v4944, %v4940
        %v4946 = vrot.slane %v4945, 4
        %v4948 = vshll.u32 %v4714, 16
        %v4950 = vrot.slane %v4948, 5
        %v4951 = vsel %vm1378, %v4946, %v4950
        %v4953 = vshrl.u32 %v4715, 16
        %v4955 = vrot.slane %v4953, 4
        %v4956 = vshll.u32 %v4715, 16
        %v4958 = vrot.slane %v4956, 5
        %v4959 = vor.u32 %v4955, %v4958
        %v4960 = vrot.slane %v4959, 4
        %v4962 = vshll.u32 %v4716, 16
        %v4964 = vrot.slane %v4962, 5
        %v4965 = vsel %vm1378, %v4960, %v4964
        %v4966 = vshrl.u32 %v4716, 16
        %v4968 = vrot.slane %v4966, 4
        %v4969 = vor.u32 %v4968, %v4964
        %v4970 = vrot.slane %v4969, 4
        %v4972 = vshll.u32 %v4717, 16
        %v4974 = vrot.slane %v4972, 5
        %v4975 = vsel %vm1378, %v4970, %v4974
        %v4977 = vshrl.u32 %v4718, 16
        %v4979 = vrot.slane %v4977, 4
        %v4980 = vshll.u32 %v4718, 16
        %v4982 = vrot.slane %v4980, 5
        %v4983 = vor.u32 %v4979, %v4982
        %v4984 = vrot.slane %v4983, 4
        %v4986 = vshll.u32 %v4719, 16
        %v4988 = vrot.slane %v4986, 5
        %v4989 = vsel %vm1378, %v4984, %v4988
        %v4990 = vshrl.u32 %v4719, 16
        %v4992 = vrot.slane %v4990, 4
        %v4993 = vor.u32 %v4992, %v4988
        %v4994 = vrot.slane %v4993, 4
        %v4996 = vshll.u32 %v4720, 16
        %v4998 = vrot.slane %v4996, 5
        %v4999 = vsel %vm1378, %v4994, %v4998
        %v5001 = vshrl.u32 %v4721, 16
        %v5003 = vrot.slane %v5001, 4
        %v5004 = vshll.u32 %v4721, 16
        %v5006 = vrot.slane %v5004, 5
        %v5007 = vor.u32 %v5003, %v5006
        %v5008 = vrot.slane %v5007, 4
        %v5010 = vshll.u32 %v4722, 16
        %v5012 = vrot.slane %v5010, 5
        %v5013 = vsel %vm1378, %v5008, %v5012
        %v5014 = vshrl.u32 %v4722, 16
        %v5016 = vrot.slane %v5014, 4
        %v5017 = vor.u32 %v5016, %v5012
        %v5018 = vrot.slane %v5017, 4
        %v5020 = vshll.u32 %v4723, 16
        %v5022 = vrot.slane %v5020, 5
        %v5023 = vsel %vm1378, %v5018, %v5022
        %v5025 = vshrl.u32 %v4724, 16
        %v5027 = vrot.slane %v5025, 4
        %v5028 = vshll.u32 %v4724, 16
        %v5030 = vrot.slane %v5028, 5
        %v5031 = vor.u32 %v5027, %v5030
        %v5032 = vrot.slane %v5031, 4
        %v5034 = vshll.u32 %v4725, 16
        %v5036 = vrot.slane %v5034, 5
        %v5037 = vsel %vm1378, %v5032, %v5036
        %v5038 = vshrl.u32 %v4725, 16
        %v5040 = vrot.slane %v5038, 4
        %v5041 = vor.u32 %v5040, %v5036
        %v5042 = vrot.slane %v5041, 4
        %v5044 = vshll.u32 %v4726, 16
        %v5046 = vrot.slane %v5044, 5
        %v5047 = vsel %vm1378, %v5042, %v5046
        %v5049 = vshrl.u32 %v4727, 16
        %v5051 = vrot.slane %v5049, 4
        %v5052 = vshll.u32 %v4727, 16
        %v5054 = vrot.slane %v5052, 5
        %v5055 = vor.u32 %v5051, %v5054
        %v5056 = vrot.slane %v5055, 4
        %v5058 = vshll.u32 %v4728, 16
        %v5060 = vrot.slane %v5058, 5
        %v5061 = vsel %vm1378, %v5056, %v5060
        %v5062 = vshrl.u32 %v4728, 16
        %v5064 = vrot.slane %v5062, 4
        %v5065 = vor.u32 %v5064, %v5060
        %v5066 = vrot.slane %v5065, 4
        %v5068 = vshll.u32 %v4729, 16
        %v5070 = vrot.slane %v5068, 5
        %v5071 = vsel %vm1378, %v5066, %v5070
        %v5073 = vshrl.u32 %v4730, 16
        %v5075 = vrot.slane %v5073, 4
        %v5076 = vshll.u32 %v4730, 16
        %v5078 = vrot.slane %v5076, 5
        %v5079 = vor.u32 %v5075, %v5078
        %v5080 = vrot.slane %v5079, 4
        %v5082 = vshll.u32 %v4731, 16
        %v5084 = vrot.slane %v5082, 5
        %v5085 = vsel %vm1378, %v5080, %v5084
        %v5086 = vshrl.u32 %v4731, 16
        %v5088 = vrot.slane %v5086, 4
        %v5089 = vor.u32 %v5088, %v5084
        %v5090 = vrot.slane %v5089, 4
        %v5092 = vshll.u32 %v4732, 16
        %v5094 = vrot.slane %v5092, 5
        %v5095 = vsel %vm1378, %v5090, %v5094
        %v5097 = vshrl.u32 %v4733, 16
        %v5099 = vrot.slane %v5097, 4
        %v5100 = vshll.u32 %v4733, 16
        %v5102 = vrot.slane %v5100, 5
        %v5103 = vor.u32 %v5099, %v5102
        %v5104 = vrot.slane %v5103, 4
        %v5106 = vshll.u32 %v4734, 16
        %v5108 = vrot.slane %v5106, 5
        %v5109 = vsel %vm1378, %v5104, %v5108
        %v5110 = vshrl.u32 %v4734, 16
        %v5112 = vrot.slane %v5110, 4
        %v5113 = vor.u32 %v5112, %v5108
        %v5114 = vrot.slane %v5113, 4
        %v5116 = vshll.u32 %v4735, 16
        %v5118 = vrot.slane %v5116, 5
        %v5119 = vsel %vm1378, %v5114, %v5118
        %s5120 = scalar_lea.vmem %s4, 14
        %v5121 = vld [vmem:[%s5120] sm:$0x3]
        %v5122 = vunpack.c.l.b16 %v4749
        %v5123 = vunpack.c.l.b16 %v4759
        %v5124 = vunpack.c.l.b16 %v4773
        %v5125 = vunpack.c.l.b16 %v4783
        %v5126 = vunpack.c.l.b16 %v4797
        %v5127 = vunpack.c.l.b16 %v4807
        %v5128 = vunpack.c.l.b16 %v4821
        %v5129 = vunpack.c.l.b16 %v4831
        %v5130 = vunpack.c.l.b16 %v4845
        %v5131 = vunpack.c.l.b16 %v4855
        %v5132 = vunpack.c.l.b16 %v4869
        %v5133 = vunpack.c.l.b16 %v4879
        %v5134 = vunpack.c.l.b16 %v4893
        %v5135 = vunpack.c.l.b16 %v4903
        %v5136 = vunpack.c.l.b16 %v4917
        %v5137 = vunpack.c.l.b16 %v4927
        %v5138 = vunpack.c.l.b16 %v4941
        %v5139 = vunpack.c.l.b16 %v4951
        %v5140 = vunpack.c.l.b16 %v4965
        %v5141 = vunpack.c.l.b16 %v4975
        %v5142 = vunpack.c.l.b16 %v4989
        %v5143 = vunpack.c.l.b16 %v4999
        %v5144 = vunpack.c.l.b16 %v5013
        %v5145 = vunpack.c.l.b16 %v5023
        %v5146 = vunpack.c.l.b16 %v5037
        %v5147 = vunpack.c.l.b16 %v5047
        %v5148 = vunpack.c.l.b16 %v5061
        %v5149 = vunpack.c.l.b16 %v5071
        %v5150 = vunpack.c.l.b16 %v5085
        %v5151 = vunpack.c.l.b16 %v5095
        %v5152 = vunpack.c.l.b16 %v5109
        %v5153 = vunpack.c.l.b16 %v5119
        %v5154 = vpack.c.b16 %v5123, %v5122
        %v5155 = vpack.c.b16 %v5125, %v5124
        %v5156 = vpack.c.b16 %v5127, %v5126
        %v5157 = vpack.c.b16 %v5129, %v5128
        %v5158 = vpack.c.b16 %v5131, %v5130
        %v5159 = vpack.c.b16 %v5133, %v5132
        %v5160 = vpack.c.b16 %v5135, %v5134
        %v5161 = vpack.c.b16 %v5137, %v5136
        %v5162 = vpack.c.b16 %v5139, %v5138
        %v5163 = vpack.c.b16 %v5141, %v5140
        %v5164 = vpack.c.b16 %v5143, %v5142
        %v5165 = vpack.c.b16 %v5145, %v5144
        %v5166 = vpack.c.b16 %v5147, %v5146
        %v5167 = vpack.c.b16 %v5149, %v5148
        %v5168 = vpack.c.b16 %v5151, %v5150
        %v5169 = vpack.c.b16 %v5153, %v5152
        %v5171 = vsel %vm315, %v5154, 0
        %v5174 = vsel %vm315, %v5155, 0
        %v5177 = vsel %vm315, %v5156, 0
        %v5180 = vsel %vm315, %v5157, 0
        %v5183 = vsel %vm315, %v5158, 0
        %v5186 = vsel %vm315, %v5159, 0
        %v5189 = vsel %vm315, %v5160, 0
        %v5192 = vsel %vm315, %v5161, 0
        %v5195 = vsel %vm315, %v5162, 0
        %v5198 = vsel %vm315, %v5163, 0
        %v5201 = vsel %vm315, %v5164, 0
        %v5204 = vsel %vm315, %v5165, 0
        %v5207 = vsel %vm315, %v5166, 0
        %v5210 = vsel %vm315, %v5167, 0
        %v5213 = vsel %vm315, %v5168, 0
        %v5216 = vsel %vm315, %v5169, 0
        %v5219 = vsel %vm1861, %v5121, 0
        %5221 = vmatprep.subr.bf16.mxu0 0
        %5222 = vmatpush1.bf16.msra.mxu0 %v5219
        %5223 = vmatprep.subr.bf16.mxu0 0
        %5224 = vmatpush1.bf16.msra.mxu0 0
        %5225 = vmatprep.subr.bf16.mxu0 0
        %5226 = vmatpush1.bf16.msra.mxu0 0
        %5227 = vmatprep.subr.bf16.mxu0 0
        %5228 = vmatpush1.bf16.msra.mxu0 0
        %5229 = vmatprep.subr.bf16.mxu0 0
        %5230 = vmatpush1.bf16.msra.mxu0 0
        %5231 = vmatprep.subr.bf16.mxu0 0
        %5232 = vmatpush1.bf16.msra.mxu0 0
        %5233 = vmatprep.subr.bf16.mxu0 0
        %5234 = vmatpush1.bf16.msra.mxu0 0
        %5235 = vmatprep.subr.bf16.mxu0 0
        %5236 = vmatpush1.bf16.msra.mxu0 0
        %5237 = vmatprep.subr.bf16.mxu0 0
        %5238 = vmatpush1.bf16.msra.mxu0 0
        %5239 = vmatprep.subr.bf16.mxu0 0
        %5240 = vmatpush1.bf16.msra.mxu0 0
        %5241 = vmatprep.subr.bf16.mxu0 0
        %5242 = vmatpush1.bf16.msra.mxu0 0
        %5243 = vmatprep.subr.bf16.mxu0 0
        %5244 = vmatpush1.bf16.msra.mxu0 0
        %5245 = vmatprep.subr.bf16.mxu0 0
        %5246 = vmatpush1.bf16.msra.mxu0 0
        %5247 = vmatprep.subr.bf16.mxu0 0
        %5248 = vmatpush1.bf16.msra.mxu0 0
        %5249 = vmatprep.subr.bf16.mxu0 0
        %5250 = vmatpush1.bf16.msra.mxu0 0
        %5251 = vmatprep.subr.bf16.mxu0 0
        %5252 = vmatpush1.bf16.msra.mxu0 0
        %5253 = vmatprep.mubr.bf16.mxu0 0
        %5254 = vmatmul.mubr.bf16.gmra.mrb[0].mxu0 %v5171
        %v5255 = vpop.f32.mrb[0].mxu0
        %v5256 = vadd.f32 0.0, %v5255
        %v5257 = vpop.f32.mrb[0].mxu0
        %v5258 = vpop.f32.mrb[0].mxu0
        %v5259 = vadd.f32 0.0, %v5258
        %v5260 = vpop.f32.mrb[0].mxu0
        %5261 = vmatprep.mubr.bf16.mxu0 0
        %5262 = vmatmul.mubr.bf16.gmra.mrb[0].mxu0 %v5174
        %v5263 = vpop.f32.mrb[0].mxu0
        %v5264 = vadd.f32 0.0, %v5263
        %v5265 = vpop.f32.mrb[0].mxu0
        %v5266 = vpop.f32.mrb[0].mxu0
        %v5267 = vadd.f32 0.0, %v5266
        %v5268 = vpop.f32.mrb[0].mxu0
        %5269 = vmatprep.mubr.bf16.mxu0 0
        %5270 = vmatmul.mubr.bf16.gmra.mrb[0].mxu0 %v5177
        %v5271 = vpop.f32.mrb[0].mxu0
        %v5272 = vadd.f32 0.0, %v5271
        %v5273 = vpop.f32.mrb[0].mxu0
        %v5274 = vpop.f32.mrb[0].mxu0
        %v5275 = vadd.f32 0.0, %v5274
        %v5276 = vpop.f32.mrb[0].mxu0
        %5277 = vmatprep.mubr.bf16.mxu0 0
        %5278 = vmatmul.mubr.bf16.gmra.mrb[0].mxu0 %v5180
        %v5279 = vpop.f32.mrb[0].mxu0
        %v5280 = vadd.f32 0.0, %v5279
        %v5281 = vpop.f32.mrb[0].mxu0
        %v5282 = vpop.f32.mrb[0].mxu0
        %v5283 = vadd.f32 0.0, %v5282
        %v5284 = vpop.f32.mrb[0].mxu0
        %5285 = vmatprep.mubr.bf16.mxu0 0
        %5286 = vmatmul.mubr.bf16.gmra.mrb[0].mxu0 %v5183
        %v5287 = vpop.f32.mrb[0].mxu0
        %v5288 = vadd.f32 0.0, %v5287
        %v5289 = vpop.f32.mrb[0].mxu0
        %v5290 = vpop.f32.mrb[0].mxu0
        %v5291 = vadd.f32 0.0, %v5290
        %v5292 = vpop.f32.mrb[0].mxu0
        %5293 = vmatprep.mubr.bf16.mxu0 0
        %5294 = vmatmul.mubr.bf16.gmra.mrb[0].mxu0 %v5186
        %v5295 = vpop.f32.mrb[0].mxu0
        %v5296 = vadd.f32 0.0, %v5295
        %v5297 = vpop.f32.mrb[0].mxu0
        %v5298 = vpop.f32.mrb[0].mxu0
        %v5299 = vadd.f32 0.0, %v5298
        %v5300 = vpop.f32.mrb[0].mxu0
        %5301 = vmatprep.mubr.bf16.mxu0 0
        %5302 = vmatmul.mubr.bf16.gmra.mrb[0].mxu0 %v5189
        %v5303 = vpop.f32.mrb[0].mxu0
        %v5304 = vadd.f32 0.0, %v5303
        %v5305 = vpop.f32.mrb[0].mxu0
        %v5306 = vpop.f32.mrb[0].mxu0
        %v5307 = vadd.f32 0.0, %v5306
        %v5308 = vpop.f32.mrb[0].mxu0
        %5309 = vmatprep.mubr.bf16.mxu0 0
        %5310 = vmatmul.mubr.bf16.gmra.mrb[0].mxu0 %v5192
        %v5311 = vpop.f32.mrb[0].mxu0
        %v5312 = vadd.f32 0.0, %v5311
        %v5313 = vpop.f32.mrb[0].mxu0
        %v5314 = vpop.f32.mrb[0].mxu0
        %v5315 = vadd.f32 0.0, %v5314
        %v5316 = vpop.f32.mrb[0].mxu0
        %5317 = vmatprep.mubr.bf16.mxu0 0
        %5318 = vmatmul.mubr.bf16.gmra.mrb[0].mxu0 %v5195
        %v5319 = vpop.f32.mrb[0].mxu0
        %v5320 = vadd.f32 0.0, %v5319
        %v5321 = vpop.f32.mrb[0].mxu0
        %v5322 = vpop.f32.mrb[0].mxu0
        %v5323 = vadd.f32 0.0, %v5322
        %v5324 = vpop.f32.mrb[0].mxu0
        %5325 = vmatprep.mubr.bf16.mxu0 0
        %5326 = vmatmul.mubr.bf16.gmra.mrb[0].mxu0 %v5198
        %v5327 = vpop.f32.mrb[0].mxu0
        %v5328 = vadd.f32 0.0, %v5327
        %v5329 = vpop.f32.mrb[0].mxu0
        %v5330 = vpop.f32.mrb[0].mxu0
        %v5331 = vadd.f32 0.0, %v5330
        %v5332 = vpop.f32.mrb[0].mxu0
        %5333 = vmatprep.mubr.bf16.mxu0 0
        %5334 = vmatmul.mubr.bf16.gmra.mrb[0].mxu0 %v5201
        %v5335 = vpop.f32.mrb[0].mxu0
        %v5336 = vadd.f32 0.0, %v5335
        %v5337 = vpop.f32.mrb[0].mxu0
        %v5338 = vpop.f32.mrb[0].mxu0
        %v5339 = vadd.f32 0.0, %v5338
        %v5340 = vpop.f32.mrb[0].mxu0
        %5341 = vmatprep.mubr.bf16.mxu0 0
        %5342 = vmatmul.mubr.bf16.gmra.mrb[0].mxu0 %v5204
        %v5343 = vpop.f32.mrb[0].mxu0
        %v5344 = vadd.f32 0.0, %v5343
        %v5345 = vpop.f32.mrb[0].mxu0
        %v5346 = vpop.f32.mrb[0].mxu0
        %v5347 = vadd.f32 0.0, %v5346
        %v5348 = vpop.f32.mrb[0].mxu0
        %5349 = vmatprep.mubr.bf16.mxu0 0
        %5350 = vmatmul.mubr.bf16.gmra.mrb[0].mxu0 %v5207
        %v5351 = vpop.f32.mrb[0].mxu0
        %v5352 = vadd.f32 0.0, %v5351
        %v5353 = vpop.f32.mrb[0].mxu0
        %v5354 = vpop.f32.mrb[0].mxu0
        %v5355 = vadd.f32 0.0, %v5354
        %v5356 = vpop.f32.mrb[0].mxu0
        %5357 = vmatprep.mubr.bf16.mxu0 0
        %5358 = vmatmul.mubr.bf16.gmra.mrb[0].mxu0 %v5210
        %v5359 = vpop.f32.mrb[0].mxu0
        %v5360 = vadd.f32 0.0, %v5359
        %v5361 = vpop.f32.mrb[0].mxu0
        %v5362 = vpop.f32.mrb[0].mxu0
        %v5363 = vadd.f32 0.0, %v5362
        %v5364 = vpop.f32.mrb[0].mxu0
        %5365 = vmatprep.mubr.bf16.mxu0 0
        %5366 = vmatmul.mubr.bf16.gmra.mrb[0].mxu0 %v5213
        %v5367 = vpop.f32.mrb[0].mxu0
        %v5368 = vadd.f32 0.0, %v5367
        %v5369 = vpop.f32.mrb[0].mxu0
        %v5370 = vpop.f32.mrb[0].mxu0
        %v5371 = vadd.f32 0.0, %v5370
        %v5372 = vpop.f32.mrb[0].mxu0
        %5373 = vmatprep.mubr.bf16.mxu0 0
        %5374 = vmatmul.mubr.bf16.gmra.mrb[0].mxu0 %v5216
        %v5375 = vpop.f32.mrb[0].mxu0
        %v5376 = vadd.f32 0.0, %v5375
        %v5377 = vpop.f32.mrb[0].mxu0
        %v5378 = vpop.f32.mrb[0].mxu0
        %v5379 = vadd.f32 0.0, %v5378
        %v5380 = vpop.f32.mrb[0].mxu0
        %5381 = vdwg.mxu0
        %v5382 = vadd.f32 %v4656, %v5256
        %v5383 = vadd.f32 %v4657, %v5259
        %v5384 = vadd.f32 %v4658, %v5264
        %v5385 = vadd.f32 %v4659, %v5267
        %v5386 = vadd.f32 %v4660, %v5272
        %v5387 = vadd.f32 %v4661, %v5275
        %v5388 = vadd.f32 %v4662, %v5280
        %v5389 = vadd.f32 %v4663, %v5283
        %v5390 = vadd.f32 %v4664, %v5288
        %v5391 = vadd.f32 %v4665, %v5291
        %v5392 = vadd.f32 %v4666, %v5296
        %v5393 = vadd.f32 %v4667, %v5299
        %v5394 = vadd.f32 %v4668, %v5304
        %v5395 = vadd.f32 %v4669, %v5307
        %v5396 = vadd.f32 %v4670, %v5312
        %v5397 = vadd.f32 %v4671, %v5315
        %v5398 = vadd.f32 %v4672, %v5320
        %v5399 = vadd.f32 %v4673, %v5323
        %v5400 = vadd.f32 %v4674, %v5328
        %v5401 = vadd.f32 %v4675, %v5331
        %v5402 = vadd.f32 %v4676, %v5336
        %v5403 = vadd.f32 %v4677, %v5339
        %v5404 = vadd.f32 %v4678, %v5344
        %v5405 = vadd.f32 %v4679, %v5347
        %v5406 = vadd.f32 %v4680, %v5352
        %v5407 = vadd.f32 %v4681, %v5355
        %v5408 = vadd.f32 %v4682, %v5360
        %v5409 = vadd.f32 %v4683, %v5363
        %v5410 = vadd.f32 %v4684, %v5368
        %v5411 = vadd.f32 %v4685, %v5371
        %v5412 = vadd.f32 %v4686, %v5376
        %v5413 = vadd.f32 %v4687, %v5379
        %v5414 = vld [vmem:[%s4329] sm:$0xe]
        %v5415 = vld [vmem:[%s4329 + $0xc] sm:$0xe]
        %v5416 = vld [vmem:[%s4329 + $0x18] sm:$0xe]
        %v5417 = vld [vmem:[%s4329 + $0x24] sm:$0xe]
        %v5418 = vld [vmem:[%s4329 + $0x30] sm:$0xe]
        %v5419 = vld [vmem:[%s4329 + $0x3c] sm:$0xe]
        %v5420 = vld [vmem:[%s4329 + $0x48] sm:$0xe]
        %v5421 = vld [vmem:[%s4329 + $0x54] sm:$0xe]
        %v5422 = vld [vmem:[%s4329 + $0x60] sm:$0xe]
        %v5423 = vld [vmem:[%s4329 + $0x6c] sm:$0xe]
        %v5424 = vld [vmem:[%s4329 + $0x78] sm:$0xe]
        %v5425 = vld [vmem:[%s4329 + $0x84] sm:$0xe]
        %v5426 = vld [vmem:[%s4329 + $0x90] sm:$0xe]
        %v5427 = vld [vmem:[%s4329 + $0x9c] sm:$0xe]
        %v5428 = vld [vmem:[%s4329 + $0xa8] sm:$0xe]
        %v5429 = vld [vmem:[%s4329 + $0xb4] sm:$0xe]
        %v5478 = vrot.slane %v5414, 5
        %v5479 = vrot.slane %v5478, 4
        %v5480 = vrot.slane %v4689, 5
        %v5481 = vsel %vm2368, %v5479, %v5480
        %v5482 = vrot.slane %v5480, 4
        %v5483 = vrot.slane %v4690, 5
        %v5484 = vsel %vm2368, %v5482, %v5483
        %v5485 = vrot.slane %v5415, 5
        %v5486 = vrot.slane %v5485, 4
        %v5487 = vrot.slane %v4692, 5
        %v5488 = vsel %vm2368, %v5486, %v5487
        %v5489 = vrot.slane %v5487, 4
        %v5490 = vrot.slane %v4693, 5
        %v5491 = vsel %vm2368, %v5489, %v5490
        %v5492 = vrot.slane %v5416, 5
        %v5493 = vrot.slane %v5492, 4
        %v5494 = vrot.slane %v4695, 5
        %v5495 = vsel %vm2368, %v5493, %v5494
        %v5496 = vrot.slane %v5494, 4
        %v5497 = vrot.slane %v4696, 5
        %v5498 = vsel %vm2368, %v5496, %v5497
        %v5499 = vrot.slane %v5417, 5
        %v5500 = vrot.slane %v5499, 4
        %v5501 = vrot.slane %v4698, 5
        %v5502 = vsel %vm2368, %v5500, %v5501
        %v5503 = vrot.slane %v5501, 4
        %v5504 = vrot.slane %v4699, 5
        %v5505 = vsel %vm2368, %v5503, %v5504
        %v5506 = vrot.slane %v5418, 5
        %v5507 = vrot.slane %v5506, 4
        %v5508 = vrot.slane %v4701, 5
        %v5509 = vsel %vm2368, %v5507, %v5508
        %v5510 = vrot.slane %v5508, 4
        %v5511 = vrot.slane %v4702, 5
        %v5512 = vsel %vm2368, %v5510, %v5511
        %v5513 = vrot.slane %v5419, 5
        %v5514 = vrot.slane %v5513, 4
        %v5515 = vrot.slane %v4704, 5
        %v5516 = vsel %vm2368, %v5514, %v5515
        %v5517 = vrot.slane %v5515, 4
        %v5518 = vrot.slane %v4705, 5
        %v5519 = vsel %vm2368, %v5517, %v5518
        %v5520 = vrot.slane %v5420, 5
        %v5521 = vrot.slane %v5520, 4
        %v5522 = vrot.slane %v4707, 5
        %v5523 = vsel %vm2368, %v5521, %v5522
        %v5524 = vrot.slane %v5522, 4
        %v5525 = vrot.slane %v4708, 5
        %v5526 = vsel %vm2368, %v5524, %v5525
        %v5527 = vrot.slane %v5421, 5
        %v5528 = vrot.slane %v5527, 4
        %v5529 = vrot.slane %v4710, 5
        %v5530 = vsel %vm2368, %v5528, %v5529
        %v5531 = vrot.slane %v5529, 4
        %v5532 = vrot.slane %v4711, 5
        %v5533 = vsel %vm2368, %v5531, %v5532
        %v5534 = vrot.slane %v5422, 5
        %v5535 = vrot.slane %v5534, 4
        %v5536 = vrot.slane %v4713, 5
        %v5537 = vsel %vm2368, %v5535, %v5536
        %v5538 = vrot.slane %v5536, 4
        %v5539 = vrot.slane %v4714, 5
        %v5540 = vsel %vm2368, %v5538, %v5539
        %v5541 = vrot.slane %v5423, 5
        %v5542 = vrot.slane %v5541, 4
        %v5543 = vrot.slane %v4716, 5
        %v5544 = vsel %vm2368, %v5542, %v5543
        %v5545 = vrot.slane %v5543, 4
        %v5546 = vrot.slane %v4717, 5
        %v5547 = vsel %vm2368, %v5545, %v5546
        %v5548 = vrot.slane %v5424, 5
        %v5549 = vrot.slane %v5548, 4
        %v5550 = vrot.slane %v4719, 5
        %v5551 = vsel %vm2368, %v5549, %v5550
        %v5552 = vrot.slane %v5550, 4
        %v5553 = vrot.slane %v4720, 5
        %v5554 = vsel %vm2368, %v5552, %v5553
        %v5555 = vrot.slane %v5425, 5
        %v5556 = vrot.slane %v5555, 4
        %v5557 = vrot.slane %v4722, 5
        %v5558 = vsel %vm2368, %v5556, %v5557
        %v5559 = vrot.slane %v5557, 4
        %v5560 = vrot.slane %v4723, 5
        %v5561 = vsel %vm2368, %v5559, %v5560
        %v5562 = vrot.slane %v5426, 5
        %v5563 = vrot.slane %v5562, 4
        %v5564 = vrot.slane %v4725, 5
        %v5565 = vsel %vm2368, %v5563, %v5564
        %v5566 = vrot.slane %v5564, 4
        %v5567 = vrot.slane %v4726, 5
        %v5568 = vsel %vm2368, %v5566, %v5567
        %v5569 = vrot.slane %v5427, 5
        %v5570 = vrot.slane %v5569, 4
        %v5571 = vrot.slane %v4728, 5
        %v5572 = vsel %vm2368, %v5570, %v5571
        %v5573 = vrot.slane %v5571, 4
        %v5574 = vrot.slane %v4729, 5
        %v5575 = vsel %vm2368, %v5573, %v5574
        %v5576 = vrot.slane %v5428, 5
        %v5577 = vrot.slane %v5576, 4
        %v5578 = vrot.slane %v4731, 5
        %v5579 = vsel %vm2368, %v5577, %v5578
        %v5580 = vrot.slane %v5578, 4
        %v5581 = vrot.slane %v4732, 5
        %v5582 = vsel %vm2368, %v5580, %v5581
        %v5583 = vrot.slane %v5429, 5
        %v5584 = vrot.slane %v5583, 4
        %v5585 = vrot.slane %v4734, 5
        %v5586 = vsel %vm2368, %v5584, %v5585
        %v5587 = vrot.slane %v5585, 4
        %v5588 = vrot.slane %v4735, 5
        %v5589 = vsel %vm2368, %v5587, %v5588
        %s5590 = scalar_lea.vmem %s4, 16
        %v5591 = vld [vmem:[%s5590] sm:$0x3]
        %v5592 = vunpack.c.l.b16 %v5481
        %v5593 = vunpack.c.l.b16 %v5484
        %v5594 = vunpack.c.l.b16 %v5488
        %v5595 = vunpack.c.l.b16 %v5491
        %v5596 = vunpack.c.l.b16 %v5495
        %v5597 = vunpack.c.l.b16 %v5498
        %v5598 = vunpack.c.l.b16 %v5502
        %v5599 = vunpack.c.l.b16 %v5505
        %v5600 = vunpack.c.l.b16 %v5509
        %v5601 = vunpack.c.l.b16 %v5512
        %v5602 = vunpack.c.l.b16 %v5516
        %v5603 = vunpack.c.l.b16 %v5519
        %v5604 = vunpack.c.l.b16 %v5523
        %v5605 = vunpack.c.l.b16 %v5526
        %v5606 = vunpack.c.l.b16 %v5530
        %v5607 = vunpack.c.l.b16 %v5533
        %v5608 = vunpack.c.l.b16 %v5537
        %v5609 = vunpack.c.l.b16 %v5540
        %v5610 = vunpack.c.l.b16 %v5544
        %v5611 = vunpack.c.l.b16 %v5547
        %v5612 = vunpack.c.l.b16 %v5551
        %v5613 = vunpack.c.l.b16 %v5554
        %v5614 = vunpack.c.l.b16 %v5558
        %v5615 = vunpack.c.l.b16 %v5561
        %v5616 = vunpack.c.l.b16 %v5565
        %v5617 = vunpack.c.l.b16 %v5568
        %v5618 = vunpack.c.l.b16 %v5572
        %v5619 = vunpack.c.l.b16 %v5575
        %v5620 = vunpack.c.l.b16 %v5579
        %v5621 = vunpack.c.l.b16 %v5582
        %v5622 = vunpack.c.l.b16 %v5586
        %v5623 = vunpack.c.l.b16 %v5589
        %v5624 = vpack.c.b16 %v5593, %v5592
        %v5625 = vpack.c.b16 %v5595, %v5594
        %v5626 = vpack.c.b16 %v5597, %v5596
        %v5627 = vpack.c.b16 %v5599, %v5598
        %v5628 = vpack.c.b16 %v5601, %v5600
        %v5629 = vpack.c.b16 %v5603, %v5602
        %v5630 = vpack.c.b16 %v5605, %v5604
        %v5631 = vpack.c.b16 %v5607, %v5606
        %v5632 = vpack.c.b16 %v5609, %v5608
        %v5633 = vpack.c.b16 %v5611, %v5610
        %v5634 = vpack.c.b16 %v5613, %v5612
        %v5635 = vpack.c.b16 %v5615, %v5614
        %v5636 = vpack.c.b16 %v5617, %v5616
        %v5637 = vpack.c.b16 %v5619, %v5618
        %v5638 = vpack.c.b16 %v5621, %v5620
        %v5639 = vpack.c.b16 %v5623, %v5622
        %v5641 = vsel %vm315, %v5624, 0
        %v5644 = vsel %vm315, %v5625, 0
        %v5647 = vsel %vm315, %v5626, 0
        %v5650 = vsel %vm315, %v5627, 0
        %v5653 = vsel %vm315, %v5628, 0
        %v5656 = vsel %vm315, %v5629, 0
        %v5659 = vsel %vm315, %v5630, 0
        %v5662 = vsel %vm315, %v5631, 0
        %v5665 = vsel %vm315, %v5632, 0
        %v5668 = vsel %vm315, %v5633, 0
        %v5671 = vsel %vm315, %v5634, 0
        %v5674 = vsel %vm315, %v5635, 0
        %v5677 = vsel %vm315, %v5636, 0
        %v5680 = vsel %vm315, %v5637, 0
        %v5683 = vsel %vm315, %v5638, 0
        %v5686 = vsel %vm315, %v5639, 0
        %v5689 = vsel %vm1861, %v5591, 0
        %5691 = vmatprep.subr.bf16.mxu0 0
        %5692 = vmatpush1.bf16.msra.mxu0 %v5689
        %5693 = vmatprep.subr.bf16.mxu0 0
        %5694 = vmatpush1.bf16.msra.mxu0 0
        %5695 = vmatprep.subr.bf16.mxu0 0
        %5696 = vmatpush1.bf16.msra.mxu0 0
        %5697 = vmatprep.subr.bf16.mxu0 0
        %5698 = vmatpush1.bf16.msra.mxu0 0
        %5699 = vmatprep.subr.bf16.mxu0 0
        %5700 = vmatpush1.bf16.msra.mxu0 0
        %5701 = vmatprep.subr.bf16.mxu0 0
        %5702 = vmatpush1.bf16.msra.mxu0 0
        %5703 = vmatprep.subr.bf16.mxu0 0
        %5704 = vmatpush1.bf16.msra.mxu0 0
        %5705 = vmatprep.subr.bf16.mxu0 0
        %5706 = vmatpush1.bf16.msra.mxu0 0
        %5707 = vmatprep.subr.bf16.mxu0 0
        %5708 = vmatpush1.bf16.msra.mxu0 0
        %5709 = vmatprep.subr.bf16.mxu0 0
        %5710 = vmatpush1.bf16.msra.mxu0 0
        %5711 = vmatprep.subr.bf16.mxu0 0
        %5712 = vmatpush1.bf16.msra.mxu0 0
        %5713 = vmatprep.subr.bf16.mxu0 0
        %5714 = vmatpush1.bf16.msra.mxu0 0
        %5715 = vmatprep.subr.bf16.mxu0 0
        %5716 = vmatpush1.bf16.msra.mxu0 0
        %5717 = vmatprep.subr.bf16.mxu0 0
        %5718 = vmatpush1.bf16.msra.mxu0 0
        %5719 = vmatprep.subr.bf16.mxu0 0
        %5720 = vmatpush1.bf16.msra.mxu0 0
        %5721 = vmatprep.subr.bf16.mxu0 0
        %5722 = vmatpush1.bf16.msra.mxu0 0
        %5723 = vmatprep.mubr.bf16.mxu0 0
        %5724 = vmatmul.mubr.bf16.gmra.mrb[0].mxu0 %v5641
        %v5725 = vpop.f32.mrb[0].mxu0
        %v5726 = vadd.f32 0.0, %v5725
        %v5727 = vpop.f32.mrb[0].mxu0
        %v5728 = vpop.f32.mrb[0].mxu0
        %v5729 = vadd.f32 0.0, %v5728
        %v5730 = vpop.f32.mrb[0].mxu0
        %5731 = vmatprep.mubr.bf16.mxu0 0
        %5732 = vmatmul.mubr.bf16.gmra.mrb[0].mxu0 %v5644
        %v5733 = vpop.f32.mrb[0].mxu0
        %v5734 = vadd.f32 0.0, %v5733
        %v5735 = vpop.f32.mrb[0].mxu0
        %v5736 = vpop.f32.mrb[0].mxu0
        %v5737 = vadd.f32 0.0, %v5736
        %v5738 = vpop.f32.mrb[0].mxu0
        %5739 = vmatprep.mubr.bf16.mxu0 0
        %5740 = vmatmul.mubr.bf16.gmra.mrb[0].mxu0 %v5647
        %v5741 = vpop.f32.mrb[0].mxu0
        %v5742 = vadd.f32 0.0, %v5741
        %v5743 = vpop.f32.mrb[0].mxu0
        %v5744 = vpop.f32.mrb[0].mxu0
        %v5745 = vadd.f32 0.0, %v5744
        %v5746 = vpop.f32.mrb[0].mxu0
        %5747 = vmatprep.mubr.bf16.mxu0 0
        %5748 = vmatmul.mubr.bf16.gmra.mrb[0].mxu0 %v5650
        %v5749 = vpop.f32.mrb[0].mxu0
        %v5750 = vadd.f32 0.0, %v5749
        %v5751 = vpop.f32.mrb[0].mxu0
        %v5752 = vpop.f32.mrb[0].mxu0
        %v5753 = vadd.f32 0.0, %v5752
        %v5754 = vpop.f32.mrb[0].mxu0
        %5755 = vmatprep.mubr.bf16.mxu0 0
        %5756 = vmatmul.mubr.bf16.gmra.mrb[0].mxu0 %v5653
        %v5757 = vpop.f32.mrb[0].mxu0
        %v5758 = vadd.f32 0.0, %v5757
        %v5759 = vpop.f32.mrb[0].mxu0
        %v5760 = vpop.f32.mrb[0].mxu0
        %v5761 = vadd.f32 0.0, %v5760
        %v5762 = vpop.f32.mrb[0].mxu0
        %5763 = vmatprep.mubr.bf16.mxu0 0
        %5764 = vmatmul.mubr.bf16.gmra.mrb[0].mxu0 %v5656
        %v5765 = vpop.f32.mrb[0].mxu0
        %v5766 = vadd.f32 0.0, %v5765
        %v5767 = vpop.f32.mrb[0].mxu0
        %v5768 = vpop.f32.mrb[0].mxu0
        %v5769 = vadd.f32 0.0, %v5768
        %v5770 = vpop.f32.mrb[0].mxu0
        %5771 = vmatprep.mubr.bf16.mxu0 0
        %5772 = vmatmul.mubr.bf16.gmra.mrb[0].mxu0 %v5659
        %v5773 = vpop.f32.mrb[0].mxu0
        %v5774 = vadd.f32 0.0, %v5773
        %v5775 = vpop.f32.mrb[0].mxu0
        %v5776 = vpop.f32.mrb[0].mxu0
        %v5777 = vadd.f32 0.0, %v5776
        %v5778 = vpop.f32.mrb[0].mxu0
        %5779 = vmatprep.mubr.bf16.mxu0 0
        %5780 = vmatmul.mubr.bf16.gmra.mrb[0].mxu0 %v5662
        %v5781 = vpop.f32.mrb[0].mxu0
        %v5782 = vadd.f32 0.0, %v5781
        %v5783 = vpop.f32.mrb[0].mxu0
        %v5784 = vpop.f32.mrb[0].mxu0
        %v5785 = vadd.f32 0.0, %v5784
        %v5786 = vpop.f32.mrb[0].mxu0
        %5787 = vmatprep.mubr.bf16.mxu0 0
        %5788 = vmatmul.mubr.bf16.gmra.mrb[0].mxu0 %v5665
        %v5789 = vpop.f32.mrb[0].mxu0
        %v5790 = vadd.f32 0.0, %v5789
        %v5791 = vpop.f32.mrb[0].mxu0
        %v5792 = vpop.f32.mrb[0].mxu0
        %v5793 = vadd.f32 0.0, %v5792
        %v5794 = vpop.f32.mrb[0].mxu0
        %5795 = vmatprep.mubr.bf16.mxu0 0
        %5796 = vmatmul.mubr.bf16.gmra.mrb[0].mxu0 %v5668
        %v5797 = vpop.f32.mrb[0].mxu0
        %v5798 = vadd.f32 0.0, %v5797
        %v5799 = vpop.f32.mrb[0].mxu0
        %v5800 = vpop.f32.mrb[0].mxu0
        %v5801 = vadd.f32 0.0, %v5800
        %v5802 = vpop.f32.mrb[0].mxu0
        %5803 = vmatprep.mubr.bf16.mxu0 0
        %5804 = vmatmul.mubr.bf16.gmra.mrb[0].mxu0 %v5671
        %v5805 = vpop.f32.mrb[0].mxu0
        %v5806 = vadd.f32 0.0, %v5805
        %v5807 = vpop.f32.mrb[0].mxu0
        %v5808 = vpop.f32.mrb[0].mxu0
        %v5809 = vadd.f32 0.0, %v5808
        %v5810 = vpop.f32.mrb[0].mxu0
        %5811 = vmatprep.mubr.bf16.mxu0 0
        %5812 = vmatmul.mubr.bf16.gmra.mrb[0].mxu0 %v5674
        %v5813 = vpop.f32.mrb[0].mxu0
        %v5814 = vadd.f32 0.0, %v5813
        %v5815 = vpop.f32.mrb[0].mxu0
        %v5816 = vpop.f32.mrb[0].mxu0
        %v5817 = vadd.f32 0.0, %v5816
        %v5818 = vpop.f32.mrb[0].mxu0
        %5819 = vmatprep.mubr.bf16.mxu0 0
        %5820 = vmatmul.mubr.bf16.gmra.mrb[0].mxu0 %v5677
        %v5821 = vpop.f32.mrb[0].mxu0
        %v5822 = vadd.f32 0.0, %v5821
        %v5823 = vpop.f32.mrb[0].mxu0
        %v5824 = vpop.f32.mrb[0].mxu0
        %v5825 = vadd.f32 0.0, %v5824
        %v5826 = vpop.f32.mrb[0].mxu0
        %5827 = vmatprep.mubr.bf16.mxu0 0
        %5828 = vmatmul.mubr.bf16.gmra.mrb[0].mxu0 %v5680
        %v5829 = vpop.f32.mrb[0].mxu0
        %v5830 = vadd.f32 0.0, %v5829
        %v5831 = vpop.f32.mrb[0].mxu0
        %v5832 = vpop.f32.mrb[0].mxu0
        %v5833 = vadd.f32 0.0, %v5832
        %v5834 = vpop.f32.mrb[0].mxu0
        %5835 = vmatprep.mubr.bf16.mxu0 0
        %5836 = vmatmul.mubr.bf16.gmra.mrb[0].mxu0 %v5683
        %v5837 = vpop.f32.mrb[0].mxu0
        %v5838 = vadd.f32 0.0, %v5837
        %v5839 = vpop.f32.mrb[0].mxu0
        %v5840 = vpop.f32.mrb[0].mxu0
        %v5841 = vadd.f32 0.0, %v5840
        %v5842 = vpop.f32.mrb[0].mxu0
        %5843 = vmatprep.mubr.bf16.mxu0 0
        %5844 = vmatmul.mubr.bf16.gmra.mrb[0].mxu0 %v5686
        %v5845 = vpop.f32.mrb[0].mxu0
        %v5846 = vadd.f32 0.0, %v5845
        %v5847 = vpop.f32.mrb[0].mxu0
        %v5848 = vpop.f32.mrb[0].mxu0
        %v5849 = vadd.f32 0.0, %v5848
        %v5850 = vpop.f32.mrb[0].mxu0
        %5851 = vdwg.mxu0
        %v5852 = vadd.f32 %v5382, %v5726
        %v5853 = vadd.f32 %v5383, %v5729
        %v5854 = vadd.f32 %v5384, %v5734
        %v5855 = vadd.f32 %v5385, %v5737
        %v5856 = vadd.f32 %v5386, %v5742
        %v5857 = vadd.f32 %v5387, %v5745
        %v5858 = vadd.f32 %v5388, %v5750
        %v5859 = vadd.f32 %v5389, %v5753
        %v5860 = vadd.f32 %v5390, %v5758
        %v5861 = vadd.f32 %v5391, %v5761
        %v5862 = vadd.f32 %v5392, %v5766
        %v5863 = vadd.f32 %v5393, %v5769
        %v5864 = vadd.f32 %v5394, %v5774
        %v5865 = vadd.f32 %v5395, %v5777
        %v5866 = vadd.f32 %v5396, %v5782
        %v5867 = vadd.f32 %v5397, %v5785
        %v5868 = vadd.f32 %v5398, %v5790
        %v5869 = vadd.f32 %v5399, %v5793
        %v5870 = vadd.f32 %v5400, %v5798
        %v5871 = vadd.f32 %v5401, %v5801
        %v5872 = vadd.f32 %v5402, %v5806
        %v5873 = vadd.f32 %v5403, %v5809
        %v5874 = vadd.f32 %v5404, %v5814
        %v5875 = vadd.f32 %v5405, %v5817
        %v5876 = vadd.f32 %v5406, %v5822
        %v5877 = vadd.f32 %v5407, %v5825
        %v5878 = vadd.f32 %v5408, %v5830
        %v5879 = vadd.f32 %v5409, %v5833
        %v5880 = vadd.f32 %v5410, %v5838
        %v5881 = vadd.f32 %v5411, %v5841
        %v5882 = vadd.f32 %v5412, %v5846
        %v5883 = vadd.f32 %v5413, %v5849
        %v5884 = vld [vmem:[%s5] sm:$0x1]
        %v5886 = vlaneseq
        %v5887 = vshrl.u32 %v5886, 7
        %v5888 = vsub.s32 0, %v5887
        %v5889 = vrot.slane %v5884, %v5888
        %v5891 = vadd.f32 %v5852, %v5889
        %v5892 = vadd.f32 %v5853, %v5889
        %v5893 = vadd.f32 %v5854, %v5889
        %v5894 = vadd.f32 %v5855, %v5889
        %v5895 = vadd.f32 %v5856, %v5889
        %v5896 = vadd.f32 %v5857, %v5889
        %v5897 = vadd.f32 %v5858, %v5889
        %v5898 = vadd.f32 %v5859, %v5889
        %v5899 = vadd.f32 %v5860, %v5889
        %v5900 = vadd.f32 %v5861, %v5889
        %v5901 = vadd.f32 %v5862, %v5889
        %v5902 = vadd.f32 %v5863, %v5889
        %v5903 = vadd.f32 %v5864, %v5889
        %v5904 = vadd.f32 %v5865, %v5889
        %v5905 = vadd.f32 %v5866, %v5889
        %v5906 = vadd.f32 %v5867, %v5889
        %v5907 = vadd.f32 %v5868, %v5889
        %v5908 = vadd.f32 %v5869, %v5889
        %v5909 = vadd.f32 %v5870, %v5889
        %v5910 = vadd.f32 %v5871, %v5889
        %v5911 = vadd.f32 %v5872, %v5889
        %v5912 = vadd.f32 %v5873, %v5889
        %v5913 = vadd.f32 %v5874, %v5889
        %v5914 = vadd.f32 %v5875, %v5889
        %v5915 = vadd.f32 %v5876, %v5889
        %v5916 = vadd.f32 %v5877, %v5889
        %v5917 = vadd.f32 %v5878, %v5889
        %v5918 = vadd.f32 %v5879, %v5889
        %v5919 = vadd.f32 %v5880, %v5889
        %v5920 = vadd.f32 %v5881, %v5889
        %v5921 = vadd.f32 %v5882, %v5889
        %v5922 = vadd.f32 %v5883, %v5889
        %v5923 = vxor.u32 %v5891, 2147483648
        %v5924 = vxor.u32 %v5892, 2147483648
        %v5925 = vxor.u32 %v5893, 2147483648
        %v5926 = vxor.u32 %v5894, 2147483648
        %v5927 = vxor.u32 %v5895, 2147483648
        %v5928 = vxor.u32 %v5896, 2147483648
        %v5929 = vxor.u32 %v5897, 2147483648
        %v5930 = vxor.u32 %v5898, 2147483648
        %v5931 = vxor.u32 %v5899, 2147483648
        %v5932 = vxor.u32 %v5900, 2147483648
        %v5933 = vxor.u32 %v5901, 2147483648
        %v5934 = vxor.u32 %v5902, 2147483648
        %v5935 = vxor.u32 %v5903, 2147483648
        %v5936 = vxor.u32 %v5904, 2147483648
        %v5937 = vxor.u32 %v5905, 2147483648
        %v5938 = vxor.u32 %v5906, 2147483648
        %v5939 = vxor.u32 %v5907, 2147483648
        %v5940 = vxor.u32 %v5908, 2147483648
        %v5941 = vxor.u32 %v5909, 2147483648
        %v5942 = vxor.u32 %v5910, 2147483648
        %v5943 = vxor.u32 %v5911, 2147483648
        %v5944 = vxor.u32 %v5912, 2147483648
        %v5945 = vxor.u32 %v5913, 2147483648
        %v5946 = vxor.u32 %v5914, 2147483648
        %v5947 = vxor.u32 %v5915, 2147483648
        %v5948 = vxor.u32 %v5916, 2147483648
        %v5949 = vxor.u32 %v5917, 2147483648
        %v5950 = vxor.u32 %v5918, 2147483648
        %v5951 = vxor.u32 %v5919, 2147483648
        %v5952 = vxor.u32 %v5920, 2147483648
        %v5953 = vxor.u32 %v5921, 2147483648
        %v5954 = vxor.u32 %v5922, 2147483648
        %v5955 = vmul.f32 %v5923, 1.442695
        %v5956 = vpow.pop %v5955
        %v5957 = vmul.f32 %v5924, 1.442695
        %v5958 = vpow.pop %v5957
        %v5959 = vmul.f32 %v5925, 1.442695
        %v5960 = vpow.pop %v5959
        %v5961 = vmul.f32 %v5926, 1.442695
        %v5962 = vpow.pop %v5961
        %v5963 = vmul.f32 %v5927, 1.442695
        %v5964 = vpow.pop %v5963
        %v5965 = vmul.f32 %v5928, 1.442695
        %v5966 = vpow.pop %v5965
        %v5967 = vmul.f32 %v5929, 1.442695
        %v5968 = vpow.pop %v5967
        %v5969 = vmul.f32 %v5930, 1.442695
        %v5970 = vpow.pop %v5969
        %v5971 = vmul.f32 %v5931, 1.442695
        %v5972 = vpow.pop %v5971
        %v5973 = vmul.f32 %v5932, 1.442695
        %v5974 = vpow.pop %v5973
        %v5975 = vmul.f32 %v5933, 1.442695
        %v5976 = vpow.pop %v5975
        %v5977 = vmul.f32 %v5934, 1.442695
        %v5978 = vpow.pop %v5977
        %v5979 = vmul.f32 %v5935, 1.442695
        %v5980 = vpow.pop %v5979
        %v5981 = vmul.f32 %v5936, 1.442695
        %v5982 = vpow.pop %v5981
        %v5983 = vmul.f32 %v5937, 1.442695
        %v5984 = vpow.pop %v5983
        %v5985 = vmul.f32 %v5938, 1.442695
        %v5986 = vpow.pop %v5985
        %v5987 = vmul.f32 %v5939, 1.442695
        %v5988 = vpow.pop %v5987
        %v5989 = vmul.f32 %v5940, 1.442695
        %v5990 = vpow.pop %v5989
        %v5991 = vmul.f32 %v5941, 1.442695
        %v5992 = vpow.pop %v5991
        %v5993 = vmul.f32 %v5942, 1.442695
        %v5994 = vpow.pop %v5993
        %v5995 = vmul.f32 %v5943, 1.442695
        %v5996 = vpow.pop %v5995
        %v5997 = vmul.f32 %v5944, 1.442695
        %v5998 = vpow.pop %v5997
        %v5999 = vmul.f32 %v5945, 1.442695
        %v6000 = vpow.pop %v5999
        %v6001 = vmul.f32 %v5946, 1.442695
        %v6002 = vpow.pop %v6001
        %v6003 = vmul.f32 %v5947, 1.442695
        %v6004 = vpow.pop %v6003
        %v6005 = vmul.f32 %v5948, 1.442695
        %v6006 = vpow.pop %v6005
        %v6007 = vmul.f32 %v5949, 1.442695
        %v6008 = vpow.pop %v6007
        %v6009 = vmul.f32 %v5950, 1.442695
        %v6010 = vpow.pop %v6009
        %v6011 = vmul.f32 %v5951, 1.442695
        %v6012 = vpow.pop %v6011
        %v6013 = vmul.f32 %v5952, 1.442695
        %v6014 = vpow.pop %v6013
        %v6015 = vmul.f32 %v5953, 1.442695
        %v6016 = vpow.pop %v6015
        %v6017 = vmul.f32 %v5954, 1.442695
        %v6018 = vpow.pop %v6017
        %v6019 = vadd.f32 %v5956, 1.0
        %v6020 = vadd.f32 %v5958, 1.0
        %v6021 = vadd.f32 %v5960, 1.0
        %v6022 = vadd.f32 %v5962, 1.0
        %v6023 = vadd.f32 %v5964, 1.0
        %v6024 = vadd.f32 %v5966, 1.0
        %v6025 = vadd.f32 %v5968, 1.0
        %v6026 = vadd.f32 %v5970, 1.0
        %v6027 = vadd.f32 %v5972, 1.0
        %v6028 = vadd.f32 %v5974, 1.0
        %v6029 = vadd.f32 %v5976, 1.0
        %v6030 = vadd.f32 %v5978, 1.0
        %v6031 = vadd.f32 %v5980, 1.0
        %v6032 = vadd.f32 %v5982, 1.0
        %v6033 = vadd.f32 %v5984, 1.0
        %v6034 = vadd.f32 %v5986, 1.0
        %v6035 = vadd.f32 %v5988, 1.0
        %v6036 = vadd.f32 %v5990, 1.0
        %v6037 = vadd.f32 %v5992, 1.0
        %v6038 = vadd.f32 %v5994, 1.0
        %v6039 = vadd.f32 %v5996, 1.0
        %v6040 = vadd.f32 %v5998, 1.0
        %v6041 = vadd.f32 %v6000, 1.0
        %v6042 = vadd.f32 %v6002, 1.0
        %v6043 = vadd.f32 %v6004, 1.0
        %v6044 = vadd.f32 %v6006, 1.0
        %v6045 = vadd.f32 %v6008, 1.0
        %v6046 = vadd.f32 %v6010, 1.0
        %v6047 = vadd.f32 %v6012, 1.0
        %v6048 = vadd.f32 %v6014, 1.0
        %v6049 = vadd.f32 %v6016, 1.0
        %v6050 = vadd.f32 %v6018, 1.0
        %v6051 = vrcp.pop %v6019
        %v6052 = vmul.f32 1.0, %v6051
        %v6053 = vrcp.pop %v6020
        %v6054 = vmul.f32 1.0, %v6053
        %v6055 = vrcp.pop %v6021
        %v6056 = vmul.f32 1.0, %v6055
        %v6057 = vrcp.pop %v6022
        %v6058 = vmul.f32 1.0, %v6057
        %v6059 = vrcp.pop %v6023
        %v6060 = vmul.f32 1.0, %v6059
        %v6061 = vrcp.pop %v6024
        %v6062 = vmul.f32 1.0, %v6061
        %v6063 = vrcp.pop %v6025
        %v6064 = vmul.f32 1.0, %v6063
        %v6065 = vrcp.pop %v6026
        %v6066 = vmul.f32 1.0, %v6065
        %v6067 = vrcp.pop %v6027
        %v6068 = vmul.f32 1.0, %v6067
        %v6069 = vrcp.pop %v6028
        %v6070 = vmul.f32 1.0, %v6069
        %v6071 = vrcp.pop %v6029
        %v6072 = vmul.f32 1.0, %v6071
        %v6073 = vrcp.pop %v6030
        %v6074 = vmul.f32 1.0, %v6073
        %v6075 = vrcp.pop %v6031
        %v6076 = vmul.f32 1.0, %v6075
        %v6077 = vrcp.pop %v6032
        %v6078 = vmul.f32 1.0, %v6077
        %v6079 = vrcp.pop %v6033
        %v6080 = vmul.f32 1.0, %v6079
        %v6081 = vrcp.pop %v6034
        %v6082 = vmul.f32 1.0, %v6081
        %v6083 = vrcp.pop %v6035
        %v6084 = vmul.f32 1.0, %v6083
        %v6085 = vrcp.pop %v6036
        %v6086 = vmul.f32 1.0, %v6085
        %v6087 = vrcp.pop %v6037
        %v6088 = vmul.f32 1.0, %v6087
        %v6089 = vrcp.pop %v6038
        %v6090 = vmul.f32 1.0, %v6089
        %v6091 = vrcp.pop %v6039
        %v6092 = vmul.f32 1.0, %v6091
        %v6093 = vrcp.pop %v6040
        %v6094 = vmul.f32 1.0, %v6093
        %v6095 = vrcp.pop %v6041
        %v6096 = vmul.f32 1.0, %v6095
        %v6097 = vrcp.pop %v6042
        %v6098 = vmul.f32 1.0, %v6097
        %v6099 = vrcp.pop %v6043
        %v6100 = vmul.f32 1.0, %v6099
        %v6101 = vrcp.pop %v6044
        %v6102 = vmul.f32 1.0, %v6101
        %v6103 = vrcp.pop %v6045
        %v6104 = vmul.f32 1.0, %v6103
        %v6105 = vrcp.pop %v6046
        %v6106 = vmul.f32 1.0, %v6105
        %v6107 = vrcp.pop %v6047
        %v6108 = vmul.f32 1.0, %v6107
        %v6109 = vrcp.pop %v6048
        %v6110 = vmul.f32 1.0, %v6109
        %v6111 = vrcp.pop %v6049
        %v6112 = vmul.f32 1.0, %v6111
        %v6113 = vrcp.pop %v6050
        %v6114 = vmul.f32 1.0, %v6113
        %v6115 = vmul.f32 %v5891, %v6052
        %v6116 = vmul.f32 %v5892, %v6054
        %v6117 = vmul.f32 %v5893, %v6056
        %v6118 = vmul.f32 %v5894, %v6058
        %v6119 = vmul.f32 %v5895, %v6060
        %v6120 = vmul.f32 %v5896, %v6062
        %v6121 = vmul.f32 %v5897, %v6064
        %v6122 = vmul.f32 %v5898, %v6066
        %v6123 = vmul.f32 %v5899, %v6068
        %v6124 = vmul.f32 %v5900, %v6070
        %v6125 = vmul.f32 %v5901, %v6072
        %v6126 = vmul.f32 %v5902, %v6074
        %v6127 = vmul.f32 %v5903, %v6076
        %v6128 = vmul.f32 %v5904, %v6078
        %v6129 = vmul.f32 %v5905, %v6080
        %v6130 = vmul.f32 %v5906, %v6082
        %v6131 = vmul.f32 %v5907, %v6084
        %v6132 = vmul.f32 %v5908, %v6086
        %v6133 = vmul.f32 %v5909, %v6088
        %v6134 = vmul.f32 %v5910, %v6090
        %v6135 = vmul.f32 %v5911, %v6092
        %v6136 = vmul.f32 %v5912, %v6094
        %v6137 = vmul.f32 %v5913, %v6096
        %v6138 = vmul.f32 %v5914, %v6098
        %v6139 = vmul.f32 %v5915, %v6100
        %v6140 = vmul.f32 %v5916, %v6102
        %v6141 = vmul.f32 %v5917, %v6104
        %v6142 = vmul.f32 %v5918, %v6106
        %v6143 = vmul.f32 %v5919, %v6108
        %v6144 = vmul.f32 %v5920, %v6110
        %v6145 = vmul.f32 %v5921, %v6112
        %v6146 = vmul.f32 %v5922, %v6114
        %v6147 = vpack.c.bf16 %v6116, %v6115
        %v6148 = vpack.c.bf16 %v6118, %v6117
        %v6149 = vpack.c.bf16 %v6120, %v6119
        %v6150 = vpack.c.bf16 %v6122, %v6121
        %v6151 = vpack.c.bf16 %v6124, %v6123
        %v6152 = vpack.c.bf16 %v6126, %v6125
        %v6153 = vpack.c.bf16 %v6128, %v6127
        %v6154 = vpack.c.bf16 %v6130, %v6129
        %v6155 = vpack.c.bf16 %v6132, %v6131
        %v6156 = vpack.c.bf16 %v6134, %v6133
        %v6157 = vpack.c.bf16 %v6136, %v6135
        %v6158 = vpack.c.bf16 %v6138, %v6137
        %v6159 = vpack.c.bf16 %v6140, %v6139
        %v6160 = vpack.c.bf16 %v6142, %v6141
        %v6161 = vpack.c.bf16 %v6144, %v6143
        %v6162 = vpack.c.bf16 %v6146, %v6145
        %v6179 = vunpack.c.l.b16 %v6147
        %v6180 = vunpack.c.h.b16 %v6147
        %v6181 = vunpack.c.l.b16 %v6148
        %v6182 = vunpack.c.h.b16 %v6148
        %v6183 = vunpack.c.l.b16 %v6149
        %v6184 = vunpack.c.h.b16 %v6149
        %v6185 = vunpack.c.l.b16 %v6150
        %v6186 = vunpack.c.h.b16 %v6150
        %v6187 = vunpack.c.l.b16 %v6151
        %v6188 = vunpack.c.h.b16 %v6151
        %v6189 = vunpack.c.l.b16 %v6152
        %v6190 = vunpack.c.h.b16 %v6152
        %v6191 = vunpack.c.l.b16 %v6153
        %v6192 = vunpack.c.h.b16 %v6153
        %v6193 = vunpack.c.l.b16 %v6154
        %v6194 = vunpack.c.h.b16 %v6154
        %v6195 = vunpack.c.l.b16 %v6155
        %v6196 = vunpack.c.h.b16 %v6155
        %v6197 = vunpack.c.l.b16 %v6156
        %v6198 = vunpack.c.h.b16 %v6156
        %v6199 = vunpack.c.l.b16 %v6157
        %v6200 = vunpack.c.h.b16 %v6157
        %v6201 = vunpack.c.l.b16 %v6158
        %v6202 = vunpack.c.h.b16 %v6158
        %v6203 = vunpack.c.l.b16 %v6159
        %v6204 = vunpack.c.h.b16 %v6159
        %v6205 = vunpack.c.l.b16 %v6160
        %v6206 = vunpack.c.h.b16 %v6160
        %v6207 = vunpack.c.l.b16 %v6161
        %v6208 = vunpack.c.h.b16 %v6161
        %v6209 = vunpack.c.l.b16 %v6162
        %v6210 = vunpack.c.h.b16 %v6162
        %v6211 = vpack.c.b16 %v6179, %v6179
        %v6212 = vpack.c.b16 %v6180, %v6180
        %v6213 = vpack.c.b16 %v6181, %v6181
        %v6214 = vpack.c.b16 %v6182, %v6182
        %v6215 = vpack.c.b16 %v6183, %v6183
        %v6216 = vpack.c.b16 %v6184, %v6184
        %v6217 = vpack.c.b16 %v6185, %v6185
        %v6218 = vpack.c.b16 %v6186, %v6186
        %v6219 = vpack.c.b16 %v6187, %v6187
        %v6220 = vpack.c.b16 %v6188, %v6188
        %v6221 = vpack.c.b16 %v6189, %v6189
        %v6222 = vpack.c.b16 %v6190, %v6190
        %v6223 = vpack.c.b16 %v6191, %v6191
        %v6224 = vpack.c.b16 %v6192, %v6192
        %v6225 = vpack.c.b16 %v6193, %v6193
        %v6226 = vpack.c.b16 %v6194, %v6194
        %v6227 = vpack.c.b16 %v6195, %v6195
        %v6228 = vpack.c.b16 %v6196, %v6196
        %v6229 = vpack.c.b16 %v6197, %v6197
        %v6230 = vpack.c.b16 %v6198, %v6198
        %v6231 = vpack.c.b16 %v6199, %v6199
        %v6232 = vpack.c.b16 %v6200, %v6200
        %v6233 = vpack.c.b16 %v6201, %v6201
        %v6234 = vpack.c.b16 %v6202, %v6202
        %v6235 = vpack.c.b16 %v6203, %v6203
        %v6236 = vpack.c.b16 %v6204, %v6204
        %v6237 = vpack.c.b16 %v6205, %v6205
        %v6238 = vpack.c.b16 %v6206, %v6206
        %v6239 = vpack.c.b16 %v6207, %v6207
        %v6240 = vpack.c.b16 %v6208, %v6208
        %v6241 = vpack.c.b16 %v6209, %v6209
        %v6242 = vpack.c.b16 %v6210, %v6210
        %6275 = vst [vmem:[%s244] sm:$0xf] %v6211
        %6276 = vst [vmem:[%s244 + $0x4] sm:$0xf] %v6212
        %6277 = vst [vmem:[%s244 + $0x8] sm:$0xf] %v6213
        %6278 = vst [vmem:[%s244 + $0xc] sm:$0xf] %v6214
        %6279 = vst [vmem:[%s244 + $0x10] sm:$0xf] %v6215
        %6280 = vst [vmem:[%s244 + $0x14] sm:$0xf] %v6216
        %6281 = vst [vmem:[%s244 + $0x18] sm:$0xf] %v6217
        %6282 = vst [vmem:[%s244 + $0x1c] sm:$0xf] %v6218
        %6283 = vst [vmem:[%s244 + $0x20] sm:$0xf] %v6219
        %6284 = vst [vmem:[%s244 + $0x24] sm:$0xf] %v6220
        %6285 = vst [vmem:[%s244 + $0x28] sm:$0xf] %v6221
        %6286 = vst [vmem:[%s244 + $0x2c] sm:$0xf] %v6222
        %6287 = vst [vmem:[%s244 + $0x30] sm:$0xf] %v6223
        %6288 = vst [vmem:[%s244 + $0x34] sm:$0xf] %v6224
        %6289 = vst [vmem:[%s244 + $0x38] sm:$0xf] %v6225
        %6290 = vst [vmem:[%s244 + $0x3c] sm:$0xf] %v6226
        %6291 = vst [vmem:[%s244 + $0x40] sm:$0xf] %v6227
        %6292 = vst [vmem:[%s244 + $0x44] sm:$0xf] %v6228
        %6293 = vst [vmem:[%s244 + $0x48] sm:$0xf] %v6229
        %6294 = vst [vmem:[%s244 + $0x4c] sm:$0xf] %v6230
        %6295 = vst [vmem:[%s244 + $0x50] sm:$0xf] %v6231
        %6296 = vst [vmem:[%s244 + $0x54] sm:$0xf] %v6232
        %6297 = vst [vmem:[%s244 + $0x58] sm:$0xf] %v6233
        %6298 = vst [vmem:[%s244 + $0x5c] sm:$0xf] %v6234
        %6299 = vst [vmem:[%s244 + $0x60] sm:$0xf] %v6235
        %6300 = vst [vmem:[%s244 + $0x64] sm:$0xf] %v6236
        %6301 = vst [vmem:[%s244 + $0x68] sm:$0xf] %v6237
        %6302 = vst [vmem:[%s244 + $0x6c] sm:$0xf] %v6238
        %6303 = vst [vmem:[%s244 + $0x70] sm:$0xf] %v6239
        %6304 = vst [vmem:[%s244 + $0x74] sm:$0xf] %v6240
        %6305 = vst [vmem:[%s244 + $0x78] sm:$0xf] %v6241
        %6306 = vst [vmem:[%s244 + $0x7c] sm:$0xf] %v6242
        %s6307 = sand.u32 %s159, 1
        %s6308 = scalar_lea.sflag [#allocation4], %s6307
        %s6309 = sand.u32 %s159, 1
        %s6310 = smul.addr %s6309, 128
        %s6311 = scalar_lea.vmem [#allocation3], %s6310
        // Predicated region
        $region45: #{tpu_custom_call.1} parent=43 // pred_check
          %p6312 = pneg %p169
        $region46: #{tpu_custom_call.1} parent=43 // pred_check_branch
          %6314 = sbr.rel (%p6312) target = $region48
        $region47: #{tpu_custom_call.1} parent=43 // pred_region
          %s6316 = ssub.s32 2048, 2048
          %6317 = vsyncadd %s6308, %s6316
          %s6318 = smul.addr %s20, 32
          %s6319 = smul.addr %s6318, 64
          %s6320 = scalar_lea.hbm %s6, %s6319
          %s6321 = sshll.u32 %s6311, 4
          %s6322 = int_to_ptr.vmem [resolvable:$true] %s6321
          %6327 = dma.vmem_to_hbm [thread:$0]  %s6322, 2048, %s6320, %s6308, 64, 64, 4
        $region48: #{tpu_custom_call.1} parent=43 // pred_fallthru
          _
      $region44: #{tpu_custom_call.1} parent=5 // pred_fallthru
        _
      %p6328 = scmp.le.s32.totalorder 2, %s15
      // Predicated region
      $region49: #{tpu_custom_call.1} parent=5 // pred_check
        %p6329 = pneg %p6328
      $region50: #{tpu_custom_call.1} parent=5 // pred_check_branch
        %6331 = sbr.rel (%p6329) target = $region52
      $region51: #{tpu_custom_call.1} parent=5 // pred_region
        %s6332 = ssub.s32 %s15, 2
        // Predicated region
        $region53: #{tpu_custom_call.1} parent=51 // pred_check
          %p6333 = pneg %p175
        $region54: #{tpu_custom_call.1} parent=51 // pred_check_branch
          %6335 = sbr.rel (%p6333) target = $region56
        $region55: #{tpu_custom_call.1} parent=51 // pred_region
          %s6336 = sand.u32 %s160, 1
          %s6337 = scalar_lea.sflag [#allocation4], %s6336
          %s6338 = sand.u32 %s160, 1
          %s6339 = smul.addr %s6338, 128
          %s6340 = scalar_lea.vmem [#allocation3], %s6339
          %6341 = dma.done %s6337, 2048
        $region56: #{tpu_custom_call.1} parent=51 // pred_fallthru
          _
      $region52: #{tpu_custom_call.1} parent=5 // pred_fallthru
        _
    $region6: #{tpu_custom_call.1} parent=1 // loop_footer
      %s19 = sadd.s32 1, %s15
    $region7: #{tpu_custom_call.1} parent=1 // loop_footer_branch
      %14 = sbr.rel target = $region3
    $region8: #{tpu_custom_call.1} parent=1 // loop_exit
      _
    %6342 = vsyncpa [#allocation4], 1
    %s6343 = scalar_lea.sflag [#allocation4], 1
    %6344 = vsyncpa %s6343, 1

</llo_original>
